<compile_context>
chip_gen: v7x
topology: tpu7x:2x2x1
jax: 0.10.0
libtpu: 0.0.40
codegen_flags: <defaults>
</compile_context>

<pallas_src>
import functools
import math

import jax
import jax.numpy as jnp
from jax.experimental import pallas as pl
from jax.experimental.pallas import tpu as pltpu

# num_grid_points is a free symbol in the reference module; pick a small value.
NUM_GRID_POINTS = 63
D_IO = NUM_GRID_POINTS + 1                      # 64: true input dim == output dim
HIDDEN = (264, 328, 464, 328, 264)              # hidden widths from the Sequential
LAYER_DIMS = (D_IO,) + HIDDEN + (D_IO,)         # true (PyTorch) widths
NEG_SLOPE = 2.0                                 # LeakyReLU(negative_slope=2)


def _round_up(n, m):
    return ((n + m - 1) // m) * m


# Lane-dense padded widths: (128, 384, 384, 512, 384, 384, 128)
PAD_DIMS = tuple(_round_up(d, 128) for d in LAYER_DIMS)
N_LAYERS = len(LAYER_DIMS) - 1


def _leaky_relu(x):
    # PyTorch: max(0, x) + negative_slope * min(0, x)
    return jnp.where(x >= 0, x, NEG_SLOPE * x)


def mlp_kernel(x_ref, *refs):
    """refs = (w0, b0, w1, b1, ..., w5, b5, out_ref).

    Whole MLP hot path (6 matmuls + bias + LeakyReLU) runs in-kernel on VMEM
    tiles.  Matmul inputs are bf16 (2x MXU throughput, half the weight bytes),
    accumulation and the nonlinearity are f32.
    """
    out_ref = refs[-1]
    param_refs = refs[:-1]
    h = x_ref[...].astype(jnp.float32)
    for l in range(N_LAYERS):
        w = param_refs[2 * l][...]            # bf16 (pad_in, pad_out)
        b = param_refs[2 * l + 1][...]        # f32  (1, pad_out)
        acc = jnp.dot(h.astype(jnp.bfloat16), w,
                      preferred_element_type=jnp.float32)
        h = _leaky_relu(acc + b)
    out_ref[...] = h.astype(out_ref.dtype)


@functools.partial(jax.jit, static_argnames=("tile_b",))
def mlp_forward(x, params, tile_b=512):
    """x: (B, D_IO) float32; params: flat list [w0, b0, ..., w5, b5] (padded)."""
    B, D = x.shape
    assert D == D_IO

    # Clamp the batch tile to the (8-aligned) batch, pad batch to a tile multiple
    # and the feature dim to 128 lanes.
    tile = min(tile_b, _round_up(B, 8))
    b_pad = _round_up(B, tile)
    d_in_pad, d_out_pad = PAD_DIMS[0], PAD_DIMS[-1]
    x_pad = jnp.zeros((b_pad, d_in_pad), jnp.float32).at[:B, :D].set(x)

    grid = (b_pad // tile,)

    # Input / output tiled over the batch; parameters passed as full blocks
    # (block_shape == full array dims -> no (8,128) divisibility issue) and
    # grid-invariant, so they stay resident in VMEM across all grid steps.
    in_specs = [pl.BlockSpec((tile, d_in_pad), lambda i: (i, 0))]
    for p in params:
        # Bind rank explicitly (avoid late-binding closure over the loop var).
        in_specs.append(pl.BlockSpec(p.shape, lambda i, r=p.ndim: (0,) * r))

    out_spec = pl.BlockSpec((tile, d_out_pad), lambda i: (i, 0))

    flops = 2 * b_pad * sum(PAD_DIMS[l] * PAD_DIMS[l + 1] for l in range(N_LAYERS))
    bytes_accessed = (
        x_pad.size * 4
        + b_pad * d_out_pad * 4
        + sum(int(p.size) * p.dtype.itemsize for p in params)
    )

    out_pad = pl.pallas_call(
        mlp_kernel,
        out_shape=jax.ShapeDtypeStruct((b_pad, d_out_pad), jnp.float32),
        grid_spec=pltpu.PrefetchScalarGridSpec(
            num_scalar_prefetch=0,
            grid=grid,
            in_specs=in_specs,
            out_specs=out_spec,
        ),
        compiler_params=pltpu.CompilerParams(
            dimension_semantics=("parallel",),
        ),
        cost_estimate=pl.CostEstimate(
            flops=flops, transcendentals=0, bytes_accessed=bytes_accessed
        ),
    )(x_pad, *params)

    return out_pad[:B, :D_IO]


def init_params(key):
    """PyTorch-Linear-style init (U[-1/sqrt(in), 1/sqrt(in)]) on the TRUE dims,
    zero-padded to lane-dense padded dims.  Weights stored (in, out) bf16,
    biases (1, out) f32."""
    params = []
    for l in range(N_LAYERS):
        d_in, d_out = LAYER_DIMS[l], LAYER_DIMS[l + 1]
        p_in, p_out = PAD_DIMS[l], PAD_DIMS[l + 1]
        key, kw, kb = jax.random.split(key, 3)
        bound = 1.0 / math.sqrt(d_in)
        w = jax.random.uniform(kw, (d_in, d_out), jnp.float32, -bound, bound)
        b = jax.random.uniform(kb, (d_out,), jnp.float32, -bound, bound)
        w_pad = jnp.zeros((p_in, p_out), jnp.float32).at[:d_in, :d_out].set(w)
        b_pad = jnp.zeros((1, p_out), jnp.float32).at[0, :d_out].set(b)
        params.extend([w_pad.astype(jnp.bfloat16), b_pad])
    return params


def reference_forward(x, params):
    """Pure-JAX f32 reference of the PyTorch forward (same stored weights)."""
    B, D = x.shape
    h = jnp.zeros((B, PAD_DIMS[0]), jnp.float32).at[:, :D].set(x)
    for l in range(N_LAYERS):
        w = params[2 * l].astype(jnp.float32)
        b = params[2 * l + 1]
        h = _leaky_relu(h @ w + b)
    return h[:, :D_IO]


if __name__ == "__main__":
    key = jax.random.PRNGKey(0)
    key, kx = jax.random.split(key)
    batch = 64
    x = jax.random.normal(kx, (batch, D_IO), jnp.float32)

    params = init_params(key)

    out = jax.block_until_ready(mlp_forward(x, params))

    ref = reference_forward(x, params)
    assert out.shape == (batch, D_IO)
    # bf16 matmul inputs (f32 accumulation) vs f32 reference: use a relative
    # norm check instead of a tight elementwise allclose.
    rel = float(jnp.linalg.norm(out - ref) / (jnp.linalg.norm(ref) + 1e-12))
    assert rel < 2e-2, f"relative error {rel:.4e} vs f32 reference"

    print("KERNEL_OK")
</pallas_src>

<mosaic_0001>
module attributes {stable_mosaic.version = 11 : i64} {
  func.func @mlp_kernel(%arg0: i32, %arg1: memref<64x128xf32, #tpu.memory_space<vmem>>, %arg2: memref<128x384xbf16, #tpu.memory_space<vmem>>, %arg3: memref<1x384xf32, #tpu.memory_space<vmem>>, %arg4: memref<384x384xbf16, #tpu.memory_space<vmem>>, %arg5: memref<1x384xf32, #tpu.memory_space<vmem>>, %arg6: memref<384x512xbf16, #tpu.memory_space<vmem>>, %arg7: memref<1x512xf32, #tpu.memory_space<vmem>>, %arg8: memref<512x384xbf16, #tpu.memory_space<vmem>>, %arg9: memref<1x384xf32, #tpu.memory_space<vmem>>, %arg10: memref<384x384xbf16, #tpu.memory_space<vmem>>, %arg11: memref<1x384xf32, #tpu.memory_space<vmem>>, %arg12: memref<384x128xbf16, #tpu.memory_space<vmem>>, %arg13: memref<1x128xf32, #tpu.memory_space<vmem>>, %arg14: memref<64x128xf32, #tpu.memory_space<vmem>>) attributes {dimension_semantics = [#tpu.dimension_semantics<parallel>], iteration_bounds = array<i64: 1>, scalar_prefetch = 0 : i64, scratch_operands = 0 : i64, tpu.core_type = #tpu.core_type<tc>, window_params = [{transform_indices = @transform_0, window_bounds = array<i64: 64, 128>}, {pipeline_mode = #tpu.pipeline_mode<synchronous>, transform_indices = @transform_1, window_bounds = array<i64: 128, 384>}, {pipeline_mode = #tpu.pipeline_mode<synchronous>, transform_indices = @transform_2, window_bounds = array<i64: 1, 384>}, {pipeline_mode = #tpu.pipeline_mode<synchronous>, transform_indices = @transform_3, window_bounds = array<i64: 384, 384>}, {pipeline_mode = #tpu.pipeline_mode<synchronous>, transform_indices = @transform_4, window_bounds = array<i64: 1, 384>}, {pipeline_mode = #tpu.pipeline_mode<synchronous>, transform_indices = @transform_5, window_bounds = array<i64: 384, 512>}, {pipeline_mode = #tpu.pipeline_mode<synchronous>, transform_indices = @transform_6, window_bounds = array<i64: 1, 512>}, {pipeline_mode = #tpu.pipeline_mode<synchronous>, transform_indices = @transform_7, window_bounds = array<i64: 512, 384>}, {pipeline_mode = #tpu.pipeline_mode<synchronous>, transform_indices = @transform_8, window_bounds = array<i64: 1, 384>}, {pipeline_mode = #tpu.pipeline_mode<synchronous>, transform_indices = @transform_9, window_bounds = array<i64: 384, 384>}, {pipeline_mode = #tpu.pipeline_mode<synchronous>, transform_indices = @transform_10, window_bounds = array<i64: 1, 384>}, {pipeline_mode = #tpu.pipeline_mode<synchronous>, transform_indices = @transform_11, window_bounds = array<i64: 384, 128>}, {pipeline_mode = #tpu.pipeline_mode<synchronous>, transform_indices = @transform_12, window_bounds = array<i64: 1, 128>}, {transform_indices = @transform_13, window_bounds = array<i64: 64, 128>}]} {
    %c0 = arith.constant 0 : index
    %c0_0 = arith.constant 0 : index
    %0 = vector.load %arg1[%c0, %c0_0] : memref<64x128xf32, #tpu.memory_space<vmem>>, vector<64x128xf32>
    %c0_1 = arith.constant 0 : index
    %c0_2 = arith.constant 0 : index
    %1 = vector.load %arg2[%c0_1, %c0_2] : memref<128x384xbf16, #tpu.memory_space<vmem>>, vector<128x384xbf16>
    %c0_3 = arith.constant 0 : index
    %c0_4 = arith.constant 0 : index
    %2 = vector.load %arg3[%c0_3, %c0_4] : memref<1x384xf32, #tpu.memory_space<vmem>>, vector<1x384xf32>
    %3 = arith.truncf %0 : vector<64x128xf32> to vector<64x128xbf16>
    %cst = arith.constant dense<0.000000e+00> : vector<64x384xf32>
    %4 = tpu.matmul %3, %1, %cst {dimension_numbers = #tpu.dot_dimension_numbers<[1], [0], [0], [1], [0, 0, 1, 1], [], []>} : vector<64x128xbf16>, vector<128x384xbf16>, vector<64x384xf32> -> vector<64x384xf32>
    %5 = vector.broadcast %2 : vector<1x384xf32> to vector<64x384xf32>
    %6 = arith.addf %4, %5 : vector<64x384xf32>
    %cst_5 = arith.constant 0.000000e+00 : f32
    %7 = vector.broadcast %cst_5 : f32 to vector<64x384xf32>
    %8 = arith.cmpf oge, %6, %7 : vector<64x384xf32>
    %cst_6 = arith.constant 2.000000e+00 : f32
    %9 = vector.broadcast %cst_6 : f32 to vector<64x384xf32>
    %10 = arith.mulf %9, %6 : vector<64x384xf32>
    %11 = arith.select %8, %6, %10 : vector<64x384xi1>, vector<64x384xf32>
    %c0_7 = arith.constant 0 : index
    %c0_8 = arith.constant 0 : index
    %12 = vector.load %arg4[%c0_7, %c0_8] : memref<384x384xbf16, #tpu.memory_space<vmem>>, vector<384x384xbf16>
    %c0_9 = arith.constant 0 : index
    %c0_10 = arith.constant 0 : index
    %13 = vector.load %arg5[%c0_9, %c0_10] : memref<1x384xf32, #tpu.memory_space<vmem>>, vector<1x384xf32>
    %14 = arith.truncf %11 : vector<64x384xf32> to vector<64x384xbf16>
    %cst_11 = arith.constant dense<0.000000e+00> : vector<64x384xf32>
    %15 = tpu.matmul %14, %12, %cst_11 {dimension_numbers = #tpu.dot_dimension_numbers<[1], [0], [0], [1], [0, 0, 1, 1], [], []>} : vector<64x384xbf16>, vector<384x384xbf16>, vector<64x384xf32> -> vector<64x384xf32>
    %16 = vector.broadcast %13 : vector<1x384xf32> to vector<64x384xf32>
    %17 = arith.addf %15, %16 : vector<64x384xf32>
    %cst_12 = arith.constant 0.000000e+00 : f32
    %18 = vector.broadcast %cst_12 : f32 to vector<64x384xf32>
    %19 = arith.cmpf oge, %17, %18 : vector<64x384xf32>
    %cst_13 = arith.constant 2.000000e+00 : f32
    %20 = vector.broadcast %cst_13 : f32 to vector<64x384xf32>
    %21 = arith.mulf %20, %17 : vector<64x384xf32>
    %22 = arith.select %19, %17, %21 : vector<64x384xi1>, vector<64x384xf32>
    %c0_14 = arith.constant 0 : index
    %c0_15 = arith.constant 0 : index
    %23 = vector.load %arg6[%c0_14, %c0_15] : memref<384x512xbf16, #tpu.memory_space<vmem>>, vector<384x512xbf16>
    %c0_16 = arith.constant 0 : index
    %c0_17 = arith.constant 0 : index
    %24 = vector.load %arg7[%c0_16, %c0_17] : memref<1x512xf32, #tpu.memory_space<vmem>>, vector<1x512xf32>
    %25 = arith.truncf %22 : vector<64x384xf32> to vector<64x384xbf16>
    %cst_18 = arith.constant dense<0.000000e+00> : vector<64x512xf32>
    %26 = tpu.matmul %25, %23, %cst_18 {dimension_numbers = #tpu.dot_dimension_numbers<[1], [0], [0], [1], [0, 0, 1, 1], [], []>} : vector<64x384xbf16>, vector<384x512xbf16>, vector<64x512xf32> -> vector<64x512xf32>
    %27 = vector.broadcast %24 : vector<1x512xf32> to vector<64x512xf32>
    %28 = arith.addf %26, %27 : vector<64x512xf32>
    %cst_19 = arith.constant 0.000000e+00 : f32
    %29 = vector.broadcast %cst_19 : f32 to vector<64x512xf32>
    %30 = arith.cmpf oge, %28, %29 : vector<64x512xf32>
    %cst_20 = arith.constant 2.000000e+00 : f32
    %31 = vector.broadcast %cst_20 : f32 to vector<64x512xf32>
    %32 = arith.mulf %31, %28 : vector<64x512xf32>
    %33 = arith.select %30, %28, %32 : vector<64x512xi1>, vector<64x512xf32>
    %c0_21 = arith.constant 0 : index
    %c0_22 = arith.constant 0 : index
    %34 = vector.load %arg8[%c0_21, %c0_22] : memref<512x384xbf16, #tpu.memory_space<vmem>>, vector<512x384xbf16>
    %c0_23 = arith.constant 0 : index
    %c0_24 = arith.constant 0 : index
    %35 = vector.load %arg9[%c0_23, %c0_24] : memref<1x384xf32, #tpu.memory_space<vmem>>, vector<1x384xf32>
    %36 = arith.truncf %33 : vector<64x512xf32> to vector<64x512xbf16>
    %cst_25 = arith.constant dense<0.000000e+00> : vector<64x384xf32>
    %37 = tpu.matmul %36, %34, %cst_25 {dimension_numbers = #tpu.dot_dimension_numbers<[1], [0], [0], [1], [0, 0, 1, 1], [], []>} : vector<64x512xbf16>, vector<512x384xbf16>, vector<64x384xf32> -> vector<64x384xf32>
    %38 = vector.broadcast %35 : vector<1x384xf32> to vector<64x384xf32>
    %39 = arith.addf %37, %38 : vector<64x384xf32>
    %cst_26 = arith.constant 0.000000e+00 : f32
    %40 = vector.broadcast %cst_26 : f32 to vector<64x384xf32>
    %41 = arith.cmpf oge, %39, %40 : vector<64x384xf32>
    %cst_27 = arith.constant 2.000000e+00 : f32
    %42 = vector.broadcast %cst_27 : f32 to vector<64x384xf32>
    %43 = arith.mulf %42, %39 : vector<64x384xf32>
    %44 = arith.select %41, %39, %43 : vector<64x384xi1>, vector<64x384xf32>
    %c0_28 = arith.constant 0 : index
    %c0_29 = arith.constant 0 : index
    %45 = vector.load %arg10[%c0_28, %c0_29] : memref<384x384xbf16, #tpu.memory_space<vmem>>, vector<384x384xbf16>
    %c0_30 = arith.constant 0 : index
    %c0_31 = arith.constant 0 : index
    %46 = vector.load %arg11[%c0_30, %c0_31] : memref<1x384xf32, #tpu.memory_space<vmem>>, vector<1x384xf32>
    %47 = arith.truncf %44 : vector<64x384xf32> to vector<64x384xbf16>
    %cst_32 = arith.constant dense<0.000000e+00> : vector<64x384xf32>
    %48 = tpu.matmul %47, %45, %cst_32 {dimension_numbers = #tpu.dot_dimension_numbers<[1], [0], [0], [1], [0, 0, 1, 1], [], []>} : vector<64x384xbf16>, vector<384x384xbf16>, vector<64x384xf32> -> vector<64x384xf32>
    %49 = vector.broadcast %46 : vector<1x384xf32> to vector<64x384xf32>
    %50 = arith.addf %48, %49 : vector<64x384xf32>
    %cst_33 = arith.constant 0.000000e+00 : f32
    %51 = vector.broadcast %cst_33 : f32 to vector<64x384xf32>
    %52 = arith.cmpf oge, %50, %51 : vector<64x384xf32>
    %cst_34 = arith.constant 2.000000e+00 : f32
    %53 = vector.broadcast %cst_34 : f32 to vector<64x384xf32>
    %54 = arith.mulf %53, %50 : vector<64x384xf32>
    %55 = arith.select %52, %50, %54 : vector<64x384xi1>, vector<64x384xf32>
    %c0_35 = arith.constant 0 : index
    %c0_36 = arith.constant 0 : index
    %56 = vector.load %arg12[%c0_35, %c0_36] : memref<384x128xbf16, #tpu.memory_space<vmem>>, vector<384x128xbf16>
    %c0_37 = arith.constant 0 : index
    %c0_38 = arith.constant 0 : index
    %57 = vector.load %arg13[%c0_37, %c0_38] : memref<1x128xf32, #tpu.memory_space<vmem>>, vector<1x128xf32>
    %58 = arith.truncf %55 : vector<64x384xf32> to vector<64x384xbf16>
    %cst_39 = arith.constant dense<0.000000e+00> : vector<64x128xf32>
    %59 = tpu.matmul %58, %56, %cst_39 {dimension_numbers = #tpu.dot_dimension_numbers<[1], [0], [0], [1], [0, 0, 1, 1], [], []>} : vector<64x384xbf16>, vector<384x128xbf16>, vector<64x128xf32> -> vector<64x128xf32>
    %60 = vector.broadcast %57 : vector<1x128xf32> to vector<64x128xf32>
    %61 = arith.addf %59, %60 : vector<64x128xf32>
    %cst_40 = arith.constant 0.000000e+00 : f32
    %62 = vector.broadcast %cst_40 : f32 to vector<64x128xf32>
    %63 = arith.cmpf oge, %61, %62 : vector<64x128xf32>
    %cst_41 = arith.constant 2.000000e+00 : f32
    %64 = vector.broadcast %cst_41 : f32 to vector<64x128xf32>
    %65 = arith.mulf %64, %61 : vector<64x128xf32>
    %66 = arith.select %63, %61, %65 : vector<64x128xi1>, vector<64x128xf32>
    %c0_42 = arith.constant 0 : index
    %c0_43 = arith.constant 0 : index
    %67 = vector.load %arg14[%c0_42, %c0_43] : memref<64x128xf32, #tpu.memory_space<vmem>>, vector<64x128xf32>
    tpu.vector_store %arg14[%c0_42, %c0_43], %66 {strides = array<i32>} : memref<64x128xf32, #tpu.memory_space<vmem>>, vector<64x128xf32>,
    return
  }
  func.func @transform_0(%arg0: i32) -> (i32, i32) {
    %c0_i32 = arith.constant 0 : i32
    %c0_i32_0 = arith.constant 0 : i32
    return %arg0, %c0_i32 : i32, i32
  }
  func.func @transform_1(%arg0: i32) -> (i32, i32) {
    %c0_i32 = arith.constant 0 : i32
    %c0_i32_0 = arith.constant 0 : i32
    %c0_i32_1 = arith.constant 0 : i32
    return %c0_i32, %c0_i32_0 : i32, i32
  }
  func.func @transform_2(%arg0: i32) -> (i32, i32) {
    %c0_i32 = arith.constant 0 : i32
    %c0_i32_0 = arith.constant 0 : i32
    %c0_i32_1 = arith.constant 0 : i32
    return %c0_i32, %c0_i32_0 : i32, i32
  }
  func.func @transform_3(%arg0: i32) -> (i32, i32) {
    %c0_i32 = arith.constant 0 : i32
    %c0_i32_0 = arith.constant 0 : i32
    %c0_i32_1 = arith.constant 0 : i32
    return %c0_i32, %c0_i32_0 : i32, i32
  }
  func.func @transform_4(%arg0: i32) -> (i32, i32) {
    %c0_i32 = arith.constant 0 : i32
    %c0_i32_0 = arith.constant 0 : i32
    %c0_i32_1 = arith.constant 0 : i32
    return %c0_i32, %c0_i32_0 : i32, i32
  }
  func.func @transform_5(%arg0: i32) -> (i32, i32) {
    %c0_i32 = arith.constant 0 : i32
    %c0_i32_0 = arith.constant 0 : i32
    %c0_i32_1 = arith.constant 0 : i32
    return %c0_i32, %c0_i32_0 : i32, i32
  }
  func.func @transform_6(%arg0: i32) -> (i32, i32) {
    %c0_i32 = arith.constant 0 : i32
    %c0_i32_0 = arith.constant 0 : i32
    %c0_i32_1 = arith.constant 0 : i32
    return %c0_i32, %c0_i32_0 : i32, i32
  }
  func.func @transform_7(%arg0: i32) -> (i32, i32) {
    %c0_i32 = arith.constant 0 : i32
    %c0_i32_0 = arith.constant 0 : i32
    %c0_i32_1 = arith.constant 0 : i32
    return %c0_i32, %c0_i32_0 : i32, i32
  }
  func.func @transform_8(%arg0: i32) -> (i32, i32) {
    %c0_i32 = arith.constant 0 : i32
    %c0_i32_0 = arith.constant 0 : i32
    %c0_i32_1 = arith.constant 0 : i32
    return %c0_i32, %c0_i32_0 : i32, i32
  }
  func.func @transform_9(%arg0: i32) -> (i32, i32) {
    %c0_i32 = arith.constant 0 : i32
    %c0_i32_0 = arith.constant 0 : i32
    %c0_i32_1 = arith.constant 0 : i32
    return %c0_i32, %c0_i32_0 : i32, i32
  }
  func.func @transform_10(%arg0: i32) -> (i32, i32) {
    %c0_i32 = arith.constant 0 : i32
    %c0_i32_0 = arith.constant 0 : i32
    %c0_i32_1 = arith.constant 0 : i32
    return %c0_i32, %c0_i32_0 : i32, i32
  }
  func.func @transform_11(%arg0: i32) -> (i32, i32) {
    %c0_i32 = arith.constant 0 : i32
    %c0_i32_0 = arith.constant 0 : i32
    %c0_i32_1 = arith.constant 0 : i32
    return %c0_i32, %c0_i32_0 : i32, i32
  }
  func.func @transform_12(%arg0: i32) -> (i32, i32) {
    %c0_i32 = arith.constant 0 : i32
    %c0_i32_0 = arith.constant 0 : i32
    %c0_i32_1 = arith.constant 0 : i32
    return %c0_i32, %c0_i32_0 : i32, i32
  }
  func.func @transform_13(%arg0: i32) -> (i32, i32) {
    %c0_i32 = arith.constant 0 : i32
    %c0_i32_0 = arith.constant 0 : i32
    return %arg0, %c0_i32 : i32, i32
  }
}

</mosaic_0001>

<llo_original>
// kernel: mlp_forward.1
$region0: #{mlp_forward.1}
  #allocation0 [shape = 'u32[]', space=smem, size = 0x4, offset = 0x4, fixed_abs, tag = 'smem constant byte address 0x4 - core index']
  #allocation1 [shape = 'u32[144,128]{1,0:T(1,128)}', space=vmem, size = 0x12000, scoped, tag = 'internal scratch']
  %s0 = inlined_call_operand.vmem [shape: f32[64,128], index: 0, kind: input, shape index: {}]
  %s1 = inlined_call_operand.vmem [shape: bf16[128,384], index: 1, kind: input, shape index: {}]
  %s2 = inlined_call_operand.vmem [shape: f32[1,384], index: 2, kind: input, shape index: {}]
  %s3 = inlined_call_operand.hbm [shape: bf16[384,384], index: 3, kind: input, shape index: {}]
  %s4 = inlined_call_operand.vmem [shape: f32[1,384], index: 4, kind: input, shape index: {}]
  %s5 = inlined_call_operand.hbm [shape: bf16[384,512], index: 5, kind: input, shape index: {}]
  %s6 = inlined_call_operand.vmem [shape: f32[1,512], index: 6, kind: input, shape index: {}]
  %s7 = inlined_call_operand.hbm [shape: bf16[512,384], index: 7, kind: input, shape index: {}]
  %s8 = inlined_call_operand.vmem [shape: f32[1,384], index: 8, kind: input, shape index: {}]
  %s9 = inlined_call_operand.hbm [shape: bf16[384,384], index: 9, kind: input, shape index: {}]
  %s10 = inlined_call_operand.vmem [shape: f32[1,384], index: 10, kind: input, shape index: {}]
  %s11 = inlined_call_operand.hbm [shape: bf16[384,128], index: 11, kind: input, shape index: {}]
  %s12 = inlined_call_operand.vmem [shape: f32[1,128], index: 12, kind: input, shape index: {}]
  %s13 = inlined_call_operand.hbm [shape: f32[64,128], index: 13, kind: output, shape index: {}]
  %s14 = sld [smem:[#allocation0]]
  $region82: #{mlp_forward.1} parent=0
    _
  %s16 = ssub.s32 1, %s14
  %s17 = scalar_select 0, %s16, %s14
  $region1: #{mlp_forward.1} parent=0
    #allocation2 [shape = 'u8[294912]{0}', space=vmem, size = 0x48000, scoped, tag = 'input window, operand 3, single buffered']
    #allocation3 [shape = 's32[1]{0}', space=sflag, size = 0x4, scoped, tag = 'scoped memory for mlp_forward.1']
    #allocation4 [shape = 's32[1]{0}', space=sflag, size = 0x4, scoped, tag = 'scoped memory for mlp_forward.1']
    #allocation5 [shape = 'u8[393216]{0}', space=vmem, size = 0x60000, scoped, tag = 'input window, operand 5, single buffered']
    #allocation6 [shape = 's32[1]{0}', space=sflag, size = 0x4, scoped, tag = 'scoped memory for mlp_forward.1']
    #allocation7 [shape = 'u8[393216]{0}', space=vmem, size = 0x60000, scoped, tag = 'input window, operand 7, single buffered']
    #allocation8 [shape = 'u8[294912]{0}', space=vmem, size = 0x48000, scoped, tag = 'input window, operand 9, single buffered']
    #allocation9 [shape = 's32[1]{0}', space=sflag, size = 0x4, scoped, tag = 'scoped memory for mlp_forward.1']
    #allocation10 [shape = 'u8[98304]{0}', space=vmem, size = 0x18000, scoped, tag = 'input window, operand 11, single buffered']
    #allocation11 [shape = 'u8[32768]{0}', space=vmem, size = 0x8000, scoped, tag = 'output window, operand 0, single buffered']
    %18 = vsyncpa [#allocation3], 0
    %19 = vsyncpa [#allocation6], 0
    %20 = vsyncpa [#allocation9], 0
    %21 = vsyncpa [#allocation4], 0
    // Predicated region
    $region2: #{mlp_forward.1} parent=1 // pred_check
      _
    $region3: #{mlp_forward.1} parent=1 // pred_check_branch
      %23 = sbr.rel (0) target = $region5
    $region4: #{mlp_forward.1} parent=1 // pred_region
      _
    $region5: #{mlp_forward.1} parent=1 // pred_fallthru
      _
    // Predicated region
    $region6: #{mlp_forward.1} parent=1 // pred_check
      _
    $region7: #{mlp_forward.1} parent=1 // pred_check_branch
      %25 = sbr.rel (0) target = $region9
    $region8: #{mlp_forward.1} parent=1 // pred_region
      _
    $region9: #{mlp_forward.1} parent=1 // pred_fallthru
      _
    // Predicated region
    $region10: #{mlp_forward.1} parent=1 // pred_check
      _
    $region11: #{mlp_forward.1} parent=1 // pred_check_branch
      %27 = sbr.rel (0) target = $region13
    $region12: #{mlp_forward.1} parent=1 // pred_region
      _
    $region13: #{mlp_forward.1} parent=1 // pred_fallthru
      _
    // Predicated region
    $region14: #{mlp_forward.1} parent=1 // pred_check
      _
    $region15: #{mlp_forward.1} parent=1 // pred_check_branch
      %29 = sbr.rel (0) target = $region17
    $region16: #{mlp_forward.1} parent=1 // pred_region
      %s31 = ssub.s32 9216, 9216
      %32 = vsyncadd [#allocation3], %s31
      %s33 = sshll.u32 [#allocation2], 4
      %s34 = int_to_ptr.vmem [resolvable:$true] %s33
      %39 = dma.hbm_to_vmem [thread:$0]  %s3, 9216, %s34, [#allocation3], 192, 192, 12
    $region17: #{mlp_forward.1} parent=1 // pred_fallthru
      _
    // Predicated region
    $region18: #{mlp_forward.1} parent=1 // pred_check
      _
    $region19: #{mlp_forward.1} parent=1 // pred_check_branch
      %41 = sbr.rel (0) target = $region21
    $region20: #{mlp_forward.1} parent=1 // pred_region
      _
    $region21: #{mlp_forward.1} parent=1 // pred_fallthru
      _
    // Predicated region
    $region22: #{mlp_forward.1} parent=1 // pred_check
      _
    $region23: #{mlp_forward.1} parent=1 // pred_check_branch
      %43 = sbr.rel (0) target = $region25
    $region24: #{mlp_forward.1} parent=1 // pred_region
      %s45 = ssub.s32 12288, 12288
      %46 = vsyncadd [#allocation6], %s45
      %s47 = sshll.u32 [#allocation5], 4
      %s48 = int_to_ptr.vmem [resolvable:$true] %s47
      %53 = dma.hbm_to_vmem [thread:$0]  %s5, 12288, %s48, [#allocation6], 256, 256, 16
    $region25: #{mlp_forward.1} parent=1 // pred_fallthru
      _
    // Predicated region
    $region26: #{mlp_forward.1} parent=1 // pred_check
      _
    $region27: #{mlp_forward.1} parent=1 // pred_check_branch
      %55 = sbr.rel (0) target = $region29
    $region28: #{mlp_forward.1} parent=1 // pred_region
      _
    $region29: #{mlp_forward.1} parent=1 // pred_fallthru
      _
    // Predicated region
    $region30: #{mlp_forward.1} parent=1 // pred_check
      _
    $region31: #{mlp_forward.1} parent=1 // pred_check_branch
      %57 = sbr.rel (0) target = $region33
    $region32: #{mlp_forward.1} parent=1 // pred_region
      %s59 = ssub.s32 12288, 12288
      %60 = vsyncadd [#allocation6], %s59
      %s61 = sshll.u32 [#allocation7], 4
      %s62 = int_to_ptr.vmem [resolvable:$true] %s61
      %67 = dma.hbm_to_vmem [thread:$0]  %s7, 12288, %s62, [#allocation6], 192, 192, 12
    $region33: #{mlp_forward.1} parent=1 // pred_fallthru
      _
    // Predicated region
    $region34: #{mlp_forward.1} parent=1 // pred_check
      _
    $region35: #{mlp_forward.1} parent=1 // pred_check_branch
      %69 = sbr.rel (0) target = $region37
    $region36: #{mlp_forward.1} parent=1 // pred_region
      _
    $region37: #{mlp_forward.1} parent=1 // pred_fallthru
      _
    // Predicated region
    $region38: #{mlp_forward.1} parent=1 // pred_check
      _
    $region39: #{mlp_forward.1} parent=1 // pred_check_branch
      %71 = sbr.rel (0) target = $region41
    $region40: #{mlp_forward.1} parent=1 // pred_region
      %s73 = ssub.s32 9216, 9216
      %74 = vsyncadd [#allocation9], %s73
      %s75 = sshll.u32 [#allocation8], 4
      %s76 = int_to_ptr.vmem [resolvable:$true] %s75
      %81 = dma.hbm_to_vmem [thread:$0]  %s9, 9216, %s76, [#allocation9], 192, 192, 12
    $region41: #{mlp_forward.1} parent=1 // pred_fallthru
      _
    // Predicated region
    $region42: #{mlp_forward.1} parent=1 // pred_check
      _
    $region43: #{mlp_forward.1} parent=1 // pred_check_branch
      %83 = sbr.rel (0) target = $region45
    $region44: #{mlp_forward.1} parent=1 // pred_region
      _
    $region45: #{mlp_forward.1} parent=1 // pred_fallthru
      _
    // Predicated region
    $region46: #{mlp_forward.1} parent=1 // pred_check
      _
    $region47: #{mlp_forward.1} parent=1 // pred_check_branch
      %85 = sbr.rel (0) target = $region49
    $region48: #{mlp_forward.1} parent=1 // pred_region
      %s87 = ssub.s32 3072, 3072
      %88 = vsyncadd [#allocation9], %s87
      %s89 = sshll.u32 [#allocation10], 4
      %s90 = int_to_ptr.vmem [resolvable:$true] %s89
      %95 = dma.hbm_to_vmem [thread:$0]  %s11, 3072, %s90, [#allocation9], 64, 64, 4
    $region49: #{mlp_forward.1} parent=1 // pred_fallthru
      _
    // Predicated region
    $region50: #{mlp_forward.1} parent=1 // pred_check
      _
    $region51: #{mlp_forward.1} parent=1 // pred_check_branch
      %97 = sbr.rel (0) target = $region53
    $region52: #{mlp_forward.1} parent=1 // pred_region
      _
    $region53: #{mlp_forward.1} parent=1 // pred_fallthru
      _
    // Predicated region
    $region54: #{mlp_forward.1} parent=1 // pred_check
      _
    $region55: #{mlp_forward.1} parent=1 // pred_check_branch
      %99 = sbr.rel (0) target = $region57
    $region56: #{mlp_forward.1} parent=1 // pred_region
      %100 = dma.done [#allocation3], 9216
    $region57: #{mlp_forward.1} parent=1 // pred_fallthru
      _
    // Predicated region
    $region58: #{mlp_forward.1} parent=1 // pred_check
      _
    $region59: #{mlp_forward.1} parent=1 // pred_check_branch
      %102 = sbr.rel (0) target = $region61
    $region60: #{mlp_forward.1} parent=1 // pred_region
      %103 = dma.done [#allocation6], 12288
    $region61: #{mlp_forward.1} parent=1 // pred_fallthru
      _
    // Predicated region
    $region62: #{mlp_forward.1} parent=1 // pred_check
      _
    $region63: #{mlp_forward.1} parent=1 // pred_check_branch
      %105 = sbr.rel (0) target = $region65
    $region64: #{mlp_forward.1} parent=1 // pred_region
      %106 = dma.done [#allocation6], 12288
    $region65: #{mlp_forward.1} parent=1 // pred_fallthru
      _
    // Predicated region
    $region66: #{mlp_forward.1} parent=1 // pred_check
      _
    $region67: #{mlp_forward.1} parent=1 // pred_check_branch
      %108 = sbr.rel (0) target = $region69
    $region68: #{mlp_forward.1} parent=1 // pred_region
      %109 = dma.done [#allocation9], 9216
    $region69: #{mlp_forward.1} parent=1 // pred_fallthru
      _
    // Predicated region
    $region70: #{mlp_forward.1} parent=1 // pred_check
      _
    $region71: #{mlp_forward.1} parent=1 // pred_check_branch
      %111 = sbr.rel (0) target = $region73
    $region72: #{mlp_forward.1} parent=1 // pred_region
      %112 = dma.done [#allocation9], 3072
    $region73: #{mlp_forward.1} parent=1 // pred_fallthru
      _
    %v114 = vld [vmem:[%s0] sm:$0xff]
    %v115 = vld [vmem:[%s0 + $0x8] sm:$0xff]
    %v116 = vld [vmem:[%s0 + $0x10] sm:$0xff]
    %v117 = vld [vmem:[%s0 + $0x18] sm:$0xff]
    %v118 = vld [vmem:[%s0 + $0x20] sm:$0xff]
    %v119 = vld [vmem:[%s0 + $0x28] sm:$0xff]
    %v120 = vld [vmem:[%s0 + $0x30] sm:$0xff]
    %v121 = vld [vmem:[%s0 + $0x38] sm:$0xff]
    %v122 = vld [vmem:[%s1] sm:$0xff]
    %v123 = vld [vmem:[%s1 + $0x8] sm:$0xf]
    %v124 = vld [vmem:[%s1 + $0xc] sm:$0xff]
    %v125 = vld [vmem:[%s1 + $0x14] sm:$0xf]
    %v126 = vld [vmem:[%s1 + $0x18] sm:$0xff]
    %v127 = vld [vmem:[%s1 + $0x20] sm:$0xf]
    %v128 = vld [vmem:[%s1 + $0x24] sm:$0xff]
    %v129 = vld [vmem:[%s1 + $0x2c] sm:$0xf]
    %v130 = vld [vmem:[%s1 + $0x30] sm:$0xff]
    %v131 = vld [vmem:[%s1 + $0x38] sm:$0xf]
    %v132 = vld [vmem:[%s1 + $0x3c] sm:$0xff]
    %v133 = vld [vmem:[%s1 + $0x44] sm:$0xf]
    %v134 = vld [vmem:[%s1 + $0x48] sm:$0xff]
    %v135 = vld [vmem:[%s1 + $0x50] sm:$0xf]
    %v136 = vld [vmem:[%s1 + $0x54] sm:$0xff]
    %v137 = vld [vmem:[%s1 + $0x5c] sm:$0xf]
    %v138 = vld [vmem:[%s1 + $0x60] sm:$0xff]
    %v139 = vld [vmem:[%s1 + $0x68] sm:$0xf]
    %v140 = vld [vmem:[%s1 + $0x6c] sm:$0xff]
    %v141 = vld [vmem:[%s1 + $0x74] sm:$0xf]
    %v142 = vld [vmem:[%s1 + $0x78] sm:$0xff]
    %v143 = vld [vmem:[%s1 + $0x80] sm:$0xf]
    %v144 = vld [vmem:[%s1 + $0x84] sm:$0xff]
    %v145 = vld [vmem:[%s1 + $0x8c] sm:$0xf]
    %v146 = vld [vmem:[%s1 + $0x90] sm:$0xff]
    %v147 = vld [vmem:[%s1 + $0x98] sm:$0xf]
    %v148 = vld [vmem:[%s1 + $0x9c] sm:$0xff]
    %v149 = vld [vmem:[%s1 + $0xa4] sm:$0xf]
    %v150 = vld [vmem:[%s1 + $0xa8] sm:$0xff]
    %v151 = vld [vmem:[%s1 + $0xb0] sm:$0xf]
    %v152 = vld [vmem:[%s1 + $0xb4] sm:$0xff]
    %v153 = vld [vmem:[%s1 + $0xbc] sm:$0xf]
    %v154 = vld [vmem:[%s2] sm:$0x7]
    %v155 = vpack.c.bf16 %v115, %v114
    %v156 = vpack.c.bf16 %v117, %v116
    %v157 = vpack.c.bf16 %v119, %v118
    %v158 = vpack.c.bf16 %v121, %v120
    %v160 = vlaneseq
    %v161 = vshrl.u32 %v160, 7
    %v162 = vsub.s32 0, %v161
    %v163 = vrot.slane %v154, %v162
    %v164 = vlaneseq
    %v165 = vshrl.u32 %v164, 7
    %v166 = vsub.s32 1, %v165
    %v167 = vrot.slane %v154, %v166
    %v168 = vlaneseq
    %v169 = vshrl.u32 %v168, 7
    %v170 = vsub.s32 2, %v169
    %v171 = vrot.slane %v154, %v170
    %v207 = vunpack.c.l.b16 %v122
    %v208 = vunpack.c.h.b16 %v122
    %v209 = vunpack.c.l.b16 %v123
    %v210 = vunpack.c.l.b16 %v124
    %v211 = vunpack.c.h.b16 %v124
    %v212 = vunpack.c.l.b16 %v125
    %v213 = vunpack.c.l.b16 %v126
    %v214 = vunpack.c.h.b16 %v126
    %v215 = vunpack.c.l.b16 %v127
    %v216 = vunpack.c.l.b16 %v128
    %v217 = vunpack.c.h.b16 %v128
    %v218 = vunpack.c.l.b16 %v129
    %v219 = vunpack.c.l.b16 %v130
    %v220 = vunpack.c.h.b16 %v130
    %v221 = vunpack.c.l.b16 %v131
    %v222 = vunpack.c.l.b16 %v132
    %v223 = vunpack.c.h.b16 %v132
    %v224 = vunpack.c.l.b16 %v133
    %v225 = vunpack.c.l.b16 %v134
    %v226 = vunpack.c.h.b16 %v134
    %v227 = vunpack.c.l.b16 %v135
    %v228 = vunpack.c.l.b16 %v136
    %v229 = vunpack.c.h.b16 %v136
    %v230 = vunpack.c.l.b16 %v137
    %v231 = vunpack.c.l.b16 %v138
    %v232 = vunpack.c.h.b16 %v138
    %v233 = vunpack.c.l.b16 %v139
    %v234 = vunpack.c.l.b16 %v140
    %v235 = vunpack.c.h.b16 %v140
    %v236 = vunpack.c.l.b16 %v141
    %v237 = vunpack.c.l.b16 %v142
    %v238 = vunpack.c.h.b16 %v142
    %v239 = vunpack.c.l.b16 %v143
    %v240 = vunpack.c.l.b16 %v144
    %v241 = vunpack.c.h.b16 %v144
    %v242 = vunpack.c.l.b16 %v145
    %v243 = vunpack.c.l.b16 %v146
    %v244 = vunpack.c.h.b16 %v146
    %v245 = vunpack.c.l.b16 %v147
    %v246 = vunpack.c.l.b16 %v148
    %v247 = vunpack.c.h.b16 %v148
    %v248 = vunpack.c.l.b16 %v149
    %v249 = vunpack.c.l.b16 %v150
    %v250 = vunpack.c.h.b16 %v150
    %v251 = vunpack.c.l.b16 %v151
    %v252 = vunpack.c.l.b16 %v152
    %v253 = vunpack.c.h.b16 %v152
    %v254 = vunpack.c.l.b16 %v153
    %v255 = vpack.c.b16 %v210, %v207
    %v256 = vpack.c.b16 %v211, %v208
    %v257 = vpack.c.b16 %v212, %v209
    %v258 = vpack.c.b16 %v216, %v213
    %v259 = vpack.c.b16 %v217, %v214
    %v260 = vpack.c.b16 %v218, %v215
    %v261 = vpack.c.b16 %v222, %v219
    %v262 = vpack.c.b16 %v223, %v220
    %v263 = vpack.c.b16 %v224, %v221
    %v264 = vpack.c.b16 %v228, %v225
    %v265 = vpack.c.b16 %v229, %v226
    %v266 = vpack.c.b16 %v230, %v227
    %v267 = vpack.c.b16 %v234, %v231
    %v268 = vpack.c.b16 %v235, %v232
    %v269 = vpack.c.b16 %v236, %v233
    %v270 = vpack.c.b16 %v240, %v237
    %v271 = vpack.c.b16 %v241, %v238
    %v272 = vpack.c.b16 %v242, %v239
    %v273 = vpack.c.b16 %v246, %v243
    %v274 = vpack.c.b16 %v247, %v244
    %v275 = vpack.c.b16 %v248, %v245
    %v276 = vpack.c.b16 %v252, %v249
    %v277 = vpack.c.b16 %v253, %v250
    %v278 = vpack.c.b16 %v254, %v251
    %303 = vmatprep.subr.bf16.mxu0 %v256
    %304 = vmatpush1.bf16.msra.mxu0 %v255
    %305 = vmatprep.subr.bf16.mxu0 %v259
    %306 = vmatpush1.bf16.msra.mxu0 %v258
    %307 = vmatprep.subr.bf16.mxu0 %v262
    %308 = vmatpush1.bf16.msra.mxu0 %v261
    %309 = vmatprep.subr.bf16.mxu0 %v265
    %310 = vmatpush1.bf16.msra.mxu0 %v264
    %311 = vmatprep.subr.bf16.mxu0 %v268
    %312 = vmatpush1.bf16.msra.mxu0 %v267
    %313 = vmatprep.subr.bf16.mxu0 %v271
    %314 = vmatpush1.bf16.msra.mxu0 %v270
    %315 = vmatprep.subr.bf16.mxu0 %v274
    %316 = vmatpush1.bf16.msra.mxu0 %v273
    %317 = vmatprep.subr.bf16.mxu0 %v277
    %318 = vmatpush1.bf16.msra.mxu0 %v276
    %319 = vmatprep.subr.bf16.mxu0 0
    %320 = vmatpush1.bf16.msra.mxu0 0
    %321 = vmatprep.subr.bf16.mxu0 0
    %322 = vmatpush1.bf16.msra.mxu0 0
    %323 = vmatprep.subr.bf16.mxu0 0
    %324 = vmatpush1.bf16.msra.mxu0 0
    %325 = vmatprep.subr.bf16.mxu0 0
    %326 = vmatpush1.bf16.msra.mxu0 0
    %327 = vmatprep.subr.bf16.mxu0 0
    %328 = vmatpush1.bf16.msra.mxu0 0
    %329 = vmatprep.subr.bf16.mxu0 0
    %330 = vmatpush1.bf16.msra.mxu0 0
    %331 = vmatprep.subr.bf16.mxu0 0
    %332 = vmatpush1.bf16.msra.mxu0 0
    %333 = vmatprep.subr.bf16.mxu0 0
    %334 = vmatpush1.bf16.msra.mxu0 0
    %335 = vmatprep.mubr.bf16.mxu0 0
    %336 = vmatmul.mubr.bf16.gmra.mrb[0].mxu0 %v155
    %v337 = vpop.f32.mrb[0].mxu0
    %v338 = vadd.f32 %v163, %v337
    %v339 = vpop.f32.mrb[0].mxu0
    %v340 = vadd.f32 %v167, %v339
    %v341 = vpop.f32.mrb[0].mxu0
    %v342 = vadd.f32 %v163, %v341
    %v343 = vpop.f32.mrb[0].mxu0
    %v344 = vadd.f32 %v167, %v343
    %345 = vmatprep.mubr.bf16.mxu0 0
    %346 = vmatmul.mubr.bf16.gmra.mrb[0].mxu0 %v156
    %v347 = vpop.f32.mrb[0].mxu0
    %v348 = vadd.f32 %v163, %v347
    %v349 = vpop.f32.mrb[0].mxu0
    %v350 = vadd.f32 %v167, %v349
    %v351 = vpop.f32.mrb[0].mxu0
    %v352 = vadd.f32 %v163, %v351
    %v353 = vpop.f32.mrb[0].mxu0
    %v354 = vadd.f32 %v167, %v353
    %355 = vmatprep.mubr.bf16.mxu0 0
    %356 = vmatmul.mubr.bf16.gmra.mrb[0].mxu0 %v157
    %v357 = vpop.f32.mrb[0].mxu0
    %v358 = vadd.f32 %v163, %v357
    %v359 = vpop.f32.mrb[0].mxu0
    %v360 = vadd.f32 %v167, %v359
    %v361 = vpop.f32.mrb[0].mxu0
    %v362 = vadd.f32 %v163, %v361
    %v363 = vpop.f32.mrb[0].mxu0
    %v364 = vadd.f32 %v167, %v363
    %365 = vmatprep.mubr.bf16.mxu0 0
    %366 = vmatmul.mubr.bf16.gmra.mrb[0].mxu0 %v158
    %v367 = vpop.f32.mrb[0].mxu0
    %v368 = vadd.f32 %v163, %v367
    %v369 = vpop.f32.mrb[0].mxu0
    %v370 = vadd.f32 %v167, %v369
    %v371 = vpop.f32.mrb[0].mxu0
    %v372 = vadd.f32 %v163, %v371
    %v373 = vpop.f32.mrb[0].mxu0
    %v374 = vadd.f32 %v167, %v373
    %375 = vdwg.mxu0
    %376 = vmatprep.subr.bf16.mxu0 0
    %377 = vmatpush1.bf16.msra.mxu0 %v257
    %378 = vmatprep.subr.bf16.mxu0 0
    %379 = vmatpush1.bf16.msra.mxu0 %v260
    %380 = vmatprep.subr.bf16.mxu0 0
    %381 = vmatpush1.bf16.msra.mxu0 %v263
    %382 = vmatprep.subr.bf16.mxu0 0
    %383 = vmatpush1.bf16.msra.mxu0 %v266
    %384 = vmatprep.subr.bf16.mxu0 0
    %385 = vmatpush1.bf16.msra.mxu0 %v269
    %386 = vmatprep.subr.bf16.mxu0 0
    %387 = vmatpush1.bf16.msra.mxu0 %v272
    %388 = vmatprep.subr.bf16.mxu0 0
    %389 = vmatpush1.bf16.msra.mxu0 %v275
    %390 = vmatprep.subr.bf16.mxu0 0
    %391 = vmatpush1.bf16.msra.mxu0 %v278
    %392 = vmatprep.subr.bf16.mxu0 0
    %393 = vmatpush1.bf16.msra.mxu0 0
    %394 = vmatprep.subr.bf16.mxu0 0
    %395 = vmatpush1.bf16.msra.mxu0 0
    %396 = vmatprep.subr.bf16.mxu0 0
    %397 = vmatpush1.bf16.msra.mxu0 0
    %398 = vmatprep.subr.bf16.mxu0 0
    %399 = vmatpush1.bf16.msra.mxu0 0
    %400 = vmatprep.subr.bf16.mxu0 0
    %401 = vmatpush1.bf16.msra.mxu0 0
    %402 = vmatprep.subr.bf16.mxu0 0
    %403 = vmatpush1.bf16.msra.mxu0 0
    %404 = vmatprep.subr.bf16.mxu0 0
    %405 = vmatpush1.bf16.msra.mxu0 0
    %406 = vmatprep.subr.bf16.mxu0 0
    %407 = vmatpush1.bf16.msra.mxu0 0
    %408 = vmatprep.mubr.bf16.mxu0 0
    %409 = vmatmul.mubr.bf16.gmra.mrb[0].mxu0 %v155
    %v410 = vpop.f32.mrb[0].mxu0
    %v411 = vadd.f32 %v171, %v410
    %v412 = vpop.f32.mrb[0].mxu0
    %v413 = vpop.f32.mrb[0].mxu0
    %v414 = vadd.f32 %v171, %v413
    %v415 = vpop.f32.mrb[0].mxu0
    %416 = vmatprep.mubr.bf16.mxu0 0
    %417 = vmatmul.mubr.bf16.gmra.mrb[0].mxu0 %v156
    %v418 = vpop.f32.mrb[0].mxu0
    %v419 = vadd.f32 %v171, %v418
    %v420 = vpop.f32.mrb[0].mxu0
    %v421 = vpop.f32.mrb[0].mxu0
    %v422 = vadd.f32 %v171, %v421
    %v423 = vpop.f32.mrb[0].mxu0
    %424 = vmatprep.mubr.bf16.mxu0 0
    %425 = vmatmul.mubr.bf16.gmra.mrb[0].mxu0 %v157
    %v426 = vpop.f32.mrb[0].mxu0
    %v427 = vadd.f32 %v171, %v426
    %v428 = vpop.f32.mrb[0].mxu0
    %v429 = vpop.f32.mrb[0].mxu0
    %v430 = vadd.f32 %v171, %v429
    %v431 = vpop.f32.mrb[0].mxu0
    %432 = vmatprep.mubr.bf16.mxu0 0
    %433 = vmatmul.mubr.bf16.gmra.mrb[0].mxu0 %v158
    %v434 = vpop.f32.mrb[0].mxu0
    %v435 = vadd.f32 %v171, %v434
    %v436 = vpop.f32.mrb[0].mxu0
    %v437 = vpop.f32.mrb[0].mxu0
    %v438 = vadd.f32 %v171, %v437
    %v439 = vpop.f32.mrb[0].mxu0
    %440 = vdwg.mxu0
    %vm441 = vcmp.ge.f32.partialorder %v338, 0.0
    %vm442 = vcmp.ge.f32.partialorder %v340, 0.0
    %vm443 = vcmp.ge.f32.partialorder %v411, 0.0
    %vm444 = vcmp.ge.f32.partialorder %v342, 0.0
    %vm445 = vcmp.ge.f32.partialorder %v344, 0.0
    %vm446 = vcmp.ge.f32.partialorder %v414, 0.0
    %vm447 = vcmp.ge.f32.partialorder %v348, 0.0
    %vm448 = vcmp.ge.f32.partialorder %v350, 0.0
    %vm449 = vcmp.ge.f32.partialorder %v419, 0.0
    %vm450 = vcmp.ge.f32.partialorder %v352, 0.0
    %vm451 = vcmp.ge.f32.partialorder %v354, 0.0
    %vm452 = vcmp.ge.f32.partialorder %v422, 0.0
    %vm453 = vcmp.ge.f32.partialorder %v358, 0.0
    %vm454 = vcmp.ge.f32.partialorder %v360, 0.0
    %vm455 = vcmp.ge.f32.partialorder %v427, 0.0
    %vm456 = vcmp.ge.f32.partialorder %v362, 0.0
    %vm457 = vcmp.ge.f32.partialorder %v364, 0.0
    %vm458 = vcmp.ge.f32.partialorder %v430, 0.0
    %vm459 = vcmp.ge.f32.partialorder %v368, 0.0
    %vm460 = vcmp.ge.f32.partialorder %v370, 0.0
    %vm461 = vcmp.ge.f32.partialorder %v435, 0.0
    %vm462 = vcmp.ge.f32.partialorder %v372, 0.0
    %vm463 = vcmp.ge.f32.partialorder %v374, 0.0
    %vm464 = vcmp.ge.f32.partialorder %v438, 0.0
    %v465 = vmul.f32 %v338, 2.0
    %v466 = vmul.f32 %v340, 2.0
    %v467 = vmul.f32 %v411, 2.0
    %v468 = vmul.f32 %v342, 2.0
    %v469 = vmul.f32 %v344, 2.0
    %v470 = vmul.f32 %v414, 2.0
    %v471 = vmul.f32 %v348, 2.0
    %v472 = vmul.f32 %v350, 2.0
    %v473 = vmul.f32 %v419, 2.0
    %v474 = vmul.f32 %v352, 2.0
    %v475 = vmul.f32 %v354, 2.0
    %v476 = vmul.f32 %v422, 2.0
    %v477 = vmul.f32 %v358, 2.0
    %v478 = vmul.f32 %v360, 2.0
    %v479 = vmul.f32 %v427, 2.0
    %v480 = vmul.f32 %v362, 2.0
    %v481 = vmul.f32 %v364, 2.0
    %v482 = vmul.f32 %v430, 2.0
    %v483 = vmul.f32 %v368, 2.0
    %v484 = vmul.f32 %v370, 2.0
    %v485 = vmul.f32 %v435, 2.0
    %v486 = vmul.f32 %v372, 2.0
    %v487 = vmul.f32 %v374, 2.0
    %v488 = vmul.f32 %v438, 2.0
    %v489 = vsel %vm441, %v338, %v465
    %v490 = vsel %vm442, %v340, %v466
    %v491 = vsel %vm443, %v411, %v467
    %v492 = vsel %vm444, %v342, %v468
    %v493 = vsel %vm445, %v344, %v469
    %v494 = vsel %vm446, %v414, %v470
    %v495 = vsel %vm447, %v348, %v471
    %v496 = vsel %vm448, %v350, %v472
    %v497 = vsel %vm449, %v419, %v473
    %v498 = vsel %vm450, %v352, %v474
    %v499 = vsel %vm451, %v354, %v475
    %v500 = vsel %vm452, %v422, %v476
    %v501 = vsel %vm453, %v358, %v477
    %v502 = vsel %vm454, %v360, %v478
    %v503 = vsel %vm455, %v427, %v479
    %v504 = vsel %vm456, %v362, %v480
    %v505 = vsel %vm457, %v364, %v481
    %v506 = vsel %vm458, %v430, %v482
    %v507 = vsel %vm459, %v368, %v483
    %v508 = vsel %vm460, %v370, %v484
    %v509 = vsel %vm461, %v435, %v485
    %v510 = vsel %vm462, %v372, %v486
    %v511 = vsel %vm463, %v374, %v487
    %v512 = vsel %vm464, %v438, %v488
    %v513 = vld [vmem:[#allocation2] sm:$0xff]
    %v514 = vld [vmem:[#allocation2 + $0x8] sm:$0xf]
    %v515 = vld [vmem:[#allocation2 + $0xc] sm:$0xff]
    %v516 = vld [vmem:[#allocation2 + $0x14] sm:$0xf]
    %v517 = vld [vmem:[#allocation2 + $0x18] sm:$0xff]
    %v518 = vld [vmem:[#allocation2 + $0x20] sm:$0xf]
    %v519 = vld [vmem:[#allocation2 + $0x24] sm:$0xff]
    %v520 = vld [vmem:[#allocation2 + $0x2c] sm:$0xf]
    %v521 = vld [vmem:[#allocation2 + $0x30] sm:$0xff]
    %v522 = vld [vmem:[#allocation2 + $0x38] sm:$0xf]
    %v523 = vld [vmem:[#allocation2 + $0x3c] sm:$0xff]
    %v524 = vld [vmem:[#allocation2 + $0x44] sm:$0xf]
    %v525 = vld [vmem:[#allocation2 + $0x48] sm:$0xff]
    %v526 = vld [vmem:[#allocation2 + $0x50] sm:$0xf]
    %v527 = vld [vmem:[#allocation2 + $0x54] sm:$0xff]
    %v528 = vld [vmem:[#allocation2 + $0x5c] sm:$0xf]
    %v529 = vld [vmem:[#allocation2 + $0x60] sm:$0xff]
    %v530 = vld [vmem:[#allocation2 + $0x68] sm:$0xf]
    %v531 = vld [vmem:[#allocation2 + $0x6c] sm:$0xff]
    %v532 = vld [vmem:[#allocation2 + $0x74] sm:$0xf]
    %v533 = vld [vmem:[#allocation2 + $0x78] sm:$0xff]
    %v534 = vld [vmem:[#allocation2 + $0x80] sm:$0xf]
    %v535 = vld [vmem:[#allocation2 + $0x84] sm:$0xff]
    %v536 = vld [vmem:[#allocation2 + $0x8c] sm:$0xf]
    %v537 = vld [vmem:[#allocation2 + $0x90] sm:$0xff]
    %v538 = vld [vmem:[#allocation2 + $0x98] sm:$0xf]
    %v539 = vld [vmem:[#allocation2 + $0x9c] sm:$0xff]
    %v540 = vld [vmem:[#allocation2 + $0xa4] sm:$0xf]
    %v541 = vld [vmem:[#allocation2 + $0xa8] sm:$0xff]
    %v542 = vld [vmem:[#allocation2 + $0xb0] sm:$0xf]
    %v543 = vld [vmem:[#allocation2 + $0xb4] sm:$0xff]
    %v544 = vld [vmem:[#allocation2 + $0xbc] sm:$0xf]
    %v545 = vld [vmem:[#allocation2 + $0xc0] sm:$0xff]
    %v546 = vld [vmem:[#allocation2 + $0xc8] sm:$0xf]
    %v547 = vld [vmem:[#allocation2 + $0xcc] sm:$0xff]
    %v548 = vld [vmem:[#allocation2 + $0xd4] sm:$0xf]
    %v549 = vld [vmem:[#allocation2 + $0xd8] sm:$0xff]
    %v550 = vld [vmem:[#allocation2 + $0xe0] sm:$0xf]
    %v551 = vld [vmem:[#allocation2 + $0xe4] sm:$0xff]
    %v552 = vld [vmem:[#allocation2 + $0xec] sm:$0xf]
    %v553 = vld [vmem:[#allocation2 + $0xf0] sm:$0xff]
    %v554 = vld [vmem:[#allocation2 + $0xf8] sm:$0xf]
    %v555 = vld [vmem:[#allocation2 + $0xfc] sm:$0xff]
    %v556 = vld [vmem:[#allocation2 + $0x104] sm:$0xf]
    %v557 = vld [vmem:[#allocation2 + $0x108] sm:$0xff]
    %v558 = vld [vmem:[#allocation2 + $0x110] sm:$0xf]
    %v559 = vld [vmem:[#allocation2 + $0x114] sm:$0xff]
    %v560 = vld [vmem:[#allocation2 + $0x11c] sm:$0xf]
    %v561 = vld [vmem:[#allocation2 + $0x120] sm:$0xff]
    %v562 = vld [vmem:[#allocation2 + $0x128] sm:$0xf]
    %v563 = vld [vmem:[#allocation2 + $0x12c] sm:$0xff]
    %v564 = vld [vmem:[#allocation2 + $0x134] sm:$0xf]
    %v565 = vld [vmem:[#allocation2 + $0x138] sm:$0xff]
    %v566 = vld [vmem:[#allocation2 + $0x140] sm:$0xf]
    %v567 = vld [vmem:[#allocation2 + $0x144] sm:$0xff]
    %v568 = vld [vmem:[#allocation2 + $0x14c] sm:$0xf]
    %v569 = vld [vmem:[#allocation2 + $0x150] sm:$0xff]
    %v570 = vld [vmem:[#allocation2 + $0x158] sm:$0xf]
    %v571 = vld [vmem:[#allocation2 + $0x15c] sm:$0xff]
    %v572 = vld [vmem:[#allocation2 + $0x164] sm:$0xf]
    %v573 = vld [vmem:[#allocation2 + $0x168] sm:$0xff]
    %v574 = vld [vmem:[#allocation2 + $0x170] sm:$0xf]
    %v575 = vld [vmem:[#allocation2 + $0x174] sm:$0xff]
    %v576 = vld [vmem:[#allocation2 + $0x17c] sm:$0xf]
    %v577 = vld [vmem:[#allocation2 + $0x180] sm:$0xff]
    %v578 = vld [vmem:[#allocation2 + $0x188] sm:$0xf]
    %v579 = vld [vmem:[#allocation2 + $0x18c] sm:$0xff]
    %v580 = vld [vmem:[#allocation2 + $0x194] sm:$0xf]
    %v581 = vld [vmem:[#allocation2 + $0x198] sm:$0xff]
    %v582 = vld [vmem:[#allocation2 + $0x1a0] sm:$0xf]
    %v583 = vld [vmem:[#allocation2 + $0x1a4] sm:$0xff]
    %v584 = vld [vmem:[#allocation2 + $0x1ac] sm:$0xf]
    %v585 = vld [vmem:[#allocation2 + $0x1b0] sm:$0xff]
    %v586 = vld [vmem:[#allocation2 + $0x1b8] sm:$0xf]
    %v587 = vld [vmem:[#allocation2 + $0x1bc] sm:$0xff]
    %v588 = vld [vmem:[#allocation2 + $0x1c4] sm:$0xf]
    %v589 = vld [vmem:[#allocation2 + $0x1c8] sm:$0xff]
    %v590 = vld [vmem:[#allocation2 + $0x1d0] sm:$0xf]
    %v591 = vld [vmem:[#allocation2 + $0x1d4] sm:$0xff]
    %v592 = vld [vmem:[#allocation2 + $0x1dc] sm:$0xf]
    %v593 = vld [vmem:[#allocation2 + $0x1e0] sm:$0xff]
    %v594 = vld [vmem:[#allocation2 + $0x1e8] sm:$0xf]
    %v595 = vld [vmem:[#allocation2 + $0x1ec] sm:$0xff]
    %v596 = vld [vmem:[#allocation2 + $0x1f4] sm:$0xf]
    %v597 = vld [vmem:[#allocation2 + $0x1f8] sm:$0xff]
    %v598 = vld [vmem:[#allocation2 + $0x200] sm:$0xf]
    %v599 = vld [vmem:[#allocation2 + $0x204] sm:$0xff]
    %v600 = vld [vmem:[#allocation2 + $0x20c] sm:$0xf]
    %v601 = vld [vmem:[#allocation2 + $0x210] sm:$0xff]
    %v602 = vld [vmem:[#allocation2 + $0x218] sm:$0xf]
    %v603 = vld [vmem:[#allocation2 + $0x21c] sm:$0xff]
    %v604 = vld [vmem:[#allocation2 + $0x224] sm:$0xf]
    %v605 = vld [vmem:[#allocation2 + $0x228] sm:$0xff]
    %v606 = vld [vmem:[#allocation2 + $0x230] sm:$0xf]
    %v607 = vld [vmem:[#allocation2 + $0x234] sm:$0xff]
    %v608 = vld [vmem:[#allocation2 + $0x23c] sm:$0xf]
    %v609 = vld [vmem:[%s4] sm:$0x7]
    %v610 = vpack.c.bf16 %v492, %v489
    %v611 = vpack.c.bf16 %v493, %v490
    %v612 = vpack.c.bf16 %v494, %v491
    %v613 = vpack.c.bf16 %v498, %v495
    %v614 = vpack.c.bf16 %v499, %v496
    %v615 = vpack.c.bf16 %v500, %v497
    %v616 = vpack.c.bf16 %v504, %v501
    %v617 = vpack.c.bf16 %v505, %v502
    %v618 = vpack.c.bf16 %v506, %v503
    %v619 = vpack.c.bf16 %v510, %v507
    %v620 = vpack.c.bf16 %v511, %v508
    %v621 = vpack.c.bf16 %v512, %v509
    %v623 = vlaneseq
    %v624 = vshrl.u32 %v623, 7
    %v625 = vsub.s32 0, %v624
    %v626 = vrot.slane %v609, %v625
    %v627 = vlaneseq
    %v628 = vshrl.u32 %v627, 7
    %v629 = vsub.s32 1, %v628
    %v630 = vrot.slane %v609, %v629
    %v631 = vlaneseq
    %v632 = vshrl.u32 %v631, 7
    %v633 = vsub.s32 2, %v632
    %v634 = vrot.slane %v609, %v633
    %v734 = vunpack.c.l.b16 %v513
    %v735 = vunpack.c.h.b16 %v513
    %v736 = vunpack.c.l.b16 %v514
    %v737 = vunpack.c.l.b16 %v515
    %v738 = vunpack.c.h.b16 %v515
    %v739 = vunpack.c.l.b16 %v516
    %v740 = vunpack.c.l.b16 %v517
    %v741 = vunpack.c.h.b16 %v517
    %v742 = vunpack.c.l.b16 %v518
    %v743 = vunpack.c.l.b16 %v519
    %v744 = vunpack.c.h.b16 %v519
    %v745 = vunpack.c.l.b16 %v520
    %v746 = vunpack.c.l.b16 %v521
    %v747 = vunpack.c.h.b16 %v521
    %v748 = vunpack.c.l.b16 %v522
    %v749 = vunpack.c.l.b16 %v523
    %v750 = vunpack.c.h.b16 %v523
    %v751 = vunpack.c.l.b16 %v524
    %v752 = vunpack.c.l.b16 %v525
    %v753 = vunpack.c.h.b16 %v525
    %v754 = vunpack.c.l.b16 %v526
    %v755 = vunpack.c.l.b16 %v527
    %v756 = vunpack.c.h.b16 %v527
    %v757 = vunpack.c.l.b16 %v528
    %v758 = vunpack.c.l.b16 %v529
    %v759 = vunpack.c.h.b16 %v529
    %v760 = vunpack.c.l.b16 %v530
    %v761 = vunpack.c.l.b16 %v531
    %v762 = vunpack.c.h.b16 %v531
    %v763 = vunpack.c.l.b16 %v532
    %v764 = vunpack.c.l.b16 %v533
    %v765 = vunpack.c.h.b16 %v533
    %v766 = vunpack.c.l.b16 %v534
    %v767 = vunpack.c.l.b16 %v535
    %v768 = vunpack.c.h.b16 %v535
    %v769 = vunpack.c.l.b16 %v536
    %v770 = vunpack.c.l.b16 %v537
    %v771 = vunpack.c.h.b16 %v537
    %v772 = vunpack.c.l.b16 %v538
    %v773 = vunpack.c.l.b16 %v539
    %v774 = vunpack.c.h.b16 %v539
    %v775 = vunpack.c.l.b16 %v540
    %v776 = vunpack.c.l.b16 %v541
    %v777 = vunpack.c.h.b16 %v541
    %v778 = vunpack.c.l.b16 %v542
    %v779 = vunpack.c.l.b16 %v543
    %v780 = vunpack.c.h.b16 %v543
    %v781 = vunpack.c.l.b16 %v544
    %v782 = vunpack.c.l.b16 %v545
    %v783 = vunpack.c.h.b16 %v545
    %v784 = vunpack.c.l.b16 %v546
    %v785 = vunpack.c.l.b16 %v547
    %v786 = vunpack.c.h.b16 %v547
    %v787 = vunpack.c.l.b16 %v548
    %v788 = vunpack.c.l.b16 %v549
    %v789 = vunpack.c.h.b16 %v549
    %v790 = vunpack.c.l.b16 %v550
    %v791 = vunpack.c.l.b16 %v551
    %v792 = vunpack.c.h.b16 %v551
    %v793 = vunpack.c.l.b16 %v552
    %v794 = vunpack.c.l.b16 %v553
    %v795 = vunpack.c.h.b16 %v553
    %v796 = vunpack.c.l.b16 %v554
    %v797 = vunpack.c.l.b16 %v555
    %v798 = vunpack.c.h.b16 %v555
    %v799 = vunpack.c.l.b16 %v556
    %v800 = vunpack.c.l.b16 %v557
    %v801 = vunpack.c.h.b16 %v557
    %v802 = vunpack.c.l.b16 %v558
    %v803 = vunpack.c.l.b16 %v559
    %v804 = vunpack.c.h.b16 %v559
    %v805 = vunpack.c.l.b16 %v560
    %v806 = vunpack.c.l.b16 %v561
    %v807 = vunpack.c.h.b16 %v561
    %v808 = vunpack.c.l.b16 %v562
    %v809 = vunpack.c.l.b16 %v563
    %v810 = vunpack.c.h.b16 %v563
    %v811 = vunpack.c.l.b16 %v564
    %v812 = vunpack.c.l.b16 %v565
    %v813 = vunpack.c.h.b16 %v565
    %v814 = vunpack.c.l.b16 %v566
    %v815 = vunpack.c.l.b16 %v567
    %v816 = vunpack.c.h.b16 %v567
    %v817 = vunpack.c.l.b16 %v568
    %v818 = vunpack.c.l.b16 %v569
    %v819 = vunpack.c.h.b16 %v569
    %v820 = vunpack.c.l.b16 %v570
    %v821 = vunpack.c.l.b16 %v571
    %v822 = vunpack.c.h.b16 %v571
    %v823 = vunpack.c.l.b16 %v572
    %v824 = vunpack.c.l.b16 %v573
    %v825 = vunpack.c.h.b16 %v573
    %v826 = vunpack.c.l.b16 %v574
    %v827 = vunpack.c.l.b16 %v575
    %v828 = vunpack.c.h.b16 %v575
    %v829 = vunpack.c.l.b16 %v576
    %v830 = vunpack.c.l.b16 %v577
    %v831 = vunpack.c.h.b16 %v577
    %v832 = vunpack.c.l.b16 %v578
    %v833 = vunpack.c.l.b16 %v579
    %v834 = vunpack.c.h.b16 %v579
    %v835 = vunpack.c.l.b16 %v580
    %v836 = vunpack.c.l.b16 %v581
    %v837 = vunpack.c.h.b16 %v581
    %v838 = vunpack.c.l.b16 %v582
    %v839 = vunpack.c.l.b16 %v583
    %v840 = vunpack.c.h.b16 %v583
    %v841 = vunpack.c.l.b16 %v584
    %v842 = vunpack.c.l.b16 %v585
    %v843 = vunpack.c.h.b16 %v585
    %v844 = vunpack.c.l.b16 %v586
    %v845 = vunpack.c.l.b16 %v587
    %v846 = vunpack.c.h.b16 %v587
    %v847 = vunpack.c.l.b16 %v588
    %v848 = vunpack.c.l.b16 %v589
    %v849 = vunpack.c.h.b16 %v589
    %v850 = vunpack.c.l.b16 %v590
    %v851 = vunpack.c.l.b16 %v591
    %v852 = vunpack.c.h.b16 %v591
    %v853 = vunpack.c.l.b16 %v592
    %v854 = vunpack.c.l.b16 %v593
    %v855 = vunpack.c.h.b16 %v593
    %v856 = vunpack.c.l.b16 %v594
    %v857 = vunpack.c.l.b16 %v595
    %v858 = vunpack.c.h.b16 %v595
    %v859 = vunpack.c.l.b16 %v596
    %v860 = vunpack.c.l.b16 %v597
    %v861 = vunpack.c.h.b16 %v597
    %v862 = vunpack.c.l.b16 %v598
    %v863 = vunpack.c.l.b16 %v599
    %v864 = vunpack.c.h.b16 %v599
    %v865 = vunpack.c.l.b16 %v600
    %v866 = vunpack.c.l.b16 %v601
    %v867 = vunpack.c.h.b16 %v601
    %v868 = vunpack.c.l.b16 %v602
    %v869 = vunpack.c.l.b16 %v603
    %v870 = vunpack.c.h.b16 %v603
    %v871 = vunpack.c.l.b16 %v604
    %v872 = vunpack.c.l.b16 %v605
    %v873 = vunpack.c.h.b16 %v605
    %v874 = vunpack.c.l.b16 %v606
    %v875 = vunpack.c.l.b16 %v607
    %v876 = vunpack.c.h.b16 %v607
    %v877 = vunpack.c.l.b16 %v608
    %v878 = vpack.c.b16 %v737, %v734
    %v879 = vpack.c.b16 %v738, %v735
    %v880 = vpack.c.b16 %v739, %v736
    %v881 = vpack.c.b16 %v743, %v740
    %v882 = vpack.c.b16 %v744, %v741
    %v883 = vpack.c.b16 %v745, %v742
    %v884 = vpack.c.b16 %v749, %v746
    %v885 = vpack.c.b16 %v750, %v747
    %v886 = vpack.c.b16 %v751, %v748
    %v887 = vpack.c.b16 %v755, %v752
    %v888 = vpack.c.b16 %v756, %v753
    %v889 = vpack.c.b16 %v757, %v754
    %v890 = vpack.c.b16 %v761, %v758
    %v891 = vpack.c.b16 %v762, %v759
    %v892 = vpack.c.b16 %v763, %v760
    %v893 = vpack.c.b16 %v767, %v764
    %v894 = vpack.c.b16 %v768, %v765
    %v895 = vpack.c.b16 %v769, %v766
    %v896 = vpack.c.b16 %v773, %v770
    %v897 = vpack.c.b16 %v774, %v771
    %v898 = vpack.c.b16 %v775, %v772
    %v899 = vpack.c.b16 %v779, %v776
    %v900 = vpack.c.b16 %v780, %v777
    %v901 = vpack.c.b16 %v781, %v778
    %v902 = vpack.c.b16 %v785, %v782
    %v903 = vpack.c.b16 %v786, %v783
    %v904 = vpack.c.b16 %v787, %v784
    %v905 = vpack.c.b16 %v791, %v788
    %v906 = vpack.c.b16 %v792, %v789
    %v907 = vpack.c.b16 %v793, %v790
    %v908 = vpack.c.b16 %v797, %v794
    %v909 = vpack.c.b16 %v798, %v795
    %v910 = vpack.c.b16 %v799, %v796
    %v911 = vpack.c.b16 %v803, %v800
    %v912 = vpack.c.b16 %v804, %v801
    %v913 = vpack.c.b16 %v805, %v802
    %v914 = vpack.c.b16 %v809, %v806
    %v915 = vpack.c.b16 %v810, %v807
    %v916 = vpack.c.b16 %v811, %v808
    %v917 = vpack.c.b16 %v815, %v812
    %v918 = vpack.c.b16 %v816, %v813
    %v919 = vpack.c.b16 %v817, %v814
    %v920 = vpack.c.b16 %v821, %v818
    %v921 = vpack.c.b16 %v822, %v819
    %v922 = vpack.c.b16 %v823, %v820
    %v923 = vpack.c.b16 %v827, %v824
    %v924 = vpack.c.b16 %v828, %v825
    %v925 = vpack.c.b16 %v829, %v826
    %v926 = vpack.c.b16 %v833, %v830
    %v927 = vpack.c.b16 %v834, %v831
    %v928 = vpack.c.b16 %v835, %v832
    %v929 = vpack.c.b16 %v839, %v836
    %v930 = vpack.c.b16 %v840, %v837
    %v931 = vpack.c.b16 %v841, %v838
    %v932 = vpack.c.b16 %v845, %v842
    %v933 = vpack.c.b16 %v846, %v843
    %v934 = vpack.c.b16 %v847, %v844
    %v935 = vpack.c.b16 %v851, %v848
    %v936 = vpack.c.b16 %v852, %v849
    %v937 = vpack.c.b16 %v853, %v850
    %v938 = vpack.c.b16 %v857, %v854
    %v939 = vpack.c.b16 %v858, %v855
    %v940 = vpack.c.b16 %v859, %v856
    %v941 = vpack.c.b16 %v863, %v860
    %v942 = vpack.c.b16 %v864, %v861
    %v943 = vpack.c.b16 %v865, %v862
    %v944 = vpack.c.b16 %v869, %v866
    %v945 = vpack.c.b16 %v870, %v867
    %v946 = vpack.c.b16 %v871, %v868
    %v947 = vpack.c.b16 %v875, %v872
    %v948 = vpack.c.b16 %v876, %v873
    %v949 = vpack.c.b16 %v877, %v874
    %1022 = vmatprep.subr.bf16.mxu0 %v879
    %1023 = vmatpush1.bf16.msra.mxu0 %v878
    %1024 = vmatprep.subr.bf16.mxu0 %v882
    %1025 = vmatpush1.bf16.msra.mxu0 %v881
    %1026 = vmatprep.subr.bf16.mxu0 %v885
    %1027 = vmatpush1.bf16.msra.mxu0 %v884
    %1028 = vmatprep.subr.bf16.mxu0 %v888
    %1029 = vmatpush1.bf16.msra.mxu0 %v887
    %1030 = vmatprep.subr.bf16.mxu0 %v891
    %1031 = vmatpush1.bf16.msra.mxu0 %v890
    %1032 = vmatprep.subr.bf16.mxu0 %v894
    %1033 = vmatpush1.bf16.msra.mxu0 %v893
    %1034 = vmatprep.subr.bf16.mxu0 %v897
    %1035 = vmatpush1.bf16.msra.mxu0 %v896
    %1036 = vmatprep.subr.bf16.mxu0 %v900
    %1037 = vmatpush1.bf16.msra.mxu0 %v899
    %1038 = vmatprep.subr.bf16.mxu0 %v903
    %1039 = vmatpush1.bf16.msra.mxu0 %v902
    %1040 = vmatprep.subr.bf16.mxu0 %v906
    %1041 = vmatpush1.bf16.msra.mxu0 %v905
    %1042 = vmatprep.subr.bf16.mxu0 %v909
    %1043 = vmatpush1.bf16.msra.mxu0 %v908
    %1044 = vmatprep.subr.bf16.mxu0 %v912
    %1045 = vmatpush1.bf16.msra.mxu0 %v911
    %1046 = vmatprep.subr.bf16.mxu0 %v915
    %1047 = vmatpush1.bf16.msra.mxu0 %v914
    %1048 = vmatprep.subr.bf16.mxu0 %v918
    %1049 = vmatpush1.bf16.msra.mxu0 %v917
    %1050 = vmatprep.subr.bf16.mxu0 %v921
    %1051 = vmatpush1.bf16.msra.mxu0 %v920
    %1052 = vmatprep.subr.bf16.mxu0 %v924
    %1053 = vmatpush1.bf16.msra.mxu0 %v923
    %1054 = vmatprep.mubr.bf16.mxu0 %v611
    %1055 = vmatmul.mubr.bf16.gmra.mrb[0].mxu0 %v610
    %v1056 = vpop.f32.mrb[0].mxu0
    %v1057 = vadd.f32 %v626, %v1056
    %v1058 = vpop.f32.mrb[0].mxu0
    %v1059 = vadd.f32 %v630, %v1058
    %v1060 = vpop.f32.mrb[0].mxu0
    %v1061 = vadd.f32 %v626, %v1060
    %v1062 = vpop.f32.mrb[0].mxu0
    %v1063 = vadd.f32 %v630, %v1062
    %1064 = vmatprep.mubr.bf16.mxu0 %v614
    %1065 = vmatmul.mubr.bf16.gmra.mrb[0].mxu0 %v613
    %v1066 = vpop.f32.mrb[0].mxu0
    %v1067 = vadd.f32 %v626, %v1066
    %v1068 = vpop.f32.mrb[0].mxu0
    %v1069 = vadd.f32 %v630, %v1068
    %v1070 = vpop.f32.mrb[0].mxu0
    %v1071 = vadd.f32 %v626, %v1070
    %v1072 = vpop.f32.mrb[0].mxu0
    %v1073 = vadd.f32 %v630, %v1072
    %1074 = vmatprep.mubr.bf16.mxu0 %v617
    %1075 = vmatmul.mubr.bf16.gmra.mrb[0].mxu0 %v616
    %v1076 = vpop.f32.mrb[0].mxu0
    %v1077 = vadd.f32 %v626, %v1076
    %v1078 = vpop.f32.mrb[0].mxu0
    %v1079 = vadd.f32 %v630, %v1078
    %v1080 = vpop.f32.mrb[0].mxu0
    %v1081 = vadd.f32 %v626, %v1080
    %v1082 = vpop.f32.mrb[0].mxu0
    %v1083 = vadd.f32 %v630, %v1082
    %1084 = vmatprep.mubr.bf16.mxu0 %v620
    %1085 = vmatmul.mubr.bf16.gmra.mrb[0].mxu0 %v619
    %v1086 = vpop.f32.mrb[0].mxu0
    %v1087 = vadd.f32 %v626, %v1086
    %v1088 = vpop.f32.mrb[0].mxu0
    %v1089 = vadd.f32 %v630, %v1088
    %v1090 = vpop.f32.mrb[0].mxu0
    %v1091 = vadd.f32 %v626, %v1090
    %v1092 = vpop.f32.mrb[0].mxu0
    %v1093 = vadd.f32 %v630, %v1092
    %1094 = vdwg.mxu0
    %1095 = vmatprep.subr.bf16.mxu0 %v927
    %1096 = vmatpush1.bf16.msra.mxu0 %v926
    %1097 = vmatprep.subr.bf16.mxu0 %v930
    %1098 = vmatpush1.bf16.msra.mxu0 %v929
    %1099 = vmatprep.subr.bf16.mxu0 %v933
    %1100 = vmatpush1.bf16.msra.mxu0 %v932
    %1101 = vmatprep.subr.bf16.mxu0 %v936
    %1102 = vmatpush1.bf16.msra.mxu0 %v935
    %1103 = vmatprep.subr.bf16.mxu0 %v939
    %1104 = vmatpush1.bf16.msra.mxu0 %v938
    %1105 = vmatprep.subr.bf16.mxu0 %v942
    %1106 = vmatpush1.bf16.msra.mxu0 %v941
    %1107 = vmatprep.subr.bf16.mxu0 %v945
    %1108 = vmatpush1.bf16.msra.mxu0 %v944
    %1109 = vmatprep.subr.bf16.mxu0 %v948
    %1110 = vmatpush1.bf16.msra.mxu0 %v947
    %1111 = vmatprep.subr.bf16.mxu0 0
    %1112 = vmatpush1.bf16.msra.mxu0 0
    %1113 = vmatprep.subr.bf16.mxu0 0
    %1114 = vmatpush1.bf16.msra.mxu0 0
    %1115 = vmatprep.subr.bf16.mxu0 0
    %1116 = vmatpush1.bf16.msra.mxu0 0
    %1117 = vmatprep.subr.bf16.mxu0 0
    %1118 = vmatpush1.bf16.msra.mxu0 0
    %1119 = vmatprep.subr.bf16.mxu0 0
    %1120 = vmatpush1.bf16.msra.mxu0 0
    %1121 = vmatprep.subr.bf16.mxu0 0
    %1122 = vmatpush1.bf16.msra.mxu0 0
    %1123 = vmatprep.subr.bf16.mxu0 0
    %1124 = vmatpush1.bf16.msra.mxu0 0
    %1125 = vmatprep.subr.bf16.mxu0 0
    %1126 = vmatpush1.bf16.msra.mxu0 0
    %1127 = vmatprep.mubr.bf16.mxu0 0
    %1128 = vmatmul.mubr.bf16.gmra.mrb[0].mxu0 %v612
    %v1129 = vpop.f32.mrb[0].mxu0
    %v1130 = vadd.f32 %v1057, %v1129
    %v1131 = vpop.f32.mrb[0].mxu0
    %v1132 = vadd.f32 %v1059, %v1131
    %v1133 = vpop.f32.mrb[0].mxu0
    %v1134 = vadd.f32 %v1061, %v1133
    %v1135 = vpop.f32.mrb[0].mxu0
    %v1136 = vadd.f32 %v1063, %v1135
    %1137 = vmatprep.mubr.bf16.mxu0 0
    %1138 = vmatmul.mubr.bf16.gmra.mrb[0].mxu0 %v615
    %v1139 = vpop.f32.mrb[0].mxu0
    %v1140 = vadd.f32 %v1067, %v1139
    %v1141 = vpop.f32.mrb[0].mxu0
    %v1142 = vadd.f32 %v1069, %v1141
    %v1143 = vpop.f32.mrb[0].mxu0
    %v1144 = vadd.f32 %v1071, %v1143
    %v1145 = vpop.f32.mrb[0].mxu0
    %v1146 = vadd.f32 %v1073, %v1145
    %1147 = vmatprep.mubr.bf16.mxu0 0
    %1148 = vmatmul.mubr.bf16.gmra.mrb[0].mxu0 %v618
    %v1149 = vpop.f32.mrb[0].mxu0
    %v1150 = vadd.f32 %v1077, %v1149
    %v1151 = vpop.f32.mrb[0].mxu0
    %v1152 = vadd.f32 %v1079, %v1151
    %v1153 = vpop.f32.mrb[0].mxu0
    %v1154 = vadd.f32 %v1081, %v1153
    %v1155 = vpop.f32.mrb[0].mxu0
    %v1156 = vadd.f32 %v1083, %v1155
    %1157 = vmatprep.mubr.bf16.mxu0 0
    %1158 = vmatmul.mubr.bf16.gmra.mrb[0].mxu0 %v621
    %v1159 = vpop.f32.mrb[0].mxu0
    %v1160 = vadd.f32 %v1087, %v1159
    %v1161 = vpop.f32.mrb[0].mxu0
    %v1162 = vadd.f32 %v1089, %v1161
    %v1163 = vpop.f32.mrb[0].mxu0
    %v1164 = vadd.f32 %v1091, %v1163
    %v1165 = vpop.f32.mrb[0].mxu0
    %v1166 = vadd.f32 %v1093, %v1165
    %1167 = vdwg.mxu0
    %1168 = vmatprep.subr.bf16.mxu0 0
    %1169 = vmatpush1.bf16.msra.mxu0 %v880
    %1170 = vmatprep.subr.bf16.mxu0 0
    %1171 = vmatpush1.bf16.msra.mxu0 %v883
    %1172 = vmatprep.subr.bf16.mxu0 0
    %1173 = vmatpush1.bf16.msra.mxu0 %v886
    %1174 = vmatprep.subr.bf16.mxu0 0
    %1175 = vmatpush1.bf16.msra.mxu0 %v889
    %1176 = vmatprep.subr.bf16.mxu0 0
    %1177 = vmatpush1.bf16.msra.mxu0 %v892
    %1178 = vmatprep.subr.bf16.mxu0 0
    %1179 = vmatpush1.bf16.msra.mxu0 %v895
    %1180 = vmatprep.subr.bf16.mxu0 0
    %1181 = vmatpush1.bf16.msra.mxu0 %v898
    %1182 = vmatprep.subr.bf16.mxu0 0
    %1183 = vmatpush1.bf16.msra.mxu0 %v901
    %1184 = vmatprep.subr.bf16.mxu0 0
    %1185 = vmatpush1.bf16.msra.mxu0 %v904
    %1186 = vmatprep.subr.bf16.mxu0 0
    %1187 = vmatpush1.bf16.msra.mxu0 %v907
    %1188 = vmatprep.subr.bf16.mxu0 0
    %1189 = vmatpush1.bf16.msra.mxu0 %v910
    %1190 = vmatprep.subr.bf16.mxu0 0
    %1191 = vmatpush1.bf16.msra.mxu0 %v913
    %1192 = vmatprep.subr.bf16.mxu0 0
    %1193 = vmatpush1.bf16.msra.mxu0 %v916
    %1194 = vmatprep.subr.bf16.mxu0 0
    %1195 = vmatpush1.bf16.msra.mxu0 %v919
    %1196 = vmatprep.subr.bf16.mxu0 0
    %1197 = vmatpush1.bf16.msra.mxu0 %v922
    %1198 = vmatprep.subr.bf16.mxu0 0
    %1199 = vmatpush1.bf16.msra.mxu0 %v925
    %1200 = vmatprep.mubr.bf16.mxu0 %v611
    %1201 = vmatmul.mubr.bf16.gmra.mrb[0].mxu0 %v610
    %v1202 = vpop.f32.mrb[0].mxu0
    %v1203 = vadd.f32 %v634, %v1202
    %v1204 = vpop.f32.mrb[0].mxu0
    %v1205 = vpop.f32.mrb[0].mxu0
    %v1206 = vadd.f32 %v634, %v1205
    %v1207 = vpop.f32.mrb[0].mxu0
    %1208 = vmatprep.mubr.bf16.mxu0 %v614
    %1209 = vmatmul.mubr.bf16.gmra.mrb[0].mxu0 %v613
    %v1210 = vpop.f32.mrb[0].mxu0
    %v1211 = vadd.f32 %v634, %v1210
    %v1212 = vpop.f32.mrb[0].mxu0
    %v1213 = vpop.f32.mrb[0].mxu0
    %v1214 = vadd.f32 %v634, %v1213
    %v1215 = vpop.f32.mrb[0].mxu0
    %1216 = vmatprep.mubr.bf16.mxu0 %v617
    %1217 = vmatmul.mubr.bf16.gmra.mrb[0].mxu0 %v616
    %v1218 = vpop.f32.mrb[0].mxu0
    %v1219 = vadd.f32 %v634, %v1218
    %v1220 = vpop.f32.mrb[0].mxu0
    %v1221 = vpop.f32.mrb[0].mxu0
    %v1222 = vadd.f32 %v634, %v1221
    %v1223 = vpop.f32.mrb[0].mxu0
    %1224 = vmatprep.mubr.bf16.mxu0 %v620
    %1225 = vmatmul.mubr.bf16.gmra.mrb[0].mxu0 %v619
    %v1226 = vpop.f32.mrb[0].mxu0
    %v1227 = vadd.f32 %v634, %v1226
    %v1228 = vpop.f32.mrb[0].mxu0
    %v1229 = vpop.f32.mrb[0].mxu0
    %v1230 = vadd.f32 %v634, %v1229
    %v1231 = vpop.f32.mrb[0].mxu0
    %1232 = vdwg.mxu0
    %1233 = vmatprep.subr.bf16.mxu0 0
    %1234 = vmatpush1.bf16.msra.mxu0 %v928
    %1235 = vmatprep.subr.bf16.mxu0 0
    %1236 = vmatpush1.bf16.msra.mxu0 %v931
    %1237 = vmatprep.subr.bf16.mxu0 0
    %1238 = vmatpush1.bf16.msra.mxu0 %v934
    %1239 = vmatprep.subr.bf16.mxu0 0
    %1240 = vmatpush1.bf16.msra.mxu0 %v937
    %1241 = vmatprep.subr.bf16.mxu0 0
    %1242 = vmatpush1.bf16.msra.mxu0 %v940
    %1243 = vmatprep.subr.bf16.mxu0 0
    %1244 = vmatpush1.bf16.msra.mxu0 %v943
    %1245 = vmatprep.subr.bf16.mxu0 0
    %1246 = vmatpush1.bf16.msra.mxu0 %v946
    %1247 = vmatprep.subr.bf16.mxu0 0
    %1248 = vmatpush1.bf16.msra.mxu0 %v949
    %1249 = vmatprep.subr.bf16.mxu0 0
    %1250 = vmatpush1.bf16.msra.mxu0 0
    %1251 = vmatprep.subr.bf16.mxu0 0
    %1252 = vmatpush1.bf16.msra.mxu0 0
    %1253 = vmatprep.subr.bf16.mxu0 0
    %1254 = vmatpush1.bf16.msra.mxu0 0
    %1255 = vmatprep.subr.bf16.mxu0 0
    %1256 = vmatpush1.bf16.msra.mxu0 0
    %1257 = vmatprep.subr.bf16.mxu0 0
    %1258 = vmatpush1.bf16.msra.mxu0 0
    %1259 = vmatprep.subr.bf16.mxu0 0
    %1260 = vmatpush1.bf16.msra.mxu0 0
    %1261 = vmatprep.subr.bf16.mxu0 0
    %1262 = vmatpush1.bf16.msra.mxu0 0
    %1263 = vmatprep.subr.bf16.mxu0 0
    %1264 = vmatpush1.bf16.msra.mxu0 0
    %1265 = vmatprep.mubr.bf16.mxu0 0
    %1266 = vmatmul.mubr.bf16.gmra.mrb[0].mxu0 %v612
    %v1267 = vpop.f32.mrb[0].mxu0
    %v1268 = vadd.f32 %v1203, %v1267
    %v1269 = vpop.f32.mrb[0].mxu0
    %v1270 = vpop.f32.mrb[0].mxu0
    %v1271 = vadd.f32 %v1206, %v1270
    %v1272 = vpop.f32.mrb[0].mxu0
    %1273 = vmatprep.mubr.bf16.mxu0 0
    %1274 = vmatmul.mubr.bf16.gmra.mrb[0].mxu0 %v615
    %v1275 = vpop.f32.mrb[0].mxu0
    %v1276 = vadd.f32 %v1211, %v1275
    %v1277 = vpop.f32.mrb[0].mxu0
    %v1278 = vpop.f32.mrb[0].mxu0
    %v1279 = vadd.f32 %v1214, %v1278
    %v1280 = vpop.f32.mrb[0].mxu0
    %1281 = vmatprep.mubr.bf16.mxu0 0
    %1282 = vmatmul.mubr.bf16.gmra.mrb[0].mxu0 %v618
    %v1283 = vpop.f32.mrb[0].mxu0
    %v1284 = vadd.f32 %v1219, %v1283
    %v1285 = vpop.f32.mrb[0].mxu0
    %v1286 = vpop.f32.mrb[0].mxu0
    %v1287 = vadd.f32 %v1222, %v1286
    %v1288 = vpop.f32.mrb[0].mxu0
    %1289 = vmatprep.mubr.bf16.mxu0 0
    %1290 = vmatmul.mubr.bf16.gmra.mrb[0].mxu0 %v621
    %v1291 = vpop.f32.mrb[0].mxu0
    %v1292 = vadd.f32 %v1227, %v1291
    %v1293 = vpop.f32.mrb[0].mxu0
    %v1294 = vpop.f32.mrb[0].mxu0
    %v1295 = vadd.f32 %v1230, %v1294
    %v1296 = vpop.f32.mrb[0].mxu0
    %1297 = vdwg.mxu0
    %vm1298 = vcmp.ge.f32.partialorder %v1130, 0.0
    %vm1299 = vcmp.ge.f32.partialorder %v1132, 0.0
    %vm1300 = vcmp.ge.f32.partialorder %v1268, 0.0
    %vm1301 = vcmp.ge.f32.partialorder %v1134, 0.0
    %vm1302 = vcmp.ge.f32.partialorder %v1136, 0.0
    %vm1303 = vcmp.ge.f32.partialorder %v1271, 0.0
    %vm1304 = vcmp.ge.f32.partialorder %v1140, 0.0
    %vm1305 = vcmp.ge.f32.partialorder %v1142, 0.0
    %vm1306 = vcmp.ge.f32.partialorder %v1276, 0.0
    %vm1307 = vcmp.ge.f32.partialorder %v1144, 0.0
    %vm1308 = vcmp.ge.f32.partialorder %v1146, 0.0
    %vm1309 = vcmp.ge.f32.partialorder %v1279, 0.0
    %vm1310 = vcmp.ge.f32.partialorder %v1150, 0.0
    %vm1311 = vcmp.ge.f32.partialorder %v1152, 0.0
    %vm1312 = vcmp.ge.f32.partialorder %v1284, 0.0
    %vm1313 = vcmp.ge.f32.partialorder %v1154, 0.0
    %vm1314 = vcmp.ge.f32.partialorder %v1156, 0.0
    %vm1315 = vcmp.ge.f32.partialorder %v1287, 0.0
    %vm1316 = vcmp.ge.f32.partialorder %v1160, 0.0
    %vm1317 = vcmp.ge.f32.partialorder %v1162, 0.0
    %vm1318 = vcmp.ge.f32.partialorder %v1292, 0.0
    %vm1319 = vcmp.ge.f32.partialorder %v1164, 0.0
    %vm1320 = vcmp.ge.f32.partialorder %v1166, 0.0
    %vm1321 = vcmp.ge.f32.partialorder %v1295, 0.0
    %v1322 = vmul.f32 %v1130, 2.0
    %v1323 = vmul.f32 %v1132, 2.0
    %v1324 = vmul.f32 %v1268, 2.0
    %v1325 = vmul.f32 %v1134, 2.0
    %v1326 = vmul.f32 %v1136, 2.0
    %v1327 = vmul.f32 %v1271, 2.0
    %v1328 = vmul.f32 %v1140, 2.0
    %v1329 = vmul.f32 %v1142, 2.0
    %v1330 = vmul.f32 %v1276, 2.0
    %v1331 = vmul.f32 %v1144, 2.0
    %v1332 = vmul.f32 %v1146, 2.0
    %v1333 = vmul.f32 %v1279, 2.0
    %v1334 = vmul.f32 %v1150, 2.0
    %v1335 = vmul.f32 %v1152, 2.0
    %v1336 = vmul.f32 %v1284, 2.0
    %v1337 = vmul.f32 %v1154, 2.0
    %v1338 = vmul.f32 %v1156, 2.0
    %v1339 = vmul.f32 %v1287, 2.0
    %v1340 = vmul.f32 %v1160, 2.0
    %v1341 = vmul.f32 %v1162, 2.0
    %v1342 = vmul.f32 %v1292, 2.0
    %v1343 = vmul.f32 %v1164, 2.0
    %v1344 = vmul.f32 %v1166, 2.0
    %v1345 = vmul.f32 %v1295, 2.0
    %v1346 = vsel %vm1298, %v1130, %v1322
    %v1347 = vsel %vm1299, %v1132, %v1323
    %v1348 = vsel %vm1300, %v1268, %v1324
    %v1349 = vsel %vm1301, %v1134, %v1325
    %v1350 = vsel %vm1302, %v1136, %v1326
    %v1351 = vsel %vm1303, %v1271, %v1327
    %v1352 = vsel %vm1304, %v1140, %v1328
    %v1353 = vsel %vm1305, %v1142, %v1329
    %v1354 = vsel %vm1306, %v1276, %v1330
    %v1355 = vsel %vm1307, %v1144, %v1331
    %v1356 = vsel %vm1308, %v1146, %v1332
    %v1357 = vsel %vm1309, %v1279, %v1333
    %v1358 = vsel %vm1310, %v1150, %v1334
    %v1359 = vsel %vm1311, %v1152, %v1335
    %v1360 = vsel %vm1312, %v1284, %v1336
    %v1361 = vsel %vm1313, %v1154, %v1337
    %v1362 = vsel %vm1314, %v1156, %v1338
    %v1363 = vsel %vm1315, %v1287, %v1339
    %v1364 = vsel %vm1316, %v1160, %v1340
    %v1365 = vsel %vm1317, %v1162, %v1341
    %v1366 = vsel %vm1318, %v1292, %v1342
    %v1367 = vsel %vm1319, %v1164, %v1343
    %v1368 = vsel %vm1320, %v1166, %v1344
    %v1369 = vsel %vm1321, %v1295, %v1345
    %v1370 = vld [vmem:[#allocation5] sm:$0xff]
    %v1371 = vld [vmem:[#allocation5 + $0x8] sm:$0xff]
    %v1372 = vld [vmem:[#allocation5 + $0x10] sm:$0xff]
    %v1373 = vld [vmem:[#allocation5 + $0x18] sm:$0xff]
    %v1374 = vld [vmem:[#allocation5 + $0x20] sm:$0xff]
    %v1375 = vld [vmem:[#allocation5 + $0x28] sm:$0xff]
    %v1376 = vld [vmem:[#allocation5 + $0x30] sm:$0xff]
    %v1377 = vld [vmem:[#allocation5 + $0x38] sm:$0xff]
    %v1378 = vld [vmem:[#allocation5 + $0x40] sm:$0xff]
    %v1379 = vld [vmem:[#allocation5 + $0x48] sm:$0xff]
    %v1380 = vld [vmem:[#allocation5 + $0x50] sm:$0xff]
    %v1381 = vld [vmem:[#allocation5 + $0x58] sm:$0xff]
    %v1382 = vld [vmem:[#allocation5 + $0x60] sm:$0xff]
    %v1383 = vld [vmem:[#allocation5 + $0x68] sm:$0xff]
    %v1384 = vld [vmem:[#allocation5 + $0x70] sm:$0xff]
    %v1385 = vld [vmem:[#allocation5 + $0x78] sm:$0xff]
    %v1386 = vld [vmem:[#allocation5 + $0x80] sm:$0xff]
    %v1387 = vld [vmem:[#allocation5 + $0x88] sm:$0xff]
    %v1388 = vld [vmem:[#allocation5 + $0x90] sm:$0xff]
    %v1389 = vld [vmem:[#allocation5 + $0x98] sm:$0xff]
    %v1390 = vld [vmem:[#allocation5 + $0xa0] sm:$0xff]
    %v1391 = vld [vmem:[#allocation5 + $0xa8] sm:$0xff]
    %v1392 = vld [vmem:[#allocation5 + $0xb0] sm:$0xff]
    %v1393 = vld [vmem:[#allocation5 + $0xb8] sm:$0xff]
    %v1394 = vld [vmem:[#allocation5 + $0xc0] sm:$0xff]
    %v1395 = vld [vmem:[#allocation5 + $0xc8] sm:$0xff]
    %v1396 = vld [vmem:[#allocation5 + $0xd0] sm:$0xff]
    %v1397 = vld [vmem:[#allocation5 + $0xd8] sm:$0xff]
    %v1398 = vld [vmem:[#allocation5 + $0xe0] sm:$0xff]
    %v1399 = vld [vmem:[#allocation5 + $0xe8] sm:$0xff]
    %v1400 = vld [vmem:[#allocation5 + $0xf0] sm:$0xff]
    %v1401 = vld [vmem:[#allocation5 + $0xf8] sm:$0xff]
    %v1402 = vld [vmem:[#allocation5 + $0x100] sm:$0xff]
    %v1403 = vld [vmem:[#allocation5 + $0x108] sm:$0xff]
    %v1404 = vld [vmem:[#allocation5 + $0x110] sm:$0xff]
    %v1405 = vld [vmem:[#allocation5 + $0x118] sm:$0xff]
    %v1406 = vld [vmem:[#allocation5 + $0x120] sm:$0xff]
    %v1407 = vld [vmem:[#allocation5 + $0x128] sm:$0xff]
    %v1408 = vld [vmem:[#allocation5 + $0x130] sm:$0xff]
    %v1409 = vld [vmem:[#allocation5 + $0x138] sm:$0xff]
    %v1410 = vld [vmem:[#allocation5 + $0x140] sm:$0xff]
    %v1411 = vld [vmem:[#allocation5 + $0x148] sm:$0xff]
    %v1412 = vld [vmem:[#allocation5 + $0x150] sm:$0xff]
    %v1413 = vld [vmem:[#allocation5 + $0x158] sm:$0xff]
    %v1414 = vld [vmem:[#allocation5 + $0x160] sm:$0xff]
    %v1415 = vld [vmem:[#allocation5 + $0x168] sm:$0xff]
    %v1416 = vld [vmem:[#allocation5 + $0x170] sm:$0xff]
    %v1417 = vld [vmem:[#allocation5 + $0x178] sm:$0xff]
    %v1418 = vld [vmem:[#allocation5 + $0x180] sm:$0xff]
    %v1419 = vld [vmem:[#allocation5 + $0x188] sm:$0xff]
    %v1420 = vld [vmem:[#allocation5 + $0x190] sm:$0xff]
    %v1421 = vld [vmem:[#allocation5 + $0x198] sm:$0xff]
    %v1422 = vld [vmem:[#allocation5 + $0x1a0] sm:$0xff]
    %v1423 = vld [vmem:[#allocation5 + $0x1a8] sm:$0xff]
    %v1424 = vld [vmem:[#allocation5 + $0x1b0] sm:$0xff]
    %v1425 = vld [vmem:[#allocation5 + $0x1b8] sm:$0xff]
    %v1426 = vld [vmem:[#allocation5 + $0x1c0] sm:$0xff]
    %v1427 = vld [vmem:[#allocation5 + $0x1c8] sm:$0xff]
    %v1428 = vld [vmem:[#allocation5 + $0x1d0] sm:$0xff]
    %v1429 = vld [vmem:[#allocation5 + $0x1d8] sm:$0xff]
    %v1430 = vld [vmem:[#allocation5 + $0x1e0] sm:$0xff]
    %v1431 = vld [vmem:[#allocation5 + $0x1e8] sm:$0xff]
    %v1432 = vld [vmem:[#allocation5 + $0x1f0] sm:$0xff]
    %v1433 = vld [vmem:[#allocation5 + $0x1f8] sm:$0xff]
    %v1434 = vld [vmem:[#allocation5 + $0x200] sm:$0xff]
    %v1435 = vld [vmem:[#allocation5 + $0x208] sm:$0xff]
    %v1436 = vld [vmem:[#allocation5 + $0x210] sm:$0xff]
    %v1437 = vld [vmem:[#allocation5 + $0x218] sm:$0xff]
    %v1438 = vld [vmem:[#allocation5 + $0x220] sm:$0xff]
    %v1439 = vld [vmem:[#allocation5 + $0x228] sm:$0xff]
    %v1440 = vld [vmem:[#allocation5 + $0x230] sm:$0xff]
    %v1441 = vld [vmem:[#allocation5 + $0x238] sm:$0xff]
    %v1442 = vld [vmem:[#allocation5 + $0x240] sm:$0xff]
    %v1443 = vld [vmem:[#allocation5 + $0x248] sm:$0xff]
    %v1444 = vld [vmem:[#allocation5 + $0x250] sm:$0xff]
    %v1445 = vld [vmem:[#allocation5 + $0x258] sm:$0xff]
    %v1446 = vld [vmem:[#allocation5 + $0x260] sm:$0xff]
    %v1447 = vld [vmem:[#allocation5 + $0x268] sm:$0xff]
    %v1448 = vld [vmem:[#allocation5 + $0x270] sm:$0xff]
    %v1449 = vld [vmem:[#allocation5 + $0x278] sm:$0xff]
    %v1450 = vld [vmem:[#allocation5 + $0x280] sm:$0xff]
    %v1451 = vld [vmem:[#allocation5 + $0x288] sm:$0xff]
    %v1452 = vld [vmem:[#allocation5 + $0x290] sm:$0xff]
    %v1453 = vld [vmem:[#allocation5 + $0x298] sm:$0xff]
    %v1454 = vld [vmem:[#allocation5 + $0x2a0] sm:$0xff]
    %v1455 = vld [vmem:[#allocation5 + $0x2a8] sm:$0xff]
    %v1456 = vld [vmem:[#allocation5 + $0x2b0] sm:$0xff]
    %v1457 = vld [vmem:[#allocation5 + $0x2b8] sm:$0xff]
    %v1458 = vld [vmem:[#allocation5 + $0x2c0] sm:$0xff]
    %v1459 = vld [vmem:[#allocation5 + $0x2c8] sm:$0xff]
    %v1460 = vld [vmem:[#allocation5 + $0x2d0] sm:$0xff]
    %v1461 = vld [vmem:[#allocation5 + $0x2d8] sm:$0xff]
    %v1462 = vld [vmem:[#allocation5 + $0x2e0] sm:$0xff]
    %v1463 = vld [vmem:[#allocation5 + $0x2e8] sm:$0xff]
    %v1464 = vld [vmem:[#allocation5 + $0x2f0] sm:$0xff]
    %v1465 = vld [vmem:[#allocation5 + $0x2f8] sm:$0xff]
    %v1466 = vld [vmem:[%s6] sm:$0xf]
    %v1467 = vpack.c.bf16 %v1349, %v1346
    %v1468 = vpack.c.bf16 %v1350, %v1347
    %v1469 = vpack.c.bf16 %v1351, %v1348
    %v1470 = vpack.c.bf16 %v1355, %v1352
    %v1471 = vpack.c.bf16 %v1356, %v1353
    %v1472 = vpack.c.bf16 %v1357, %v1354
    %v1473 = vpack.c.bf16 %v1361, %v1358
    %v1474 = vpack.c.bf16 %v1362, %v1359
    %v1475 = vpack.c.bf16 %v1363, %v1360
    %v1476 = vpack.c.bf16 %v1367, %v1364
    %v1477 = vpack.c.bf16 %v1368, %v1365
    %v1478 = vpack.c.bf16 %v1369, %v1366
    %v1480 = vlaneseq
    %v1481 = vshrl.u32 %v1480, 7
    %v1482 = vsub.s32 0, %v1481
    %v1483 = vrot.slane %v1466, %v1482
    %v1484 = vlaneseq
    %v1485 = vshrl.u32 %v1484, 7
    %v1486 = vsub.s32 1, %v1485
    %v1487 = vrot.slane %v1466, %v1486
    %v1488 = vlaneseq
    %v1489 = vshrl.u32 %v1488, 7
    %v1490 = vsub.s32 2, %v1489
    %v1491 = vrot.slane %v1466, %v1490
    %v1492 = vlaneseq
    %v1493 = vshrl.u32 %v1492, 7
    %v1494 = vsub.s32 3, %v1493
    %v1495 = vrot.slane %v1466, %v1494
    %v1596 = vunpack.c.l.b16 %v1370
    %v1597 = vunpack.c.h.b16 %v1370
    %v1598 = vunpack.c.l.b16 %v1371
    %v1599 = vunpack.c.h.b16 %v1371
    %v1600 = vunpack.c.l.b16 %v1372
    %v1601 = vunpack.c.h.b16 %v1372
    %v1602 = vunpack.c.l.b16 %v1373
    %v1603 = vunpack.c.h.b16 %v1373
    %v1604 = vunpack.c.l.b16 %v1374
    %v1605 = vunpack.c.h.b16 %v1374
    %v1606 = vunpack.c.l.b16 %v1375
    %v1607 = vunpack.c.h.b16 %v1375
    %v1608 = vunpack.c.l.b16 %v1376
    %v1609 = vunpack.c.h.b16 %v1376
    %v1610 = vunpack.c.l.b16 %v1377
    %v1611 = vunpack.c.h.b16 %v1377
    %v1612 = vunpack.c.l.b16 %v1378
    %v1613 = vunpack.c.h.b16 %v1378
    %v1614 = vunpack.c.l.b16 %v1379
    %v1615 = vunpack.c.h.b16 %v1379
    %v1616 = vunpack.c.l.b16 %v1380
    %v1617 = vunpack.c.h.b16 %v1380
    %v1618 = vunpack.c.l.b16 %v1381
    %v1619 = vunpack.c.h.b16 %v1381
    %v1620 = vunpack.c.l.b16 %v1382
    %v1621 = vunpack.c.h.b16 %v1382
    %v1622 = vunpack.c.l.b16 %v1383
    %v1623 = vunpack.c.h.b16 %v1383
    %v1624 = vunpack.c.l.b16 %v1384
    %v1625 = vunpack.c.h.b16 %v1384
    %v1626 = vunpack.c.l.b16 %v1385
    %v1627 = vunpack.c.h.b16 %v1385
    %v1628 = vunpack.c.l.b16 %v1386
    %v1629 = vunpack.c.h.b16 %v1386
    %v1630 = vunpack.c.l.b16 %v1387
    %v1631 = vunpack.c.h.b16 %v1387
    %v1632 = vunpack.c.l.b16 %v1388
    %v1633 = vunpack.c.h.b16 %v1388
    %v1634 = vunpack.c.l.b16 %v1389
    %v1635 = vunpack.c.h.b16 %v1389
    %v1636 = vunpack.c.l.b16 %v1390
    %v1637 = vunpack.c.h.b16 %v1390
    %v1638 = vunpack.c.l.b16 %v1391
    %v1639 = vunpack.c.h.b16 %v1391
    %v1640 = vunpack.c.l.b16 %v1392
    %v1641 = vunpack.c.h.b16 %v1392
    %v1642 = vunpack.c.l.b16 %v1393
    %v1643 = vunpack.c.h.b16 %v1393
    %v1644 = vunpack.c.l.b16 %v1394
    %v1645 = vunpack.c.h.b16 %v1394
    %v1646 = vunpack.c.l.b16 %v1395
    %v1647 = vunpack.c.h.b16 %v1395
    %v1648 = vunpack.c.l.b16 %v1396
    %v1649 = vunpack.c.h.b16 %v1396
    %v1650 = vunpack.c.l.b16 %v1397
    %v1651 = vunpack.c.h.b16 %v1397
    %v1652 = vunpack.c.l.b16 %v1398
    %v1653 = vunpack.c.h.b16 %v1398
    %v1654 = vunpack.c.l.b16 %v1399
    %v1655 = vunpack.c.h.b16 %v1399
    %v1656 = vunpack.c.l.b16 %v1400
    %v1657 = vunpack.c.h.b16 %v1400
    %v1658 = vunpack.c.l.b16 %v1401
    %v1659 = vunpack.c.h.b16 %v1401
    %v1660 = vunpack.c.l.b16 %v1402
    %v1661 = vunpack.c.h.b16 %v1402
    %v1662 = vunpack.c.l.b16 %v1403
    %v1663 = vunpack.c.h.b16 %v1403
    %v1664 = vunpack.c.l.b16 %v1404
    %v1665 = vunpack.c.h.b16 %v1404
    %v1666 = vunpack.c.l.b16 %v1405
    %v1667 = vunpack.c.h.b16 %v1405
    %v1668 = vunpack.c.l.b16 %v1406
    %v1669 = vunpack.c.h.b16 %v1406
    %v1670 = vunpack.c.l.b16 %v1407
    %v1671 = vunpack.c.h.b16 %v1407
    %v1672 = vunpack.c.l.b16 %v1408
    %v1673 = vunpack.c.h.b16 %v1408
    %v1674 = vunpack.c.l.b16 %v1409
    %v1675 = vunpack.c.h.b16 %v1409
    %v1676 = vunpack.c.l.b16 %v1410
    %v1677 = vunpack.c.h.b16 %v1410
    %v1678 = vunpack.c.l.b16 %v1411
    %v1679 = vunpack.c.h.b16 %v1411
    %v1680 = vunpack.c.l.b16 %v1412
    %v1681 = vunpack.c.h.b16 %v1412
    %v1682 = vunpack.c.l.b16 %v1413
    %v1683 = vunpack.c.h.b16 %v1413
    %v1684 = vunpack.c.l.b16 %v1414
    %v1685 = vunpack.c.h.b16 %v1414
    %v1686 = vunpack.c.l.b16 %v1415
    %v1687 = vunpack.c.h.b16 %v1415
    %v1688 = vunpack.c.l.b16 %v1416
    %v1689 = vunpack.c.h.b16 %v1416
    %v1690 = vunpack.c.l.b16 %v1417
    %v1691 = vunpack.c.h.b16 %v1417
    %v1692 = vunpack.c.l.b16 %v1418
    %v1693 = vunpack.c.h.b16 %v1418
    %v1694 = vunpack.c.l.b16 %v1419
    %v1695 = vunpack.c.h.b16 %v1419
    %v1696 = vunpack.c.l.b16 %v1420
    %v1697 = vunpack.c.h.b16 %v1420
    %v1698 = vunpack.c.l.b16 %v1421
    %v1699 = vunpack.c.h.b16 %v1421
    %v1700 = vunpack.c.l.b16 %v1422
    %v1701 = vunpack.c.h.b16 %v1422
    %v1702 = vunpack.c.l.b16 %v1423
    %v1703 = vunpack.c.h.b16 %v1423
    %v1704 = vunpack.c.l.b16 %v1424
    %v1705 = vunpack.c.h.b16 %v1424
    %v1706 = vunpack.c.l.b16 %v1425
    %v1707 = vunpack.c.h.b16 %v1425
    %v1708 = vunpack.c.l.b16 %v1426
    %v1709 = vunpack.c.h.b16 %v1426
    %v1710 = vunpack.c.l.b16 %v1427
    %v1711 = vunpack.c.h.b16 %v1427
    %v1712 = vunpack.c.l.b16 %v1428
    %v1713 = vunpack.c.h.b16 %v1428
    %v1714 = vunpack.c.l.b16 %v1429
    %v1715 = vunpack.c.h.b16 %v1429
    %v1716 = vunpack.c.l.b16 %v1430
    %v1717 = vunpack.c.h.b16 %v1430
    %v1718 = vunpack.c.l.b16 %v1431
    %v1719 = vunpack.c.h.b16 %v1431
    %v1720 = vunpack.c.l.b16 %v1432
    %v1721 = vunpack.c.h.b16 %v1432
    %v1722 = vunpack.c.l.b16 %v1433
    %v1723 = vunpack.c.h.b16 %v1433
    %v1724 = vunpack.c.l.b16 %v1434
    %v1725 = vunpack.c.h.b16 %v1434
    %v1726 = vunpack.c.l.b16 %v1435
    %v1727 = vunpack.c.h.b16 %v1435
    %v1728 = vunpack.c.l.b16 %v1436
    %v1729 = vunpack.c.h.b16 %v1436
    %v1730 = vunpack.c.l.b16 %v1437
    %v1731 = vunpack.c.h.b16 %v1437
    %v1732 = vunpack.c.l.b16 %v1438
    %v1733 = vunpack.c.h.b16 %v1438
    %v1734 = vunpack.c.l.b16 %v1439
    %v1735 = vunpack.c.h.b16 %v1439
    %v1736 = vunpack.c.l.b16 %v1440
    %v1737 = vunpack.c.h.b16 %v1440
    %v1738 = vunpack.c.l.b16 %v1441
    %v1739 = vunpack.c.h.b16 %v1441
    %v1740 = vunpack.c.l.b16 %v1442
    %v1741 = vunpack.c.h.b16 %v1442
    %v1742 = vunpack.c.l.b16 %v1443
    %v1743 = vunpack.c.h.b16 %v1443
    %v1744 = vunpack.c.l.b16 %v1444
    %v1745 = vunpack.c.h.b16 %v1444
    %v1746 = vunpack.c.l.b16 %v1445
    %v1747 = vunpack.c.h.b16 %v1445
    %v1748 = vunpack.c.l.b16 %v1446
    %v1749 = vunpack.c.h.b16 %v1446
    %v1750 = vunpack.c.l.b16 %v1447
    %v1751 = vunpack.c.h.b16 %v1447
    %v1752 = vunpack.c.l.b16 %v1448
    %v1753 = vunpack.c.h.b16 %v1448
    %v1754 = vunpack.c.l.b16 %v1449
    %v1755 = vunpack.c.h.b16 %v1449
    %v1756 = vunpack.c.l.b16 %v1450
    %v1757 = vunpack.c.h.b16 %v1450
    %v1758 = vunpack.c.l.b16 %v1451
    %v1759 = vunpack.c.h.b16 %v1451
    %v1760 = vunpack.c.l.b16 %v1452
    %v1761 = vunpack.c.h.b16 %v1452
    %v1762 = vunpack.c.l.b16 %v1453
    %v1763 = vunpack.c.h.b16 %v1453
    %v1764 = vunpack.c.l.b16 %v1454
    %v1765 = vunpack.c.h.b16 %v1454
    %v1766 = vunpack.c.l.b16 %v1455
    %v1767 = vunpack.c.h.b16 %v1455
    %v1768 = vunpack.c.l.b16 %v1456
    %v1769 = vunpack.c.h.b16 %v1456
    %v1770 = vunpack.c.l.b16 %v1457
    %v1771 = vunpack.c.h.b16 %v1457
    %v1772 = vunpack.c.l.b16 %v1458
    %v1773 = vunpack.c.h.b16 %v1458
    %v1774 = vunpack.c.l.b16 %v1459
    %v1775 = vunpack.c.h.b16 %v1459
    %v1776 = vunpack.c.l.b16 %v1460
    %v1777 = vunpack.c.h.b16 %v1460
    %v1778 = vunpack.c.l.b16 %v1461
    %v1779 = vunpack.c.h.b16 %v1461
    %v1780 = vunpack.c.l.b16 %v1462
    %v1781 = vunpack.c.h.b16 %v1462
    %v1782 = vunpack.c.l.b16 %v1463
    %v1783 = vunpack.c.h.b16 %v1463
    %v1784 = vunpack.c.l.b16 %v1464
    %v1785 = vunpack.c.h.b16 %v1464
    %v1786 = vunpack.c.l.b16 %v1465
    %v1787 = vunpack.c.h.b16 %v1465
    %v1788 = vpack.c.b16 %v1600, %v1596
    %v1789 = vpack.c.b16 %v1601, %v1597
    %v1790 = vpack.c.b16 %v1602, %v1598
    %v1791 = vpack.c.b16 %v1603, %v1599
    %v1792 = vpack.c.b16 %v1608, %v1604
    %v1793 = vpack.c.b16 %v1609, %v1605
    %v1794 = vpack.c.b16 %v1610, %v1606
    %v1795 = vpack.c.b16 %v1611, %v1607
    %v1796 = vpack.c.b16 %v1616, %v1612
    %v1797 = vpack.c.b16 %v1617, %v1613
    %v1798 = vpack.c.b16 %v1618, %v1614
    %v1799 = vpack.c.b16 %v1619, %v1615
    %v1800 = vpack.c.b16 %v1624, %v1620
    %v1801 = vpack.c.b16 %v1625, %v1621
    %v1802 = vpack.c.b16 %v1626, %v1622
    %v1803 = vpack.c.b16 %v1627, %v1623
    %v1804 = vpack.c.b16 %v1632, %v1628
    %v1805 = vpack.c.b16 %v1633, %v1629
    %v1806 = vpack.c.b16 %v1634, %v1630
    %v1807 = vpack.c.b16 %v1635, %v1631
    %v1808 = vpack.c.b16 %v1640, %v1636
    %v1809 = vpack.c.b16 %v1641, %v1637
    %v1810 = vpack.c.b16 %v1642, %v1638
    %v1811 = vpack.c.b16 %v1643, %v1639
    %v1812 = vpack.c.b16 %v1648, %v1644
    %v1813 = vpack.c.b16 %v1649, %v1645
    %v1814 = vpack.c.b16 %v1650, %v1646
    %v1815 = vpack.c.b16 %v1651, %v1647
    %v1816 = vpack.c.b16 %v1656, %v1652
    %v1817 = vpack.c.b16 %v1657, %v1653
    %v1818 = vpack.c.b16 %v1658, %v1654
    %v1819 = vpack.c.b16 %v1659, %v1655
    %v1820 = vpack.c.b16 %v1664, %v1660
    %v1821 = vpack.c.b16 %v1665, %v1661
    %v1822 = vpack.c.b16 %v1666, %v1662
    %v1823 = vpack.c.b16 %v1667, %v1663
    %v1824 = vpack.c.b16 %v1672, %v1668
    %v1825 = vpack.c.b16 %v1673, %v1669
    %v1826 = vpack.c.b16 %v1674, %v1670
    %v1827 = vpack.c.b16 %v1675, %v1671
    %v1828 = vpack.c.b16 %v1680, %v1676
    %v1829 = vpack.c.b16 %v1681, %v1677
    %v1830 = vpack.c.b16 %v1682, %v1678
    %v1831 = vpack.c.b16 %v1683, %v1679
    %v1832 = vpack.c.b16 %v1688, %v1684
    %v1833 = vpack.c.b16 %v1689, %v1685
    %v1834 = vpack.c.b16 %v1690, %v1686
    %v1835 = vpack.c.b16 %v1691, %v1687
    %v1836 = vpack.c.b16 %v1696, %v1692
    %v1837 = vpack.c.b16 %v1697, %v1693
    %v1838 = vpack.c.b16 %v1698, %v1694
    %v1839 = vpack.c.b16 %v1699, %v1695
    %v1840 = vpack.c.b16 %v1704, %v1700
    %v1841 = vpack.c.b16 %v1705, %v1701
    %v1842 = vpack.c.b16 %v1706, %v1702
    %v1843 = vpack.c.b16 %v1707, %v1703
    %v1844 = vpack.c.b16 %v1712, %v1708
    %v1845 = vpack.c.b16 %v1713, %v1709
    %v1846 = vpack.c.b16 %v1714, %v1710
    %v1847 = vpack.c.b16 %v1715, %v1711
    %v1848 = vpack.c.b16 %v1720, %v1716
    %v1849 = vpack.c.b16 %v1721, %v1717
    %v1850 = vpack.c.b16 %v1722, %v1718
    %v1851 = vpack.c.b16 %v1723, %v1719
    %v1852 = vpack.c.b16 %v1728, %v1724
    %v1853 = vpack.c.b16 %v1729, %v1725
    %v1854 = vpack.c.b16 %v1730, %v1726
    %v1855 = vpack.c.b16 %v1731, %v1727
    %v1856 = vpack.c.b16 %v1736, %v1732
    %v1857 = vpack.c.b16 %v1737, %v1733
    %v1858 = vpack.c.b16 %v1738, %v1734
    %v1859 = vpack.c.b16 %v1739, %v1735
    %v1860 = vpack.c.b16 %v1744, %v1740
    %v1861 = vpack.c.b16 %v1745, %v1741
    %v1862 = vpack.c.b16 %v1746, %v1742
    %v1863 = vpack.c.b16 %v1747, %v1743
    %v1864 = vpack.c.b16 %v1752, %v1748
    %v1865 = vpack.c.b16 %v1753, %v1749
    %v1866 = vpack.c.b16 %v1754, %v1750
    %v1867 = vpack.c.b16 %v1755, %v1751
    %v1868 = vpack.c.b16 %v1760, %v1756
    %v1869 = vpack.c.b16 %v1761, %v1757
    %v1870 = vpack.c.b16 %v1762, %v1758
    %v1871 = vpack.c.b16 %v1763, %v1759
    %v1872 = vpack.c.b16 %v1768, %v1764
    %v1873 = vpack.c.b16 %v1769, %v1765
    %v1874 = vpack.c.b16 %v1770, %v1766
    %v1875 = vpack.c.b16 %v1771, %v1767
    %v1876 = vpack.c.b16 %v1776, %v1772
    %v1877 = vpack.c.b16 %v1777, %v1773
    %v1878 = vpack.c.b16 %v1778, %v1774
    %v1879 = vpack.c.b16 %v1779, %v1775
    %v1880 = vpack.c.b16 %v1784, %v1780
    %v1881 = vpack.c.b16 %v1785, %v1781
    %v1882 = vpack.c.b16 %v1786, %v1782
    %v1883 = vpack.c.b16 %v1787, %v1783
    %1980 = vmatprep.subr.bf16.mxu0 %v1789
    %1981 = vmatpush1.bf16.msra.mxu0 %v1788
    %1982 = vmatprep.subr.bf16.mxu0 %v1793
    %1983 = vmatpush1.bf16.msra.mxu0 %v1792
    %1984 = vmatprep.subr.bf16.mxu0 %v1797
    %1985 = vmatpush1.bf16.msra.mxu0 %v1796
    %1986 = vmatprep.subr.bf16.mxu0 %v1801
    %1987 = vmatpush1.bf16.msra.mxu0 %v1800
    %1988 = vmatprep.subr.bf16.mxu0 %v1805
    %1989 = vmatpush1.bf16.msra.mxu0 %v1804
    %1990 = vmatprep.subr.bf16.mxu0 %v1809
    %1991 = vmatpush1.bf16.msra.mxu0 %v1808
    %1992 = vmatprep.subr.bf16.mxu0 %v1813
    %1993 = vmatpush1.bf16.msra.mxu0 %v1812
    %1994 = vmatprep.subr.bf16.mxu0 %v1817
    %1995 = vmatpush1.bf16.msra.mxu0 %v1816
    %1996 = vmatprep.subr.bf16.mxu0 %v1821
    %1997 = vmatpush1.bf16.msra.mxu0 %v1820
    %1998 = vmatprep.subr.bf16.mxu0 %v1825
    %1999 = vmatpush1.bf16.msra.mxu0 %v1824
    %2000 = vmatprep.subr.bf16.mxu0 %v1829
    %2001 = vmatpush1.bf16.msra.mxu0 %v1828
    %2002 = vmatprep.subr.bf16.mxu0 %v1833
    %2003 = vmatpush1.bf16.msra.mxu0 %v1832
    %2004 = vmatprep.subr.bf16.mxu0 %v1837
    %2005 = vmatpush1.bf16.msra.mxu0 %v1836
    %2006 = vmatprep.subr.bf16.mxu0 %v1841
    %2007 = vmatpush1.bf16.msra.mxu0 %v1840
    %2008 = vmatprep.subr.bf16.mxu0 %v1845
    %2009 = vmatpush1.bf16.msra.mxu0 %v1844
    %2010 = vmatprep.subr.bf16.mxu0 %v1849
    %2011 = vmatpush1.bf16.msra.mxu0 %v1848
    %2012 = vmatprep.mubr.bf16.mxu0 %v1468
    %2013 = vmatmul.mubr.bf16.gmra.mrb[0].mxu0 %v1467
    %v2014 = vpop.f32.mrb[0].mxu0
    %v2015 = vadd.f32 %v1483, %v2014
    %v2016 = vpop.f32.mrb[0].mxu0
    %v2017 = vadd.f32 %v1487, %v2016
    %v2018 = vpop.f32.mrb[0].mxu0
    %v2019 = vadd.f32 %v1483, %v2018
    %v2020 = vpop.f32.mrb[0].mxu0
    %v2021 = vadd.f32 %v1487, %v2020
    %2022 = vmatprep.mubr.bf16.mxu0 %v1471
    %2023 = vmatmul.mubr.bf16.gmra.mrb[0].mxu0 %v1470
    %v2024 = vpop.f32.mrb[0].mxu0
    %v2025 = vadd.f32 %v1483, %v2024
    %v2026 = vpop.f32.mrb[0].mxu0
    %v2027 = vadd.f32 %v1487, %v2026
    %v2028 = vpop.f32.mrb[0].mxu0
    %v2029 = vadd.f32 %v1483, %v2028
    %v2030 = vpop.f32.mrb[0].mxu0
    %v2031 = vadd.f32 %v1487, %v2030
    %2032 = vmatprep.mubr.bf16.mxu0 %v1474
    %2033 = vmatmul.mubr.bf16.gmra.mrb[0].mxu0 %v1473
    %v2034 = vpop.f32.mrb[0].mxu0
    %v2035 = vadd.f32 %v1483, %v2034
    %v2036 = vpop.f32.mrb[0].mxu0
    %v2037 = vadd.f32 %v1487, %v2036
    %v2038 = vpop.f32.mrb[0].mxu0
    %v2039 = vadd.f32 %v1483, %v2038
    %v2040 = vpop.f32.mrb[0].mxu0
    %v2041 = vadd.f32 %v1487, %v2040
    %2042 = vmatprep.mubr.bf16.mxu0 %v1477
    %2043 = vmatmul.mubr.bf16.gmra.mrb[0].mxu0 %v1476
    %v2044 = vpop.f32.mrb[0].mxu0
    %v2045 = vadd.f32 %v1483, %v2044
    %v2046 = vpop.f32.mrb[0].mxu0
    %v2047 = vadd.f32 %v1487, %v2046
    %v2048 = vpop.f32.mrb[0].mxu0
    %v2049 = vadd.f32 %v1483, %v2048
    %v2050 = vpop.f32.mrb[0].mxu0
    %v2051 = vadd.f32 %v1487, %v2050
    %2052 = vdwg.mxu0
    %2053 = vmatprep.subr.bf16.mxu0 %v1853
    %2054 = vmatpush1.bf16.msra.mxu0 %v1852
    %2055 = vmatprep.subr.bf16.mxu0 %v1857
    %2056 = vmatpush1.bf16.msra.mxu0 %v1856
    %2057 = vmatprep.subr.bf16.mxu0 %v1861
    %2058 = vmatpush1.bf16.msra.mxu0 %v1860
    %2059 = vmatprep.subr.bf16.mxu0 %v1865
    %2060 = vmatpush1.bf16.msra.mxu0 %v1864
    %2061 = vmatprep.subr.bf16.mxu0 %v1869
    %2062 = vmatpush1.bf16.msra.mxu0 %v1868
    %2063 = vmatprep.subr.bf16.mxu0 %v1873
    %2064 = vmatpush1.bf16.msra.mxu0 %v1872
    %2065 = vmatprep.subr.bf16.mxu0 %v1877
    %2066 = vmatpush1.bf16.msra.mxu0 %v1876
    %2067 = vmatprep.subr.bf16.mxu0 %v1881
    %2068 = vmatpush1.bf16.msra.mxu0 %v1880
    %2069 = vmatprep.subr.bf16.mxu0 0
    %2070 = vmatpush1.bf16.msra.mxu0 0
    %2071 = vmatprep.subr.bf16.mxu0 0
    %2072 = vmatpush1.bf16.msra.mxu0 0
    %2073 = vmatprep.subr.bf16.mxu0 0
    %2074 = vmatpush1.bf16.msra.mxu0 0
    %2075 = vmatprep.subr.bf16.mxu0 0
    %2076 = vmatpush1.bf16.msra.mxu0 0
    %2077 = vmatprep.subr.bf16.mxu0 0
    %2078 = vmatpush1.bf16.msra.mxu0 0
    %2079 = vmatprep.subr.bf16.mxu0 0
    %2080 = vmatpush1.bf16.msra.mxu0 0
    %2081 = vmatprep.subr.bf16.mxu0 0
    %2082 = vmatpush1.bf16.msra.mxu0 0
    %2083 = vmatprep.subr.bf16.mxu0 0
    %2084 = vmatpush1.bf16.msra.mxu0 0
    %2085 = vmatprep.mubr.bf16.mxu0 0
    %2086 = vmatmul.mubr.bf16.gmra.mrb[0].mxu0 %v1469
    %v2087 = vpop.f32.mrb[0].mxu0
    %v2088 = vadd.f32 %v2015, %v2087
    %v2089 = vpop.f32.mrb[0].mxu0
    %v2090 = vadd.f32 %v2017, %v2089
    %v2091 = vpop.f32.mrb[0].mxu0
    %v2092 = vadd.f32 %v2019, %v2091
    %v2093 = vpop.f32.mrb[0].mxu0
    %v2094 = vadd.f32 %v2021, %v2093
    %2095 = vmatprep.mubr.bf16.mxu0 0
    %2096 = vmatmul.mubr.bf16.gmra.mrb[0].mxu0 %v1472
    %v2097 = vpop.f32.mrb[0].mxu0
    %v2098 = vadd.f32 %v2025, %v2097
    %v2099 = vpop.f32.mrb[0].mxu0
    %v2100 = vadd.f32 %v2027, %v2099
    %v2101 = vpop.f32.mrb[0].mxu0
    %v2102 = vadd.f32 %v2029, %v2101
    %v2103 = vpop.f32.mrb[0].mxu0
    %v2104 = vadd.f32 %v2031, %v2103
    %2105 = vmatprep.mubr.bf16.mxu0 0
    %2106 = vmatmul.mubr.bf16.gmra.mrb[0].mxu0 %v1475
    %v2107 = vpop.f32.mrb[0].mxu0
    %v2108 = vadd.f32 %v2035, %v2107
    %v2109 = vpop.f32.mrb[0].mxu0
    %v2110 = vadd.f32 %v2037, %v2109
    %v2111 = vpop.f32.mrb[0].mxu0
    %v2112 = vadd.f32 %v2039, %v2111
    %v2113 = vpop.f32.mrb[0].mxu0
    %v2114 = vadd.f32 %v2041, %v2113
    %2115 = vmatprep.mubr.bf16.mxu0 0
    %2116 = vmatmul.mubr.bf16.gmra.mrb[0].mxu0 %v1478
    %v2117 = vpop.f32.mrb[0].mxu0
    %v2118 = vadd.f32 %v2045, %v2117
    %v2119 = vpop.f32.mrb[0].mxu0
    %v2120 = vadd.f32 %v2047, %v2119
    %v2121 = vpop.f32.mrb[0].mxu0
    %v2122 = vadd.f32 %v2049, %v2121
    %v2123 = vpop.f32.mrb[0].mxu0
    %v2124 = vadd.f32 %v2051, %v2123
    %2125 = vdwg.mxu0
    %2126 = vmatprep.subr.bf16.mxu0 %v1791
    %2127 = vmatpush1.bf16.msra.mxu0 %v1790
    %2128 = vmatprep.subr.bf16.mxu0 %v1795
    %2129 = vmatpush1.bf16.msra.mxu0 %v1794
    %2130 = vmatprep.subr.bf16.mxu0 %v1799
    %2131 = vmatpush1.bf16.msra.mxu0 %v1798
    %2132 = vmatprep.subr.bf16.mxu0 %v1803
    %2133 = vmatpush1.bf16.msra.mxu0 %v1802
    %2134 = vmatprep.subr.bf16.mxu0 %v1807
    %2135 = vmatpush1.bf16.msra.mxu0 %v1806
    %2136 = vmatprep.subr.bf16.mxu0 %v1811
    %2137 = vmatpush1.bf16.msra.mxu0 %v1810
    %2138 = vmatprep.subr.bf16.mxu0 %v1815
    %2139 = vmatpush1.bf16.msra.mxu0 %v1814
    %2140 = vmatprep.subr.bf16.mxu0 %v1819
    %2141 = vmatpush1.bf16.msra.mxu0 %v1818
    %2142 = vmatprep.subr.bf16.mxu0 %v1823
    %2143 = vmatpush1.bf16.msra.mxu0 %v1822
    %2144 = vmatprep.subr.bf16.mxu0 %v1827
    %2145 = vmatpush1.bf16.msra.mxu0 %v1826
    %2146 = vmatprep.subr.bf16.mxu0 %v1831
    %2147 = vmatpush1.bf16.msra.mxu0 %v1830
    %2148 = vmatprep.subr.bf16.mxu0 %v1835
    %2149 = vmatpush1.bf16.msra.mxu0 %v1834
    %2150 = vmatprep.subr.bf16.mxu0 %v1839
    %2151 = vmatpush1.bf16.msra.mxu0 %v1838
    %2152 = vmatprep.subr.bf16.mxu0 %v1843
    %2153 = vmatpush1.bf16.msra.mxu0 %v1842
    %2154 = vmatprep.subr.bf16.mxu0 %v1847
    %2155 = vmatpush1.bf16.msra.mxu0 %v1846
    %2156 = vmatprep.subr.bf16.mxu0 %v1851
    %2157 = vmatpush1.bf16.msra.mxu0 %v1850
    %2158 = vmatprep.mubr.bf16.mxu0 %v1468
    %2159 = vmatmul.mubr.bf16.gmra.mrb[0].mxu0 %v1467
    %v2160 = vpop.f32.mrb[0].mxu0
    %v2161 = vadd.f32 %v1491, %v2160
    %v2162 = vpop.f32.mrb[0].mxu0
    %v2163 = vadd.f32 %v1495, %v2162
    %v2164 = vpop.f32.mrb[0].mxu0
    %v2165 = vadd.f32 %v1491, %v2164
    %v2166 = vpop.f32.mrb[0].mxu0
    %v2167 = vadd.f32 %v1495, %v2166
    %2168 = vmatprep.mubr.bf16.mxu0 %v1471
    %2169 = vmatmul.mubr.bf16.gmra.mrb[0].mxu0 %v1470
    %v2170 = vpop.f32.mrb[0].mxu0
    %v2171 = vadd.f32 %v1491, %v2170
    %v2172 = vpop.f32.mrb[0].mxu0
    %v2173 = vadd.f32 %v1495, %v2172
    %v2174 = vpop.f32.mrb[0].mxu0
    %v2175 = vadd.f32 %v1491, %v2174
    %v2176 = vpop.f32.mrb[0].mxu0
    %v2177 = vadd.f32 %v1495, %v2176
    %2178 = vmatprep.mubr.bf16.mxu0 %v1474
    %2179 = vmatmul.mubr.bf16.gmra.mrb[0].mxu0 %v1473
    %v2180 = vpop.f32.mrb[0].mxu0
    %v2181 = vadd.f32 %v1491, %v2180
    %v2182 = vpop.f32.mrb[0].mxu0
    %v2183 = vadd.f32 %v1495, %v2182
    %v2184 = vpop.f32.mrb[0].mxu0
    %v2185 = vadd.f32 %v1491, %v2184
    %v2186 = vpop.f32.mrb[0].mxu0
    %v2187 = vadd.f32 %v1495, %v2186
    %2188 = vmatprep.mubr.bf16.mxu0 %v1477
    %2189 = vmatmul.mubr.bf16.gmra.mrb[0].mxu0 %v1476
    %v2190 = vpop.f32.mrb[0].mxu0
    %v2191 = vadd.f32 %v1491, %v2190
    %v2192 = vpop.f32.mrb[0].mxu0
    %v2193 = vadd.f32 %v1495, %v2192
    %v2194 = vpop.f32.mrb[0].mxu0
    %v2195 = vadd.f32 %v1491, %v2194
    %v2196 = vpop.f32.mrb[0].mxu0
    %v2197 = vadd.f32 %v1495, %v2196
    %2198 = vdwg.mxu0
    %2199 = vmatprep.subr.bf16.mxu0 %v1855
    %2200 = vmatpush1.bf16.msra.mxu0 %v1854
    %2201 = vmatprep.subr.bf16.mxu0 %v1859
    %2202 = vmatpush1.bf16.msra.mxu0 %v1858
    %2203 = vmatprep.subr.bf16.mxu0 %v1863
    %2204 = vmatpush1.bf16.msra.mxu0 %v1862
    %2205 = vmatprep.subr.bf16.mxu0 %v1867
    %2206 = vmatpush1.bf16.msra.mxu0 %v1866
    %2207 = vmatprep.subr.bf16.mxu0 %v1871
    %2208 = vmatpush1.bf16.msra.mxu0 %v1870
    %2209 = vmatprep.subr.bf16.mxu0 %v1875
    %2210 = vmatpush1.bf16.msra.mxu0 %v1874
    %2211 = vmatprep.subr.bf16.mxu0 %v1879
    %2212 = vmatpush1.bf16.msra.mxu0 %v1878
    %2213 = vmatprep.subr.bf16.mxu0 %v1883
    %2214 = vmatpush1.bf16.msra.mxu0 %v1882
    %2215 = vmatprep.subr.bf16.mxu0 0
    %2216 = vmatpush1.bf16.msra.mxu0 0
    %2217 = vmatprep.subr.bf16.mxu0 0
    %2218 = vmatpush1.bf16.msra.mxu0 0
    %2219 = vmatprep.subr.bf16.mxu0 0
    %2220 = vmatpush1.bf16.msra.mxu0 0
    %2221 = vmatprep.subr.bf16.mxu0 0
    %2222 = vmatpush1.bf16.msra.mxu0 0
    %2223 = vmatprep.subr.bf16.mxu0 0
    %2224 = vmatpush1.bf16.msra.mxu0 0
    %2225 = vmatprep.subr.bf16.mxu0 0
    %2226 = vmatpush1.bf16.msra.mxu0 0
    %2227 = vmatprep.subr.bf16.mxu0 0
    %2228 = vmatpush1.bf16.msra.mxu0 0
    %2229 = vmatprep.subr.bf16.mxu0 0
    %2230 = vmatpush1.bf16.msra.mxu0 0
    %2231 = vmatprep.mubr.bf16.mxu0 0
    %2232 = vmatmul.mubr.bf16.gmra.mrb[0].mxu0 %v1469
    %v2233 = vpop.f32.mrb[0].mxu0
    %v2234 = vadd.f32 %v2161, %v2233
    %v2235 = vpop.f32.mrb[0].mxu0
    %v2236 = vadd.f32 %v2163, %v2235
    %v2237 = vpop.f32.mrb[0].mxu0
    %v2238 = vadd.f32 %v2165, %v2237
    %v2239 = vpop.f32.mrb[0].mxu0
    %v2240 = vadd.f32 %v2167, %v2239
    %2241 = vmatprep.mubr.bf16.mxu0 0
    %2242 = vmatmul.mubr.bf16.gmra.mrb[0].mxu0 %v1472
    %v2243 = vpop.f32.mrb[0].mxu0
    %v2244 = vadd.f32 %v2171, %v2243
    %v2245 = vpop.f32.mrb[0].mxu0
    %v2246 = vadd.f32 %v2173, %v2245
    %v2247 = vpop.f32.mrb[0].mxu0
    %v2248 = vadd.f32 %v2175, %v2247
    %v2249 = vpop.f32.mrb[0].mxu0
    %v2250 = vadd.f32 %v2177, %v2249
    %2251 = vmatprep.mubr.bf16.mxu0 0
    %2252 = vmatmul.mubr.bf16.gmra.mrb[0].mxu0 %v1475
    %v2253 = vpop.f32.mrb[0].mxu0
    %v2254 = vadd.f32 %v2181, %v2253
    %v2255 = vpop.f32.mrb[0].mxu0
    %v2256 = vadd.f32 %v2183, %v2255
    %v2257 = vpop.f32.mrb[0].mxu0
    %v2258 = vadd.f32 %v2185, %v2257
    %v2259 = vpop.f32.mrb[0].mxu0
    %v2260 = vadd.f32 %v2187, %v2259
    %2261 = vmatprep.mubr.bf16.mxu0 0
    %2262 = vmatmul.mubr.bf16.gmra.mrb[0].mxu0 %v1478
    %v2263 = vpop.f32.mrb[0].mxu0
    %v2264 = vadd.f32 %v2191, %v2263
    %v2265 = vpop.f32.mrb[0].mxu0
    %v2266 = vadd.f32 %v2193, %v2265
    %v2267 = vpop.f32.mrb[0].mxu0
    %v2268 = vadd.f32 %v2195, %v2267
    %v2269 = vpop.f32.mrb[0].mxu0
    %v2270 = vadd.f32 %v2197, %v2269
    %2271 = vdwg.mxu0
    %vm2272 = vcmp.ge.f32.partialorder %v2088, 0.0
    %vm2273 = vcmp.ge.f32.partialorder %v2090, 0.0
    %vm2274 = vcmp.ge.f32.partialorder %v2234, 0.0
    %vm2275 = vcmp.ge.f32.partialorder %v2236, 0.0
    %vm2276 = vcmp.ge.f32.partialorder %v2092, 0.0
    %vm2277 = vcmp.ge.f32.partialorder %v2094, 0.0
    %vm2278 = vcmp.ge.f32.partialorder %v2238, 0.0
    %vm2279 = vcmp.ge.f32.partialorder %v2240, 0.0
    %vm2280 = vcmp.ge.f32.partialorder %v2098, 0.0
    %vm2281 = vcmp.ge.f32.partialorder %v2100, 0.0
    %vm2282 = vcmp.ge.f32.partialorder %v2244, 0.0
    %vm2283 = vcmp.ge.f32.partialorder %v2246, 0.0
    %vm2284 = vcmp.ge.f32.partialorder %v2102, 0.0
    %vm2285 = vcmp.ge.f32.partialorder %v2104, 0.0
    %vm2286 = vcmp.ge.f32.partialorder %v2248, 0.0
    %vm2287 = vcmp.ge.f32.partialorder %v2250, 0.0
    %vm2288 = vcmp.ge.f32.partialorder %v2108, 0.0
    %vm2289 = vcmp.ge.f32.partialorder %v2110, 0.0
    %vm2290 = vcmp.ge.f32.partialorder %v2254, 0.0
    %vm2291 = vcmp.ge.f32.partialorder %v2256, 0.0
    %vm2292 = vcmp.ge.f32.partialorder %v2112, 0.0
    %vm2293 = vcmp.ge.f32.partialorder %v2114, 0.0
    %vm2294 = vcmp.ge.f32.partialorder %v2258, 0.0
    %vm2295 = vcmp.ge.f32.partialorder %v2260, 0.0
    %vm2296 = vcmp.ge.f32.partialorder %v2118, 0.0
    %vm2297 = vcmp.ge.f32.partialorder %v2120, 0.0
    %vm2298 = vcmp.ge.f32.partialorder %v2264, 0.0
    %vm2299 = vcmp.ge.f32.partialorder %v2266, 0.0
    %vm2300 = vcmp.ge.f32.partialorder %v2122, 0.0
    %vm2301 = vcmp.ge.f32.partialorder %v2124, 0.0
    %vm2302 = vcmp.ge.f32.partialorder %v2268, 0.0
    %vm2303 = vcmp.ge.f32.partialorder %v2270, 0.0
    %v2304 = vmul.f32 %v2088, 2.0
    %v2305 = vmul.f32 %v2090, 2.0
    %v2306 = vmul.f32 %v2234, 2.0
    %v2307 = vmul.f32 %v2236, 2.0
    %v2308 = vmul.f32 %v2092, 2.0
    %v2309 = vmul.f32 %v2094, 2.0
    %v2310 = vmul.f32 %v2238, 2.0
    %v2311 = vmul.f32 %v2240, 2.0
    %v2312 = vmul.f32 %v2098, 2.0
    %v2313 = vmul.f32 %v2100, 2.0
    %v2314 = vmul.f32 %v2244, 2.0
    %v2315 = vmul.f32 %v2246, 2.0
    %v2316 = vmul.f32 %v2102, 2.0
    %v2317 = vmul.f32 %v2104, 2.0
    %v2318 = vmul.f32 %v2248, 2.0
    %v2319 = vmul.f32 %v2250, 2.0
    %v2320 = vmul.f32 %v2108, 2.0
    %v2321 = vmul.f32 %v2110, 2.0
    %v2322 = vmul.f32 %v2254, 2.0
    %v2323 = vmul.f32 %v2256, 2.0
    %v2324 = vmul.f32 %v2112, 2.0
    %v2325 = vmul.f32 %v2114, 2.0
    %v2326 = vmul.f32 %v2258, 2.0
    %v2327 = vmul.f32 %v2260, 2.0
    %v2328 = vmul.f32 %v2118, 2.0
    %v2329 = vmul.f32 %v2120, 2.0
    %v2330 = vmul.f32 %v2264, 2.0
    %v2331 = vmul.f32 %v2266, 2.0
    %v2332 = vmul.f32 %v2122, 2.0
    %v2333 = vmul.f32 %v2124, 2.0
    %v2334 = vmul.f32 %v2268, 2.0
    %v2335 = vmul.f32 %v2270, 2.0
    %v2336 = vsel %vm2272, %v2088, %v2304
    %v2337 = vsel %vm2273, %v2090, %v2305
    %v2338 = vsel %vm2274, %v2234, %v2306
    %v2339 = vsel %vm2275, %v2236, %v2307
    %v2340 = vsel %vm2276, %v2092, %v2308
    %v2341 = vsel %vm2277, %v2094, %v2309
    %v2342 = vsel %vm2278, %v2238, %v2310
    %v2343 = vsel %vm2279, %v2240, %v2311
    %v2344 = vsel %vm2280, %v2098, %v2312
    %v2345 = vsel %vm2281, %v2100, %v2313
    %v2346 = vsel %vm2282, %v2244, %v2314
    %v2347 = vsel %vm2283, %v2246, %v2315
    %v2348 = vsel %vm2284, %v2102, %v2316
    %v2349 = vsel %vm2285, %v2104, %v2317
    %v2350 = vsel %vm2286, %v2248, %v2318
    %v2351 = vsel %vm2287, %v2250, %v2319
    %v2352 = vsel %vm2288, %v2108, %v2320
    %v2353 = vsel %vm2289, %v2110, %v2321
    %v2354 = vsel %vm2290, %v2254, %v2322
    %v2355 = vsel %vm2291, %v2256, %v2323
    %v2356 = vsel %vm2292, %v2112, %v2324
    %v2357 = vsel %vm2293, %v2114, %v2325
    %v2358 = vsel %vm2294, %v2258, %v2326
    %v2359 = vsel %vm2295, %v2260, %v2327
    %v2360 = vsel %vm2296, %v2118, %v2328
    %v2361 = vsel %vm2297, %v2120, %v2329
    %v2362 = vsel %vm2298, %v2264, %v2330
    %v2363 = vsel %vm2299, %v2266, %v2331
    %v2364 = vsel %vm2300, %v2122, %v2332
    %v2365 = vsel %vm2301, %v2124, %v2333
    %v2366 = vsel %vm2302, %v2268, %v2334
    %v2367 = vsel %vm2303, %v2270, %v2335
    %v2368 = vld [vmem:[#allocation7] sm:$0xff]
    %v2369 = vld [vmem:[#allocation7 + $0x8] sm:$0xf]
    %v2370 = vld [vmem:[#allocation7 + $0xc] sm:$0xff]
    %v2371 = vld [vmem:[#allocation7 + $0x14] sm:$0xf]
    %v2372 = vld [vmem:[#allocation7 + $0x18] sm:$0xff]
    %v2373 = vld [vmem:[#allocation7 + $0x20] sm:$0xf]
    %v2374 = vld [vmem:[#allocation7 + $0x24] sm:$0xff]
    %v2375 = vld [vmem:[#allocation7 + $0x2c] sm:$0xf]
    %v2376 = vld [vmem:[#allocation7 + $0x30] sm:$0xff]
    %v2377 = vld [vmem:[#allocation7 + $0x38] sm:$0xf]
    %v2378 = vld [vmem:[#allocation7 + $0x3c] sm:$0xff]
    %v2379 = vld [vmem:[#allocation7 + $0x44] sm:$0xf]
    %v2380 = vld [vmem:[#allocation7 + $0x48] sm:$0xff]
    %v2381 = vld [vmem:[#allocation7 + $0x50] sm:$0xf]
    %v2382 = vld [vmem:[#allocation7 + $0x54] sm:$0xff]
    %v2383 = vld [vmem:[#allocation7 + $0x5c] sm:$0xf]
    %v2384 = vld [vmem:[#allocation7 + $0x60] sm:$0xff]
    %v2385 = vld [vmem:[#allocation7 + $0x68] sm:$0xf]
    %v2386 = vld [vmem:[#allocation7 + $0x6c] sm:$0xff]
    %v2387 = vld [vmem:[#allocation7 + $0x74] sm:$0xf]
    %v2388 = vld [vmem:[#allocation7 + $0x78] sm:$0xff]
    %v2389 = vld [vmem:[#allocation7 + $0x80] sm:$0xf]
    %v2390 = vld [vmem:[#allocation7 + $0x84] sm:$0xff]
    %v2391 = vld [vmem:[#allocation7 + $0x8c] sm:$0xf]
    %v2392 = vld [vmem:[#allocation7 + $0x90] sm:$0xff]
    %v2393 = vld [vmem:[#allocation7 + $0x98] sm:$0xf]
    %v2394 = vld [vmem:[#allocation7 + $0x9c] sm:$0xff]
    %v2395 = vld [vmem:[#allocation7 + $0xa4] sm:$0xf]
    %v2396 = vld [vmem:[#allocation7 + $0xa8] sm:$0xff]
    %v2397 = vld [vmem:[#allocation7 + $0xb0] sm:$0xf]
    %v2398 = vld [vmem:[#allocation7 + $0xb4] sm:$0xff]
    %v2399 = vld [vmem:[#allocation7 + $0xbc] sm:$0xf]
    %v2400 = vld [vmem:[#allocation7 + $0xc0] sm:$0xff]
    %v2401 = vld [vmem:[#allocation7 + $0xc8] sm:$0xf]
    %v2402 = vld [vmem:[#allocation7 + $0xcc] sm:$0xff]
    %v2403 = vld [vmem:[#allocation7 + $0xd4] sm:$0xf]
    %v2404 = vld [vmem:[#allocation7 + $0xd8] sm:$0xff]
    %v2405 = vld [vmem:[#allocation7 + $0xe0] sm:$0xf]
    %v2406 = vld [vmem:[#allocation7 + $0xe4] sm:$0xff]
    %v2407 = vld [vmem:[#allocation7 + $0xec] sm:$0xf]
    %v2408 = vld [vmem:[#allocation7 + $0xf0] sm:$0xff]
    %v2409 = vld [vmem:[#allocation7 + $0xf8] sm:$0xf]
    %v2410 = vld [vmem:[#allocation7 + $0xfc] sm:$0xff]
    %v2411 = vld [vmem:[#allocation7 + $0x104] sm:$0xf]
    %v2412 = vld [vmem:[#allocation7 + $0x108] sm:$0xff]
    %v2413 = vld [vmem:[#allocation7 + $0x110] sm:$0xf]
    %v2414 = vld [vmem:[#allocation7 + $0x114] sm:$0xff]
    %v2415 = vld [vmem:[#allocation7 + $0x11c] sm:$0xf]
    %v2416 = vld [vmem:[#allocation7 + $0x120] sm:$0xff]
    %v2417 = vld [vmem:[#allocation7 + $0x128] sm:$0xf]
    %v2418 = vld [vmem:[#allocation7 + $0x12c] sm:$0xff]
    %v2419 = vld [vmem:[#allocation7 + $0x134] sm:$0xf]
    %v2420 = vld [vmem:[#allocation7 + $0x138] sm:$0xff]
    %v2421 = vld [vmem:[#allocation7 + $0x140] sm:$0xf]
    %v2422 = vld [vmem:[#allocation7 + $0x144] sm:$0xff]
    %v2423 = vld [vmem:[#allocation7 + $0x14c] sm:$0xf]
    %v2424 = vld [vmem:[#allocation7 + $0x150] sm:$0xff]
    %v2425 = vld [vmem:[#allocation7 + $0x158] sm:$0xf]
    %v2426 = vld [vmem:[#allocation7 + $0x15c] sm:$0xff]
    %v2427 = vld [vmem:[#allocation7 + $0x164] sm:$0xf]
    %v2428 = vld [vmem:[#allocation7 + $0x168] sm:$0xff]
    %v2429 = vld [vmem:[#allocation7 + $0x170] sm:$0xf]
    %v2430 = vld [vmem:[#allocation7 + $0x174] sm:$0xff]
    %v2431 = vld [vmem:[#allocation7 + $0x17c] sm:$0xf]
    %v2432 = vld [vmem:[#allocation7 + $0x180] sm:$0xff]
    %v2433 = vld [vmem:[#allocation7 + $0x188] sm:$0xf]
    %v2434 = vld [vmem:[#allocation7 + $0x18c] sm:$0xff]
    %v2435 = vld [vmem:[#allocation7 + $0x194] sm:$0xf]
    %v2436 = vld [vmem:[#allocation7 + $0x198] sm:$0xff]
    %v2437 = vld [vmem:[#allocation7 + $0x1a0] sm:$0xf]
    %v2438 = vld [vmem:[#allocation7 + $0x1a4] sm:$0xff]
    %v2439 = vld [vmem:[#allocation7 + $0x1ac] sm:$0xf]
    %v2440 = vld [vmem:[#allocation7 + $0x1b0] sm:$0xff]
    %v2441 = vld [vmem:[#allocation7 + $0x1b8] sm:$0xf]
    %v2442 = vld [vmem:[#allocation7 + $0x1bc] sm:$0xff]
    %v2443 = vld [vmem:[#allocation7 + $0x1c4] sm:$0xf]
    %v2444 = vld [vmem:[#allocation7 + $0x1c8] sm:$0xff]
    %v2445 = vld [vmem:[#allocation7 + $0x1d0] sm:$0xf]
    %v2446 = vld [vmem:[#allocation7 + $0x1d4] sm:$0xff]
    %v2447 = vld [vmem:[#allocation7 + $0x1dc] sm:$0xf]
    %v2448 = vld [vmem:[#allocation7 + $0x1e0] sm:$0xff]
    %v2449 = vld [vmem:[#allocation7 + $0x1e8] sm:$0xf]
    %v2450 = vld [vmem:[#allocation7 + $0x1ec] sm:$0xff]
    %v2451 = vld [vmem:[#allocation7 + $0x1f4] sm:$0xf]
    %v2452 = vld [vmem:[#allocation7 + $0x1f8] sm:$0xff]
    %v2453 = vld [vmem:[#allocation7 + $0x200] sm:$0xf]
    %v2454 = vld [vmem:[#allocation7 + $0x204] sm:$0xff]
    %v2455 = vld [vmem:[#allocation7 + $0x20c] sm:$0xf]
    %v2456 = vld [vmem:[#allocation7 + $0x210] sm:$0xff]
    %v2457 = vld [vmem:[#allocation7 + $0x218] sm:$0xf]
    %v2458 = vld [vmem:[#allocation7 + $0x21c] sm:$0xff]
    %v2459 = vld [vmem:[#allocation7 + $0x224] sm:$0xf]
    %v2460 = vld [vmem:[#allocation7 + $0x228] sm:$0xff]
    %v2461 = vld [vmem:[#allocation7 + $0x230] sm:$0xf]
    %v2462 = vld [vmem:[#allocation7 + $0x234] sm:$0xff]
    %v2463 = vld [vmem:[#allocation7 + $0x23c] sm:$0xf]
    %v2464 = vld [vmem:[#allocation7 + $0x240] sm:$0xff]
    %v2465 = vld [vmem:[#allocation7 + $0x248] sm:$0xf]
    %v2466 = vld [vmem:[#allocation7 + $0x24c] sm:$0xff]
    %v2467 = vld [vmem:[#allocation7 + $0x254] sm:$0xf]
    %v2468 = vld [vmem:[#allocation7 + $0x258] sm:$0xff]
    %v2469 = vld [vmem:[#allocation7 + $0x260] sm:$0xf]
    %v2470 = vld [vmem:[#allocation7 + $0x264] sm:$0xff]
    %v2471 = vld [vmem:[#allocation7 + $0x26c] sm:$0xf]
    %v2472 = vld [vmem:[#allocation7 + $0x270] sm:$0xff]
    %v2473 = vld [vmem:[#allocation7 + $0x278] sm:$0xf]
    %v2474 = vld [vmem:[#allocation7 + $0x27c] sm:$0xff]
    %v2475 = vld [vmem:[#allocation7 + $0x284] sm:$0xf]
    %v2476 = vld [vmem:[#allocation7 + $0x288] sm:$0xff]
    %v2477 = vld [vmem:[#allocation7 + $0x290] sm:$0xf]
    %v2478 = vld [vmem:[#allocation7 + $0x294] sm:$0xff]
    %v2479 = vld [vmem:[#allocation7 + $0x29c] sm:$0xf]
    %v2480 = vld [vmem:[#allocation7 + $0x2a0] sm:$0xff]
    %v2481 = vld [vmem:[#allocation7 + $0x2a8] sm:$0xf]
    %v2482 = vld [vmem:[#allocation7 + $0x2ac] sm:$0xff]
    %v2483 = vld [vmem:[#allocation7 + $0x2b4] sm:$0xf]
    %v2484 = vld [vmem:[#allocation7 + $0x2b8] sm:$0xff]
    %v2485 = vld [vmem:[#allocation7 + $0x2c0] sm:$0xf]
    %v2486 = vld [vmem:[#allocation7 + $0x2c4] sm:$0xff]
    %v2487 = vld [vmem:[#allocation7 + $0x2cc] sm:$0xf]
    %v2488 = vld [vmem:[#allocation7 + $0x2d0] sm:$0xff]
    %v2489 = vld [vmem:[#allocation7 + $0x2d8] sm:$0xf]
    %v2490 = vld [vmem:[#allocation7 + $0x2dc] sm:$0xff]
    %v2491 = vld [vmem:[#allocation7 + $0x2e4] sm:$0xf]
    %v2492 = vld [vmem:[#allocation7 + $0x2e8] sm:$0xff]
    %v2493 = vld [vmem:[#allocation7 + $0x2f0] sm:$0xf]
    %v2494 = vld [vmem:[#allocation7 + $0x2f4] sm:$0xff]
    %v2495 = vld [vmem:[#allocation7 + $0x2fc] sm:$0xf]
    %v2496 = vld [vmem:[%s8] sm:$0x7]
    %v2497 = vpack.c.bf16 %v2340, %v2336
    %v2498 = vpack.c.bf16 %v2341, %v2337
    %v2499 = vpack.c.bf16 %v2342, %v2338
    %v2500 = vpack.c.bf16 %v2343, %v2339
    %v2501 = vpack.c.bf16 %v2348, %v2344
    %v2502 = vpack.c.bf16 %v2349, %v2345
    %v2503 = vpack.c.bf16 %v2350, %v2346
    %v2504 = vpack.c.bf16 %v2351, %v2347
    %v2505 = vpack.c.bf16 %v2356, %v2352
    %v2506 = vpack.c.bf16 %v2357, %v2353
    %v2507 = vpack.c.bf16 %v2358, %v2354
    %v2508 = vpack.c.bf16 %v2359, %v2355
    %v2509 = vpack.c.bf16 %v2364, %v2360
    %v2510 = vpack.c.bf16 %v2365, %v2361
    %v2511 = vpack.c.bf16 %v2366, %v2362
    %v2512 = vpack.c.bf16 %v2367, %v2363
    %v2514 = vlaneseq
    %v2515 = vshrl.u32 %v2514, 7
    %v2516 = vsub.s32 0, %v2515
    %v2517 = vrot.slane %v2496, %v2516
    %v2518 = vlaneseq
    %v2519 = vshrl.u32 %v2518, 7
    %v2520 = vsub.s32 1, %v2519
    %v2521 = vrot.slane %v2496, %v2520
    %v2522 = vlaneseq
    %v2523 = vshrl.u32 %v2522, 7
    %v2524 = vsub.s32 2, %v2523
    %v2525 = vrot.slane %v2496, %v2524
    %v2657 = vunpack.c.l.b16 %v2368
    %v2658 = vunpack.c.h.b16 %v2368
    %v2659 = vunpack.c.l.b16 %v2369
    %v2660 = vunpack.c.l.b16 %v2370
    %v2661 = vunpack.c.h.b16 %v2370
    %v2662 = vunpack.c.l.b16 %v2371
    %v2663 = vunpack.c.l.b16 %v2372
    %v2664 = vunpack.c.h.b16 %v2372
    %v2665 = vunpack.c.l.b16 %v2373
    %v2666 = vunpack.c.l.b16 %v2374
    %v2667 = vunpack.c.h.b16 %v2374
    %v2668 = vunpack.c.l.b16 %v2375
    %v2669 = vunpack.c.l.b16 %v2376
    %v2670 = vunpack.c.h.b16 %v2376
    %v2671 = vunpack.c.l.b16 %v2377
    %v2672 = vunpack.c.l.b16 %v2378
    %v2673 = vunpack.c.h.b16 %v2378
    %v2674 = vunpack.c.l.b16 %v2379
    %v2675 = vunpack.c.l.b16 %v2380
    %v2676 = vunpack.c.h.b16 %v2380
    %v2677 = vunpack.c.l.b16 %v2381
    %v2678 = vunpack.c.l.b16 %v2382
    %v2679 = vunpack.c.h.b16 %v2382
    %v2680 = vunpack.c.l.b16 %v2383
    %v2681 = vunpack.c.l.b16 %v2384
    %v2682 = vunpack.c.h.b16 %v2384
    %v2683 = vunpack.c.l.b16 %v2385
    %v2684 = vunpack.c.l.b16 %v2386
    %v2685 = vunpack.c.h.b16 %v2386
    %v2686 = vunpack.c.l.b16 %v2387
    %v2687 = vunpack.c.l.b16 %v2388
    %v2688 = vunpack.c.h.b16 %v2388
    %v2689 = vunpack.c.l.b16 %v2389
    %v2690 = vunpack.c.l.b16 %v2390
    %v2691 = vunpack.c.h.b16 %v2390
    %v2692 = vunpack.c.l.b16 %v2391
    %v2693 = vunpack.c.l.b16 %v2392
    %v2694 = vunpack.c.h.b16 %v2392
    %v2695 = vunpack.c.l.b16 %v2393
    %v2696 = vunpack.c.l.b16 %v2394
    %v2697 = vunpack.c.h.b16 %v2394
    %v2698 = vunpack.c.l.b16 %v2395
    %v2699 = vunpack.c.l.b16 %v2396
    %v2700 = vunpack.c.h.b16 %v2396
    %v2701 = vunpack.c.l.b16 %v2397
    %v2702 = vunpack.c.l.b16 %v2398
    %v2703 = vunpack.c.h.b16 %v2398
    %v2704 = vunpack.c.l.b16 %v2399
    %v2705 = vunpack.c.l.b16 %v2400
    %v2706 = vunpack.c.h.b16 %v2400
    %v2707 = vunpack.c.l.b16 %v2401
    %v2708 = vunpack.c.l.b16 %v2402
    %v2709 = vunpack.c.h.b16 %v2402
    %v2710 = vunpack.c.l.b16 %v2403
    %v2711 = vunpack.c.l.b16 %v2404
    %v2712 = vunpack.c.h.b16 %v2404
    %v2713 = vunpack.c.l.b16 %v2405
    %v2714 = vunpack.c.l.b16 %v2406
    %v2715 = vunpack.c.h.b16 %v2406
    %v2716 = vunpack.c.l.b16 %v2407
    %v2717 = vunpack.c.l.b16 %v2408
    %v2718 = vunpack.c.h.b16 %v2408
    %v2719 = vunpack.c.l.b16 %v2409
    %v2720 = vunpack.c.l.b16 %v2410
    %v2721 = vunpack.c.h.b16 %v2410
    %v2722 = vunpack.c.l.b16 %v2411
    %v2723 = vunpack.c.l.b16 %v2412
    %v2724 = vunpack.c.h.b16 %v2412
    %v2725 = vunpack.c.l.b16 %v2413
    %v2726 = vunpack.c.l.b16 %v2414
    %v2727 = vunpack.c.h.b16 %v2414
    %v2728 = vunpack.c.l.b16 %v2415
    %v2729 = vunpack.c.l.b16 %v2416
    %v2730 = vunpack.c.h.b16 %v2416
    %v2731 = vunpack.c.l.b16 %v2417
    %v2732 = vunpack.c.l.b16 %v2418
    %v2733 = vunpack.c.h.b16 %v2418
    %v2734 = vunpack.c.l.b16 %v2419
    %v2735 = vunpack.c.l.b16 %v2420
    %v2736 = vunpack.c.h.b16 %v2420
    %v2737 = vunpack.c.l.b16 %v2421
    %v2738 = vunpack.c.l.b16 %v2422
    %v2739 = vunpack.c.h.b16 %v2422
    %v2740 = vunpack.c.l.b16 %v2423
    %v2741 = vunpack.c.l.b16 %v2424
    %v2742 = vunpack.c.h.b16 %v2424
    %v2743 = vunpack.c.l.b16 %v2425
    %v2744 = vunpack.c.l.b16 %v2426
    %v2745 = vunpack.c.h.b16 %v2426
    %v2746 = vunpack.c.l.b16 %v2427
    %v2747 = vunpack.c.l.b16 %v2428
    %v2748 = vunpack.c.h.b16 %v2428
    %v2749 = vunpack.c.l.b16 %v2429
    %v2750 = vunpack.c.l.b16 %v2430
    %v2751 = vunpack.c.h.b16 %v2430
    %v2752 = vunpack.c.l.b16 %v2431
    %v2753 = vunpack.c.l.b16 %v2432
    %v2754 = vunpack.c.h.b16 %v2432
    %v2755 = vunpack.c.l.b16 %v2433
    %v2756 = vunpack.c.l.b16 %v2434
    %v2757 = vunpack.c.h.b16 %v2434
    %v2758 = vunpack.c.l.b16 %v2435
    %v2759 = vunpack.c.l.b16 %v2436
    %v2760 = vunpack.c.h.b16 %v2436
    %v2761 = vunpack.c.l.b16 %v2437
    %v2762 = vunpack.c.l.b16 %v2438
    %v2763 = vunpack.c.h.b16 %v2438
    %v2764 = vunpack.c.l.b16 %v2439
    %v2765 = vunpack.c.l.b16 %v2440
    %v2766 = vunpack.c.h.b16 %v2440
    %v2767 = vunpack.c.l.b16 %v2441
    %v2768 = vunpack.c.l.b16 %v2442
    %v2769 = vunpack.c.h.b16 %v2442
    %v2770 = vunpack.c.l.b16 %v2443
    %v2771 = vunpack.c.l.b16 %v2444
    %v2772 = vunpack.c.h.b16 %v2444
    %v2773 = vunpack.c.l.b16 %v2445
    %v2774 = vunpack.c.l.b16 %v2446
    %v2775 = vunpack.c.h.b16 %v2446
    %v2776 = vunpack.c.l.b16 %v2447
    %v2777 = vunpack.c.l.b16 %v2448
    %v2778 = vunpack.c.h.b16 %v2448
    %v2779 = vunpack.c.l.b16 %v2449
    %v2780 = vunpack.c.l.b16 %v2450
    %v2781 = vunpack.c.h.b16 %v2450
    %v2782 = vunpack.c.l.b16 %v2451
    %v2783 = vunpack.c.l.b16 %v2452
    %v2784 = vunpack.c.h.b16 %v2452
    %v2785 = vunpack.c.l.b16 %v2453
    %v2786 = vunpack.c.l.b16 %v2454
    %v2787 = vunpack.c.h.b16 %v2454
    %v2788 = vunpack.c.l.b16 %v2455
    %v2789 = vunpack.c.l.b16 %v2456
    %v2790 = vunpack.c.h.b16 %v2456
    %v2791 = vunpack.c.l.b16 %v2457
    %v2792 = vunpack.c.l.b16 %v2458
    %v2793 = vunpack.c.h.b16 %v2458
    %v2794 = vunpack.c.l.b16 %v2459
    %v2795 = vunpack.c.l.b16 %v2460
    %v2796 = vunpack.c.h.b16 %v2460
    %v2797 = vunpack.c.l.b16 %v2461
    %v2798 = vunpack.c.l.b16 %v2462
    %v2799 = vunpack.c.h.b16 %v2462
    %v2800 = vunpack.c.l.b16 %v2463
    %v2801 = vunpack.c.l.b16 %v2464
    %v2802 = vunpack.c.h.b16 %v2464
    %v2803 = vunpack.c.l.b16 %v2465
    %v2804 = vunpack.c.l.b16 %v2466
    %v2805 = vunpack.c.h.b16 %v2466
    %v2806 = vunpack.c.l.b16 %v2467
    %v2807 = vunpack.c.l.b16 %v2468
    %v2808 = vunpack.c.h.b16 %v2468
    %v2809 = vunpack.c.l.b16 %v2469
    %v2810 = vunpack.c.l.b16 %v2470
    %v2811 = vunpack.c.h.b16 %v2470
    %v2812 = vunpack.c.l.b16 %v2471
    %v2813 = vunpack.c.l.b16 %v2472
    %v2814 = vunpack.c.h.b16 %v2472
    %v2815 = vunpack.c.l.b16 %v2473
    %v2816 = vunpack.c.l.b16 %v2474
    %v2817 = vunpack.c.h.b16 %v2474
    %v2818 = vunpack.c.l.b16 %v2475
    %v2819 = vunpack.c.l.b16 %v2476
    %v2820 = vunpack.c.h.b16 %v2476
    %v2821 = vunpack.c.l.b16 %v2477
    %v2822 = vunpack.c.l.b16 %v2478
    %v2823 = vunpack.c.h.b16 %v2478
    %v2824 = vunpack.c.l.b16 %v2479
    %v2825 = vunpack.c.l.b16 %v2480
    %v2826 = vunpack.c.h.b16 %v2480
    %v2827 = vunpack.c.l.b16 %v2481
    %v2828 = vunpack.c.l.b16 %v2482
    %v2829 = vunpack.c.h.b16 %v2482
    %v2830 = vunpack.c.l.b16 %v2483
    %v2831 = vunpack.c.l.b16 %v2484
    %v2832 = vunpack.c.h.b16 %v2484
    %v2833 = vunpack.c.l.b16 %v2485
    %v2834 = vunpack.c.l.b16 %v2486
    %v2835 = vunpack.c.h.b16 %v2486
    %v2836 = vunpack.c.l.b16 %v2487
    %v2837 = vunpack.c.l.b16 %v2488
    %v2838 = vunpack.c.h.b16 %v2488
    %v2839 = vunpack.c.l.b16 %v2489
    %v2840 = vunpack.c.l.b16 %v2490
    %v2841 = vunpack.c.h.b16 %v2490
    %v2842 = vunpack.c.l.b16 %v2491
    %v2843 = vunpack.c.l.b16 %v2492
    %v2844 = vunpack.c.h.b16 %v2492
    %v2845 = vunpack.c.l.b16 %v2493
    %v2846 = vunpack.c.l.b16 %v2494
    %v2847 = vunpack.c.h.b16 %v2494
    %v2848 = vunpack.c.l.b16 %v2495
    %v2849 = vpack.c.b16 %v2660, %v2657
    %v2850 = vpack.c.b16 %v2661, %v2658
    %v2851 = vpack.c.b16 %v2662, %v2659
    %v2852 = vpack.c.b16 %v2666, %v2663
    %v2853 = vpack.c.b16 %v2667, %v2664
    %v2854 = vpack.c.b16 %v2668, %v2665
    %v2855 = vpack.c.b16 %v2672, %v2669
    %v2856 = vpack.c.b16 %v2673, %v2670
    %v2857 = vpack.c.b16 %v2674, %v2671
    %v2858 = vpack.c.b16 %v2678, %v2675
    %v2859 = vpack.c.b16 %v2679, %v2676
    %v2860 = vpack.c.b16 %v2680, %v2677
    %v2861 = vpack.c.b16 %v2684, %v2681
    %v2862 = vpack.c.b16 %v2685, %v2682
    %v2863 = vpack.c.b16 %v2686, %v2683
    %v2864 = vpack.c.b16 %v2690, %v2687
    %v2865 = vpack.c.b16 %v2691, %v2688
    %v2866 = vpack.c.b16 %v2692, %v2689
    %v2867 = vpack.c.b16 %v2696, %v2693
    %v2868 = vpack.c.b16 %v2697, %v2694
    %v2869 = vpack.c.b16 %v2698, %v2695
    %v2870 = vpack.c.b16 %v2702, %v2699
    %v2871 = vpack.c.b16 %v2703, %v2700
    %v2872 = vpack.c.b16 %v2704, %v2701
    %v2873 = vpack.c.b16 %v2708, %v2705
    %v2874 = vpack.c.b16 %v2709, %v2706
    %v2875 = vpack.c.b16 %v2710, %v2707
    %v2876 = vpack.c.b16 %v2714, %v2711
    %v2877 = vpack.c.b16 %v2715, %v2712
    %v2878 = vpack.c.b16 %v2716, %v2713
    %v2879 = vpack.c.b16 %v2720, %v2717
    %v2880 = vpack.c.b16 %v2721, %v2718
    %v2881 = vpack.c.b16 %v2722, %v2719
    %v2882 = vpack.c.b16 %v2726, %v2723
    %v2883 = vpack.c.b16 %v2727, %v2724
    %v2884 = vpack.c.b16 %v2728, %v2725
    %v2885 = vpack.c.b16 %v2732, %v2729
    %v2886 = vpack.c.b16 %v2733, %v2730
    %v2887 = vpack.c.b16 %v2734, %v2731
    %v2888 = vpack.c.b16 %v2738, %v2735
    %v2889 = vpack.c.b16 %v2739, %v2736
    %v2890 = vpack.c.b16 %v2740, %v2737
    %v2891 = vpack.c.b16 %v2744, %v2741
    %v2892 = vpack.c.b16 %v2745, %v2742
    %v2893 = vpack.c.b16 %v2746, %v2743
    %v2894 = vpack.c.b16 %v2750, %v2747
    %v2895 = vpack.c.b16 %v2751, %v2748
    %v2896 = vpack.c.b16 %v2752, %v2749
    %v2897 = vpack.c.b16 %v2756, %v2753
    %v2898 = vpack.c.b16 %v2757, %v2754
    %v2899 = vpack.c.b16 %v2758, %v2755
    %v2900 = vpack.c.b16 %v2762, %v2759
    %v2901 = vpack.c.b16 %v2763, %v2760
    %v2902 = vpack.c.b16 %v2764, %v2761
    %v2903 = vpack.c.b16 %v2768, %v2765
    %v2904 = vpack.c.b16 %v2769, %v2766
    %v2905 = vpack.c.b16 %v2770, %v2767
    %v2906 = vpack.c.b16 %v2774, %v2771
    %v2907 = vpack.c.b16 %v2775, %v2772
    %v2908 = vpack.c.b16 %v2776, %v2773
    %v2909 = vpack.c.b16 %v2780, %v2777
    %v2910 = vpack.c.b16 %v2781, %v2778
    %v2911 = vpack.c.b16 %v2782, %v2779
    %v2912 = vpack.c.b16 %v2786, %v2783
    %v2913 = vpack.c.b16 %v2787, %v2784
    %v2914 = vpack.c.b16 %v2788, %v2785
    %v2915 = vpack.c.b16 %v2792, %v2789
    %v2916 = vpack.c.b16 %v2793, %v2790
    %v2917 = vpack.c.b16 %v2794, %v2791
    %v2918 = vpack.c.b16 %v2798, %v2795
    %v2919 = vpack.c.b16 %v2799, %v2796
    %v2920 = vpack.c.b16 %v2800, %v2797
    %v2921 = vpack.c.b16 %v2804, %v2801
    %v2922 = vpack.c.b16 %v2805, %v2802
    %v2923 = vpack.c.b16 %v2806, %v2803
    %v2924 = vpack.c.b16 %v2810, %v2807
    %v2925 = vpack.c.b16 %v2811, %v2808
    %v2926 = vpack.c.b16 %v2812, %v2809
    %v2927 = vpack.c.b16 %v2816, %v2813
    %v2928 = vpack.c.b16 %v2817, %v2814
    %v2929 = vpack.c.b16 %v2818, %v2815
    %v2930 = vpack.c.b16 %v2822, %v2819
    %v2931 = vpack.c.b16 %v2823, %v2820
    %v2932 = vpack.c.b16 %v2824, %v2821
    %v2933 = vpack.c.b16 %v2828, %v2825
    %v2934 = vpack.c.b16 %v2829, %v2826
    %v2935 = vpack.c.b16 %v2830, %v2827
    %v2936 = vpack.c.b16 %v2834, %v2831
    %v2937 = vpack.c.b16 %v2835, %v2832
    %v2938 = vpack.c.b16 %v2836, %v2833
    %v2939 = vpack.c.b16 %v2840, %v2837
    %v2940 = vpack.c.b16 %v2841, %v2838
    %v2941 = vpack.c.b16 %v2842, %v2839
    %v2942 = vpack.c.b16 %v2846, %v2843
    %v2943 = vpack.c.b16 %v2847, %v2844
    %v2944 = vpack.c.b16 %v2848, %v2845
    %3041 = vmatprep.subr.bf16.mxu0 %v2850
    %3042 = vmatpush1.bf16.msra.mxu0 %v2849
    %3043 = vmatprep.subr.bf16.mxu0 %v2853
    %3044 = vmatpush1.bf16.msra.mxu0 %v2852
    %3045 = vmatprep.subr.bf16.mxu0 %v2856
    %3046 = vmatpush1.bf16.msra.mxu0 %v2855
    %3047 = vmatprep.subr.bf16.mxu0 %v2859
    %3048 = vmatpush1.bf16.msra.mxu0 %v2858
    %3049 = vmatprep.subr.bf16.mxu0 %v2862
    %3050 = vmatpush1.bf16.msra.mxu0 %v2861
    %3051 = vmatprep.subr.bf16.mxu0 %v2865
    %3052 = vmatpush1.bf16.msra.mxu0 %v2864
    %3053 = vmatprep.subr.bf16.mxu0 %v2868
    %3054 = vmatpush1.bf16.msra.mxu0 %v2867
    %3055 = vmatprep.subr.bf16.mxu0 %v2871
    %3056 = vmatpush1.bf16.msra.mxu0 %v2870
    %3057 = vmatprep.subr.bf16.mxu0 %v2874
    %3058 = vmatpush1.bf16.msra.mxu0 %v2873
    %3059 = vmatprep.subr.bf16.mxu0 %v2877
    %3060 = vmatpush1.bf16.msra.mxu0 %v2876
    %3061 = vmatprep.subr.bf16.mxu0 %v2880
    %3062 = vmatpush1.bf16.msra.mxu0 %v2879
    %3063 = vmatprep.subr.bf16.mxu0 %v2883
    %3064 = vmatpush1.bf16.msra.mxu0 %v2882
    %3065 = vmatprep.subr.bf16.mxu0 %v2886
    %3066 = vmatpush1.bf16.msra.mxu0 %v2885
    %3067 = vmatprep.subr.bf16.mxu0 %v2889
    %3068 = vmatpush1.bf16.msra.mxu0 %v2888
    %3069 = vmatprep.subr.bf16.mxu0 %v2892
    %3070 = vmatpush1.bf16.msra.mxu0 %v2891
    %3071 = vmatprep.subr.bf16.mxu0 %v2895
    %3072 = vmatpush1.bf16.msra.mxu0 %v2894
    %3073 = vmatprep.mubr.bf16.mxu0 %v2498
    %3074 = vmatmul.mubr.bf16.gmra.mrb[0].mxu0 %v2497
    %v3075 = vpop.f32.mrb[0].mxu0
    %v3076 = vadd.f32 %v2517, %v3075
    %v3077 = vpop.f32.mrb[0].mxu0
    %v3078 = vadd.f32 %v2521, %v3077
    %v3079 = vpop.f32.mrb[0].mxu0
    %v3080 = vadd.f32 %v2517, %v3079
    %v3081 = vpop.f32.mrb[0].mxu0
    %v3082 = vadd.f32 %v2521, %v3081
    %3083 = vmatprep.mubr.bf16.mxu0 %v2502
    %3084 = vmatmul.mubr.bf16.gmra.mrb[0].mxu0 %v2501
    %v3085 = vpop.f32.mrb[0].mxu0
    %v3086 = vadd.f32 %v2517, %v3085
    %v3087 = vpop.f32.mrb[0].mxu0
    %v3088 = vadd.f32 %v2521, %v3087
    %v3089 = vpop.f32.mrb[0].mxu0
    %v3090 = vadd.f32 %v2517, %v3089
    %v3091 = vpop.f32.mrb[0].mxu0
    %v3092 = vadd.f32 %v2521, %v3091
    %3093 = vmatprep.mubr.bf16.mxu0 %v2506
    %3094 = vmatmul.mubr.bf16.gmra.mrb[0].mxu0 %v2505
    %v3095 = vpop.f32.mrb[0].mxu0
    %v3096 = vadd.f32 %v2517, %v3095
    %v3097 = vpop.f32.mrb[0].mxu0
    %v3098 = vadd.f32 %v2521, %v3097
    %v3099 = vpop.f32.mrb[0].mxu0
    %v3100 = vadd.f32 %v2517, %v3099
    %v3101 = vpop.f32.mrb[0].mxu0
    %v3102 = vadd.f32 %v2521, %v3101
    %3103 = vmatprep.mubr.bf16.mxu0 %v2510
    %3104 = vmatmul.mubr.bf16.gmra.mrb[0].mxu0 %v2509
    %v3105 = vpop.f32.mrb[0].mxu0
    %v3106 = vadd.f32 %v2517, %v3105
    %v3107 = vpop.f32.mrb[0].mxu0
    %v3108 = vadd.f32 %v2521, %v3107
    %v3109 = vpop.f32.mrb[0].mxu0
    %v3110 = vadd.f32 %v2517, %v3109
    %v3111 = vpop.f32.mrb[0].mxu0
    %v3112 = vadd.f32 %v2521, %v3111
    %3113 = vdwg.mxu0
    %3114 = vmatprep.subr.bf16.mxu0 %v2898
    %3115 = vmatpush1.bf16.msra.mxu0 %v2897
    %3116 = vmatprep.subr.bf16.mxu0 %v2901
    %3117 = vmatpush1.bf16.msra.mxu0 %v2900
    %3118 = vmatprep.subr.bf16.mxu0 %v2904
    %3119 = vmatpush1.bf16.msra.mxu0 %v2903
    %3120 = vmatprep.subr.bf16.mxu0 %v2907
    %3121 = vmatpush1.bf16.msra.mxu0 %v2906
    %3122 = vmatprep.subr.bf16.mxu0 %v2910
    %3123 = vmatpush1.bf16.msra.mxu0 %v2909
    %3124 = vmatprep.subr.bf16.mxu0 %v2913
    %3125 = vmatpush1.bf16.msra.mxu0 %v2912
    %3126 = vmatprep.subr.bf16.mxu0 %v2916
    %3127 = vmatpush1.bf16.msra.mxu0 %v2915
    %3128 = vmatprep.subr.bf16.mxu0 %v2919
    %3129 = vmatpush1.bf16.msra.mxu0 %v2918
    %3130 = vmatprep.subr.bf16.mxu0 %v2922
    %3131 = vmatpush1.bf16.msra.mxu0 %v2921
    %3132 = vmatprep.subr.bf16.mxu0 %v2925
    %3133 = vmatpush1.bf16.msra.mxu0 %v2924
    %3134 = vmatprep.subr.bf16.mxu0 %v2928
    %3135 = vmatpush1.bf16.msra.mxu0 %v2927
    %3136 = vmatprep.subr.bf16.mxu0 %v2931
    %3137 = vmatpush1.bf16.msra.mxu0 %v2930
    %3138 = vmatprep.subr.bf16.mxu0 %v2934
    %3139 = vmatpush1.bf16.msra.mxu0 %v2933
    %3140 = vmatprep.subr.bf16.mxu0 %v2937
    %3141 = vmatpush1.bf16.msra.mxu0 %v2936
    %3142 = vmatprep.subr.bf16.mxu0 %v2940
    %3143 = vmatpush1.bf16.msra.mxu0 %v2939
    %3144 = vmatprep.subr.bf16.mxu0 %v2943
    %3145 = vmatpush1.bf16.msra.mxu0 %v2942
    %3146 = vmatprep.mubr.bf16.mxu0 %v2500
    %3147 = vmatmul.mubr.bf16.gmra.mrb[0].mxu0 %v2499
    %v3148 = vpop.f32.mrb[0].mxu0
    %v3149 = vadd.f32 %v3076, %v3148
    %v3150 = vpop.f32.mrb[0].mxu0
    %v3151 = vadd.f32 %v3078, %v3150
    %v3152 = vpop.f32.mrb[0].mxu0
    %v3153 = vadd.f32 %v3080, %v3152
    %v3154 = vpop.f32.mrb[0].mxu0
    %v3155 = vadd.f32 %v3082, %v3154
    %3156 = vmatprep.mubr.bf16.mxu0 %v2504
    %3157 = vmatmul.mubr.bf16.gmra.mrb[0].mxu0 %v2503
    %v3158 = vpop.f32.mrb[0].mxu0
    %v3159 = vadd.f32 %v3086, %v3158
    %v3160 = vpop.f32.mrb[0].mxu0
    %v3161 = vadd.f32 %v3088, %v3160
    %v3162 = vpop.f32.mrb[0].mxu0
    %v3163 = vadd.f32 %v3090, %v3162
    %v3164 = vpop.f32.mrb[0].mxu0
    %v3165 = vadd.f32 %v3092, %v3164
    %3166 = vmatprep.mubr.bf16.mxu0 %v2508
    %3167 = vmatmul.mubr.bf16.gmra.mrb[0].mxu0 %v2507
    %v3168 = vpop.f32.mrb[0].mxu0
    %v3169 = vadd.f32 %v3096, %v3168
    %v3170 = vpop.f32.mrb[0].mxu0
    %v3171 = vadd.f32 %v3098, %v3170
    %v3172 = vpop.f32.mrb[0].mxu0
    %v3173 = vadd.f32 %v3100, %v3172
    %v3174 = vpop.f32.mrb[0].mxu0
    %v3175 = vadd.f32 %v3102, %v3174
    %3176 = vmatprep.mubr.bf16.mxu0 %v2512
    %3177 = vmatmul.mubr.bf16.gmra.mrb[0].mxu0 %v2511
    %v3178 = vpop.f32.mrb[0].mxu0
    %v3179 = vadd.f32 %v3106, %v3178
    %v3180 = vpop.f32.mrb[0].mxu0
    %v3181 = vadd.f32 %v3108, %v3180
    %v3182 = vpop.f32.mrb[0].mxu0
    %v3183 = vadd.f32 %v3110, %v3182
    %v3184 = vpop.f32.mrb[0].mxu0
    %v3185 = vadd.f32 %v3112, %v3184
    %3186 = vdwg.mxu0
    %3187 = vmatprep.subr.bf16.mxu0 0
    %3188 = vmatpush1.bf16.msra.mxu0 %v2851
    %3189 = vmatprep.subr.bf16.mxu0 0
    %3190 = vmatpush1.bf16.msra.mxu0 %v2854
    %3191 = vmatprep.subr.bf16.mxu0 0
    %3192 = vmatpush1.bf16.msra.mxu0 %v2857
    %3193 = vmatprep.subr.bf16.mxu0 0
    %3194 = vmatpush1.bf16.msra.mxu0 %v2860
    %3195 = vmatprep.subr.bf16.mxu0 0
    %3196 = vmatpush1.bf16.msra.mxu0 %v2863
    %3197 = vmatprep.subr.bf16.mxu0 0
    %3198 = vmatpush1.bf16.msra.mxu0 %v2866
    %3199 = vmatprep.subr.bf16.mxu0 0
    %3200 = vmatpush1.bf16.msra.mxu0 %v2869
    %3201 = vmatprep.subr.bf16.mxu0 0
    %3202 = vmatpush1.bf16.msra.mxu0 %v2872
    %3203 = vmatprep.subr.bf16.mxu0 0
    %3204 = vmatpush1.bf16.msra.mxu0 %v2875
    %3205 = vmatprep.subr.bf16.mxu0 0
    %3206 = vmatpush1.bf16.msra.mxu0 %v2878
    %3207 = vmatprep.subr.bf16.mxu0 0
    %3208 = vmatpush1.bf16.msra.mxu0 %v2881
    %3209 = vmatprep.subr.bf16.mxu0 0
    %3210 = vmatpush1.bf16.msra.mxu0 %v2884
    %3211 = vmatprep.subr.bf16.mxu0 0
    %3212 = vmatpush1.bf16.msra.mxu0 %v2887
    %3213 = vmatprep.subr.bf16.mxu0 0
    %3214 = vmatpush1.bf16.msra.mxu0 %v2890
    %3215 = vmatprep.subr.bf16.mxu0 0
    %3216 = vmatpush1.bf16.msra.mxu0 %v2893
    %3217 = vmatprep.subr.bf16.mxu0 0
    %3218 = vmatpush1.bf16.msra.mxu0 %v2896
    %3219 = vmatprep.mubr.bf16.mxu0 %v2498
    %3220 = vmatmul.mubr.bf16.gmra.mrb[0].mxu0 %v2497
    %v3221 = vpop.f32.mrb[0].mxu0
    %v3222 = vadd.f32 %v2525, %v3221
    %v3223 = vpop.f32.mrb[0].mxu0
    %v3224 = vpop.f32.mrb[0].mxu0
    %v3225 = vadd.f32 %v2525, %v3224
    %v3226 = vpop.f32.mrb[0].mxu0
    %3227 = vmatprep.mubr.bf16.mxu0 %v2502
    %3228 = vmatmul.mubr.bf16.gmra.mrb[0].mxu0 %v2501
    %v3229 = vpop.f32.mrb[0].mxu0
    %v3230 = vadd.f32 %v2525, %v3229
    %v3231 = vpop.f32.mrb[0].mxu0
    %v3232 = vpop.f32.mrb[0].mxu0
    %v3233 = vadd.f32 %v2525, %v3232
    %v3234 = vpop.f32.mrb[0].mxu0
    %3235 = vmatprep.mubr.bf16.mxu0 %v2506
    %3236 = vmatmul.mubr.bf16.gmra.mrb[0].mxu0 %v2505
    %v3237 = vpop.f32.mrb[0].mxu0
    %v3238 = vadd.f32 %v2525, %v3237
    %v3239 = vpop.f32.mrb[0].mxu0
    %v3240 = vpop.f32.mrb[0].mxu0
    %v3241 = vadd.f32 %v2525, %v3240
    %v3242 = vpop.f32.mrb[0].mxu0
    %3243 = vmatprep.mubr.bf16.mxu0 %v2510
    %3244 = vmatmul.mubr.bf16.gmra.mrb[0].mxu0 %v2509
    %v3245 = vpop.f32.mrb[0].mxu0
    %v3246 = vadd.f32 %v2525, %v3245
    %v3247 = vpop.f32.mrb[0].mxu0
    %v3248 = vpop.f32.mrb[0].mxu0
    %v3249 = vadd.f32 %v2525, %v3248
    %v3250 = vpop.f32.mrb[0].mxu0
    %3251 = vdwg.mxu0
    %3252 = vmatprep.subr.bf16.mxu0 0
    %3253 = vmatpush1.bf16.msra.mxu0 %v2899
    %3254 = vmatprep.subr.bf16.mxu0 0
    %3255 = vmatpush1.bf16.msra.mxu0 %v2902
    %3256 = vmatprep.subr.bf16.mxu0 0
    %3257 = vmatpush1.bf16.msra.mxu0 %v2905
    %3258 = vmatprep.subr.bf16.mxu0 0
    %3259 = vmatpush1.bf16.msra.mxu0 %v2908
    %3260 = vmatprep.subr.bf16.mxu0 0
    %3261 = vmatpush1.bf16.msra.mxu0 %v2911
    %3262 = vmatprep.subr.bf16.mxu0 0
    %3263 = vmatpush1.bf16.msra.mxu0 %v2914
    %3264 = vmatprep.subr.bf16.mxu0 0
    %3265 = vmatpush1.bf16.msra.mxu0 %v2917
    %3266 = vmatprep.subr.bf16.mxu0 0
    %3267 = vmatpush1.bf16.msra.mxu0 %v2920
    %3268 = vmatprep.subr.bf16.mxu0 0
    %3269 = vmatpush1.bf16.msra.mxu0 %v2923
    %3270 = vmatprep.subr.bf16.mxu0 0
    %3271 = vmatpush1.bf16.msra.mxu0 %v2926
    %3272 = vmatprep.subr.bf16.mxu0 0
    %3273 = vmatpush1.bf16.msra.mxu0 %v2929
    %3274 = vmatprep.subr.bf16.mxu0 0
    %3275 = vmatpush1.bf16.msra.mxu0 %v2932
    %3276 = vmatprep.subr.bf16.mxu0 0
    %3277 = vmatpush1.bf16.msra.mxu0 %v2935
    %3278 = vmatprep.subr.bf16.mxu0 0
    %3279 = vmatpush1.bf16.msra.mxu0 %v2938
    %3280 = vmatprep.subr.bf16.mxu0 0
    %3281 = vmatpush1.bf16.msra.mxu0 %v2941
    %3282 = vmatprep.subr.bf16.mxu0 0
    %3283 = vmatpush1.bf16.msra.mxu0 %v2944
    %3284 = vmatprep.mubr.bf16.mxu0 %v2500
    %3285 = vmatmul.mubr.bf16.gmra.mrb[0].mxu0 %v2499
    %v3286 = vpop.f32.mrb[0].mxu0
    %v3287 = vadd.f32 %v3222, %v3286
    %v3288 = vpop.f32.mrb[0].mxu0
    %v3289 = vpop.f32.mrb[0].mxu0
    %v3290 = vadd.f32 %v3225, %v3289
    %v3291 = vpop.f32.mrb[0].mxu0
    %3292 = vmatprep.mubr.bf16.mxu0 %v2504
    %3293 = vmatmul.mubr.bf16.gmra.mrb[0].mxu0 %v2503
    %v3294 = vpop.f32.mrb[0].mxu0
    %v3295 = vadd.f32 %v3230, %v3294
    %v3296 = vpop.f32.mrb[0].mxu0
    %v3297 = vpop.f32.mrb[0].mxu0
    %v3298 = vadd.f32 %v3233, %v3297
    %v3299 = vpop.f32.mrb[0].mxu0
    %3300 = vmatprep.mubr.bf16.mxu0 %v2508
    %3301 = vmatmul.mubr.bf16.gmra.mrb[0].mxu0 %v2507
    %v3302 = vpop.f32.mrb[0].mxu0
    %v3303 = vadd.f32 %v3238, %v3302
    %v3304 = vpop.f32.mrb[0].mxu0
    %v3305 = vpop.f32.mrb[0].mxu0
    %v3306 = vadd.f32 %v3241, %v3305
    %v3307 = vpop.f32.mrb[0].mxu0
    %3308 = vmatprep.mubr.bf16.mxu0 %v2512
    %3309 = vmatmul.mubr.bf16.gmra.mrb[0].mxu0 %v2511
    %v3310 = vpop.f32.mrb[0].mxu0
    %v3311 = vadd.f32 %v3246, %v3310
    %v3312 = vpop.f32.mrb[0].mxu0
    %v3313 = vpop.f32.mrb[0].mxu0
    %v3314 = vadd.f32 %v3249, %v3313
    %v3315 = vpop.f32.mrb[0].mxu0
    %3316 = vdwg.mxu0
    %vm3317 = vcmp.ge.f32.partialorder %v3149, 0.0
    %vm3318 = vcmp.ge.f32.partialorder %v3151, 0.0
    %vm3319 = vcmp.ge.f32.partialorder %v3287, 0.0
    %vm3320 = vcmp.ge.f32.partialorder %v3153, 0.0
    %vm3321 = vcmp.ge.f32.partialorder %v3155, 0.0
    %vm3322 = vcmp.ge.f32.partialorder %v3290, 0.0
    %vm3323 = vcmp.ge.f32.partialorder %v3159, 0.0
    %vm3324 = vcmp.ge.f32.partialorder %v3161, 0.0
    %vm3325 = vcmp.ge.f32.partialorder %v3295, 0.0
    %vm3326 = vcmp.ge.f32.partialorder %v3163, 0.0
    %vm3327 = vcmp.ge.f32.partialorder %v3165, 0.0
    %vm3328 = vcmp.ge.f32.partialorder %v3298, 0.0
    %vm3329 = vcmp.ge.f32.partialorder %v3169, 0.0
    %vm3330 = vcmp.ge.f32.partialorder %v3171, 0.0
    %vm3331 = vcmp.ge.f32.partialorder %v3303, 0.0
    %vm3332 = vcmp.ge.f32.partialorder %v3173, 0.0
    %vm3333 = vcmp.ge.f32.partialorder %v3175, 0.0
    %vm3334 = vcmp.ge.f32.partialorder %v3306, 0.0
    %vm3335 = vcmp.ge.f32.partialorder %v3179, 0.0
    %vm3336 = vcmp.ge.f32.partialorder %v3181, 0.0
    %vm3337 = vcmp.ge.f32.partialorder %v3311, 0.0
    %vm3338 = vcmp.ge.f32.partialorder %v3183, 0.0
    %vm3339 = vcmp.ge.f32.partialorder %v3185, 0.0
    %vm3340 = vcmp.ge.f32.partialorder %v3314, 0.0
    %v3341 = vmul.f32 %v3149, 2.0
    %v3342 = vmul.f32 %v3151, 2.0
    %v3343 = vmul.f32 %v3287, 2.0
    %v3344 = vmul.f32 %v3153, 2.0
    %v3345 = vmul.f32 %v3155, 2.0
    %v3346 = vmul.f32 %v3290, 2.0
    %v3347 = vmul.f32 %v3159, 2.0
    %v3348 = vmul.f32 %v3161, 2.0
    %v3349 = vmul.f32 %v3295, 2.0
    %v3350 = vmul.f32 %v3163, 2.0
    %v3351 = vmul.f32 %v3165, 2.0
    %v3352 = vmul.f32 %v3298, 2.0
    %v3353 = vmul.f32 %v3169, 2.0
    %v3354 = vmul.f32 %v3171, 2.0
    %v3355 = vmul.f32 %v3303, 2.0
    %v3356 = vmul.f32 %v3173, 2.0
    %v3357 = vmul.f32 %v3175, 2.0
    %v3358 = vmul.f32 %v3306, 2.0
    %v3359 = vmul.f32 %v3179, 2.0
    %v3360 = vmul.f32 %v3181, 2.0
    %v3361 = vmul.f32 %v3311, 2.0
    %v3362 = vmul.f32 %v3183, 2.0
    %v3363 = vmul.f32 %v3185, 2.0
    %v3364 = vmul.f32 %v3314, 2.0
    %v3365 = vsel %vm3317, %v3149, %v3341
    %v3366 = vsel %vm3318, %v3151, %v3342
    %v3367 = vsel %vm3319, %v3287, %v3343
    %v3368 = vsel %vm3320, %v3153, %v3344
    %v3369 = vsel %vm3321, %v3155, %v3345
    %v3370 = vsel %vm3322, %v3290, %v3346
    %v3371 = vsel %vm3323, %v3159, %v3347
    %v3372 = vsel %vm3324, %v3161, %v3348
    %v3373 = vsel %vm3325, %v3295, %v3349
    %v3374 = vsel %vm3326, %v3163, %v3350
    %v3375 = vsel %vm3327, %v3165, %v3351
    %v3376 = vsel %vm3328, %v3298, %v3352
    %v3377 = vsel %vm3329, %v3169, %v3353
    %v3378 = vsel %vm3330, %v3171, %v3354
    %v3379 = vsel %vm3331, %v3303, %v3355
    %v3380 = vsel %vm3332, %v3173, %v3356
    %v3381 = vsel %vm3333, %v3175, %v3357
    %v3382 = vsel %vm3334, %v3306, %v3358
    %v3383 = vsel %vm3335, %v3179, %v3359
    %v3384 = vsel %vm3336, %v3181, %v3360
    %v3385 = vsel %vm3337, %v3311, %v3361
    %v3386 = vsel %vm3338, %v3183, %v3362
    %v3387 = vsel %vm3339, %v3185, %v3363
    %v3388 = vsel %vm3340, %v3314, %v3364
    %v3389 = vld [vmem:[#allocation8] sm:$0xff]
    %v3390 = vld [vmem:[#allocation8 + $0x8] sm:$0xf]
    %v3391 = vld [vmem:[#allocation8 + $0xc] sm:$0xff]
    %v3392 = vld [vmem:[#allocation8 + $0x14] sm:$0xf]
    %v3393 = vld [vmem:[#allocation8 + $0x18] sm:$0xff]
    %v3394 = vld [vmem:[#allocation8 + $0x20] sm:$0xf]
    %v3395 = vld [vmem:[#allocation8 + $0x24] sm:$0xff]
    %v3396 = vld [vmem:[#allocation8 + $0x2c] sm:$0xf]
    %v3397 = vld [vmem:[#allocation8 + $0x30] sm:$0xff]
    %v3398 = vld [vmem:[#allocation8 + $0x38] sm:$0xf]
    %v3399 = vld [vmem:[#allocation8 + $0x3c] sm:$0xff]
    %v3400 = vld [vmem:[#allocation8 + $0x44] sm:$0xf]
    %v3401 = vld [vmem:[#allocation8 + $0x48] sm:$0xff]
    %v3402 = vld [vmem:[#allocation8 + $0x50] sm:$0xf]
    %v3403 = vld [vmem:[#allocation8 + $0x54] sm:$0xff]
    %v3404 = vld [vmem:[#allocation8 + $0x5c] sm:$0xf]
    %v3405 = vld [vmem:[#allocation8 + $0x60] sm:$0xff]
    %v3406 = vld [vmem:[#allocation8 + $0x68] sm:$0xf]
    %v3407 = vld [vmem:[#allocation8 + $0x6c] sm:$0xff]
    %v3408 = vld [vmem:[#allocation8 + $0x74] sm:$0xf]
    %v3409 = vld [vmem:[#allocation8 + $0x78] sm:$0xff]
    %v3410 = vld [vmem:[#allocation8 + $0x80] sm:$0xf]
    %v3411 = vld [vmem:[#allocation8 + $0x84] sm:$0xff]
    %v3412 = vld [vmem:[#allocation8 + $0x8c] sm:$0xf]
    %v3413 = vld [vmem:[#allocation8 + $0x90] sm:$0xff]
    %v3414 = vld [vmem:[#allocation8 + $0x98] sm:$0xf]
    %v3415 = vld [vmem:[#allocation8 + $0x9c] sm:$0xff]
    %v3416 = vld [vmem:[#allocation8 + $0xa4] sm:$0xf]
    %v3417 = vld [vmem:[#allocation8 + $0xa8] sm:$0xff]
    %v3418 = vld [vmem:[#allocation8 + $0xb0] sm:$0xf]
    %v3419 = vld [vmem:[#allocation8 + $0xb4] sm:$0xff]
    %v3420 = vld [vmem:[#allocation8 + $0xbc] sm:$0xf]
    %v3421 = vld [vmem:[#allocation8 + $0xc0] sm:$0xff]
    %v3422 = vld [vmem:[#allocation8 + $0xc8] sm:$0xf]
    %v3423 = vld [vmem:[#allocation8 + $0xcc] sm:$0xff]
    %v3424 = vld [vmem:[#allocation8 + $0xd4] sm:$0xf]
    %v3425 = vld [vmem:[#allocation8 + $0xd8] sm:$0xff]
    %v3426 = vld [vmem:[#allocation8 + $0xe0] sm:$0xf]
    %v3427 = vld [vmem:[#allocation8 + $0xe4] sm:$0xff]
    %v3428 = vld [vmem:[#allocation8 + $0xec] sm:$0xf]
    %v3429 = vld [vmem:[#allocation8 + $0xf0] sm:$0xff]
    %v3430 = vld [vmem:[#allocation8 + $0xf8] sm:$0xf]
    %v3431 = vld [vmem:[#allocation8 + $0xfc] sm:$0xff]
    %v3432 = vld [vmem:[#allocation8 + $0x104] sm:$0xf]
    %v3433 = vld [vmem:[#allocation8 + $0x108] sm:$0xff]
    %v3434 = vld [vmem:[#allocation8 + $0x110] sm:$0xf]
    %v3435 = vld [vmem:[#allocation8 + $0x114] sm:$0xff]
    %v3436 = vld [vmem:[#allocation8 + $0x11c] sm:$0xf]
    %v3437 = vld [vmem:[#allocation8 + $0x120] sm:$0xff]
    %v3438 = vld [vmem:[#allocation8 + $0x128] sm:$0xf]
    %v3439 = vld [vmem:[#allocation8 + $0x12c] sm:$0xff]
    %v3440 = vld [vmem:[#allocation8 + $0x134] sm:$0xf]
    %v3441 = vld [vmem:[#allocation8 + $0x138] sm:$0xff]
    %v3442 = vld [vmem:[#allocation8 + $0x140] sm:$0xf]
    %v3443 = vld [vmem:[#allocation8 + $0x144] sm:$0xff]
    %v3444 = vld [vmem:[#allocation8 + $0x14c] sm:$0xf]
    %v3445 = vld [vmem:[#allocation8 + $0x150] sm:$0xff]
    %v3446 = vld [vmem:[#allocation8 + $0x158] sm:$0xf]
    %v3447 = vld [vmem:[#allocation8 + $0x15c] sm:$0xff]
    %v3448 = vld [vmem:[#allocation8 + $0x164] sm:$0xf]
    %v3449 = vld [vmem:[#allocation8 + $0x168] sm:$0xff]
    %v3450 = vld [vmem:[#allocation8 + $0x170] sm:$0xf]
    %v3451 = vld [vmem:[#allocation8 + $0x174] sm:$0xff]
    %v3452 = vld [vmem:[#allocation8 + $0x17c] sm:$0xf]
    %v3453 = vld [vmem:[#allocation8 + $0x180] sm:$0xff]
    %v3454 = vld [vmem:[#allocation8 + $0x188] sm:$0xf]
    %v3455 = vld [vmem:[#allocation8 + $0x18c] sm:$0xff]
    %v3456 = vld [vmem:[#allocation8 + $0x194] sm:$0xf]
    %v3457 = vld [vmem:[#allocation8 + $0x198] sm:$0xff]
    %v3458 = vld [vmem:[#allocation8 + $0x1a0] sm:$0xf]
    %v3459 = vld [vmem:[#allocation8 + $0x1a4] sm:$0xff]
    %v3460 = vld [vmem:[#allocation8 + $0x1ac] sm:$0xf]
    %v3461 = vld [vmem:[#allocation8 + $0x1b0] sm:$0xff]
    %v3462 = vld [vmem:[#allocation8 + $0x1b8] sm:$0xf]
    %v3463 = vld [vmem:[#allocation8 + $0x1bc] sm:$0xff]
    %v3464 = vld [vmem:[#allocation8 + $0x1c4] sm:$0xf]
    %v3465 = vld [vmem:[#allocation8 + $0x1c8] sm:$0xff]
    %v3466 = vld [vmem:[#allocation8 + $0x1d0] sm:$0xf]
    %v3467 = vld [vmem:[#allocation8 + $0x1d4] sm:$0xff]
    %v3468 = vld [vmem:[#allocation8 + $0x1dc] sm:$0xf]
    %v3469 = vld [vmem:[#allocation8 + $0x1e0] sm:$0xff]
    %v3470 = vld [vmem:[#allocation8 + $0x1e8] sm:$0xf]
    %v3471 = vld [vmem:[#allocation8 + $0x1ec] sm:$0xff]
    %v3472 = vld [vmem:[#allocation8 + $0x1f4] sm:$0xf]
    %v3473 = vld [vmem:[#allocation8 + $0x1f8] sm:$0xff]
    %v3474 = vld [vmem:[#allocation8 + $0x200] sm:$0xf]
    %v3475 = vld [vmem:[#allocation8 + $0x204] sm:$0xff]
    %v3476 = vld [vmem:[#allocation8 + $0x20c] sm:$0xf]
    %v3477 = vld [vmem:[#allocation8 + $0x210] sm:$0xff]
    %v3478 = vld [vmem:[#allocation8 + $0x218] sm:$0xf]
    %v3479 = vld [vmem:[#allocation8 + $0x21c] sm:$0xff]
    %v3480 = vld [vmem:[#allocation8 + $0x224] sm:$0xf]
    %v3481 = vld [vmem:[#allocation8 + $0x228] sm:$0xff]
    %v3482 = vld [vmem:[#allocation8 + $0x230] sm:$0xf]
    %v3483 = vld [vmem:[#allocation8 + $0x234] sm:$0xff]
    %v3484 = vld [vmem:[#allocation8 + $0x23c] sm:$0xf]
    %v3485 = vld [vmem:[%s10] sm:$0x7]
    %v3486 = vpack.c.bf16 %v3368, %v3365
    %v3487 = vpack.c.bf16 %v3369, %v3366
    %v3488 = vpack.c.bf16 %v3370, %v3367
    %v3489 = vpack.c.bf16 %v3374, %v3371
    %v3490 = vpack.c.bf16 %v3375, %v3372
    %v3491 = vpack.c.bf16 %v3376, %v3373
    %v3492 = vpack.c.bf16 %v3380, %v3377
    %v3493 = vpack.c.bf16 %v3381, %v3378
    %v3494 = vpack.c.bf16 %v3382, %v3379
    %v3495 = vpack.c.bf16 %v3386, %v3383
    %v3496 = vpack.c.bf16 %v3387, %v3384
    %v3497 = vpack.c.bf16 %v3388, %v3385
    %v3499 = vlaneseq
    %v3500 = vshrl.u32 %v3499, 7
    %v3501 = vsub.s32 0, %v3500
    %v3502 = vrot.slane %v3485, %v3501
    %v3503 = vlaneseq
    %v3504 = vshrl.u32 %v3503, 7
    %v3505 = vsub.s32 1, %v3504
    %v3506 = vrot.slane %v3485, %v3505
    %v3507 = vlaneseq
    %v3508 = vshrl.u32 %v3507, 7
    %v3509 = vsub.s32 2, %v3508
    %v3510 = vrot.slane %v3485, %v3509
    %v3610 = vunpack.c.l.b16 %v3389
    %v3611 = vunpack.c.h.b16 %v3389
    %v3612 = vunpack.c.l.b16 %v3390
    %v3613 = vunpack.c.l.b16 %v3391
    %v3614 = vunpack.c.h.b16 %v3391
    %v3615 = vunpack.c.l.b16 %v3392
    %v3616 = vunpack.c.l.b16 %v3393
    %v3617 = vunpack.c.h.b16 %v3393
    %v3618 = vunpack.c.l.b16 %v3394
    %v3619 = vunpack.c.l.b16 %v3395
    %v3620 = vunpack.c.h.b16 %v3395
    %v3621 = vunpack.c.l.b16 %v3396
    %v3622 = vunpack.c.l.b16 %v3397
    %v3623 = vunpack.c.h.b16 %v3397
    %v3624 = vunpack.c.l.b16 %v3398
    %v3625 = vunpack.c.l.b16 %v3399
    %v3626 = vunpack.c.h.b16 %v3399
    %v3627 = vunpack.c.l.b16 %v3400
    %v3628 = vunpack.c.l.b16 %v3401
    %v3629 = vunpack.c.h.b16 %v3401
    %v3630 = vunpack.c.l.b16 %v3402
    %v3631 = vunpack.c.l.b16 %v3403
    %v3632 = vunpack.c.h.b16 %v3403
    %v3633 = vunpack.c.l.b16 %v3404
    %v3634 = vunpack.c.l.b16 %v3405
    %v3635 = vunpack.c.h.b16 %v3405
    %v3636 = vunpack.c.l.b16 %v3406
    %v3637 = vunpack.c.l.b16 %v3407
    %v3638 = vunpack.c.h.b16 %v3407
    %v3639 = vunpack.c.l.b16 %v3408
    %v3640 = vunpack.c.l.b16 %v3409
    %v3641 = vunpack.c.h.b16 %v3409
    %v3642 = vunpack.c.l.b16 %v3410
    %v3643 = vunpack.c.l.b16 %v3411
    %v3644 = vunpack.c.h.b16 %v3411
    %v3645 = vunpack.c.l.b16 %v3412
    %v3646 = vunpack.c.l.b16 %v3413
    %v3647 = vunpack.c.h.b16 %v3413
    %v3648 = vunpack.c.l.b16 %v3414
    %v3649 = vunpack.c.l.b16 %v3415
    %v3650 = vunpack.c.h.b16 %v3415
    %v3651 = vunpack.c.l.b16 %v3416
    %v3652 = vunpack.c.l.b16 %v3417
    %v3653 = vunpack.c.h.b16 %v3417
    %v3654 = vunpack.c.l.b16 %v3418
    %v3655 = vunpack.c.l.b16 %v3419
    %v3656 = vunpack.c.h.b16 %v3419
    %v3657 = vunpack.c.l.b16 %v3420
    %v3658 = vunpack.c.l.b16 %v3421
    %v3659 = vunpack.c.h.b16 %v3421
    %v3660 = vunpack.c.l.b16 %v3422
    %v3661 = vunpack.c.l.b16 %v3423
    %v3662 = vunpack.c.h.b16 %v3423
    %v3663 = vunpack.c.l.b16 %v3424
    %v3664 = vunpack.c.l.b16 %v3425
    %v3665 = vunpack.c.h.b16 %v3425
    %v3666 = vunpack.c.l.b16 %v3426
    %v3667 = vunpack.c.l.b16 %v3427
    %v3668 = vunpack.c.h.b16 %v3427
    %v3669 = vunpack.c.l.b16 %v3428
    %v3670 = vunpack.c.l.b16 %v3429
    %v3671 = vunpack.c.h.b16 %v3429
    %v3672 = vunpack.c.l.b16 %v3430
    %v3673 = vunpack.c.l.b16 %v3431
    %v3674 = vunpack.c.h.b16 %v3431
    %v3675 = vunpack.c.l.b16 %v3432
    %v3676 = vunpack.c.l.b16 %v3433
    %v3677 = vunpack.c.h.b16 %v3433
    %v3678 = vunpack.c.l.b16 %v3434
    %v3679 = vunpack.c.l.b16 %v3435
    %v3680 = vunpack.c.h.b16 %v3435
    %v3681 = vunpack.c.l.b16 %v3436
    %v3682 = vunpack.c.l.b16 %v3437
    %v3683 = vunpack.c.h.b16 %v3437
    %v3684 = vunpack.c.l.b16 %v3438
    %v3685 = vunpack.c.l.b16 %v3439
    %v3686 = vunpack.c.h.b16 %v3439
    %v3687 = vunpack.c.l.b16 %v3440
    %v3688 = vunpack.c.l.b16 %v3441
    %v3689 = vunpack.c.h.b16 %v3441
    %v3690 = vunpack.c.l.b16 %v3442
    %v3691 = vunpack.c.l.b16 %v3443
    %v3692 = vunpack.c.h.b16 %v3443
    %v3693 = vunpack.c.l.b16 %v3444
    %v3694 = vunpack.c.l.b16 %v3445
    %v3695 = vunpack.c.h.b16 %v3445
    %v3696 = vunpack.c.l.b16 %v3446
    %v3697 = vunpack.c.l.b16 %v3447
    %v3698 = vunpack.c.h.b16 %v3447
    %v3699 = vunpack.c.l.b16 %v3448
    %v3700 = vunpack.c.l.b16 %v3449
    %v3701 = vunpack.c.h.b16 %v3449
    %v3702 = vunpack.c.l.b16 %v3450
    %v3703 = vunpack.c.l.b16 %v3451
    %v3704 = vunpack.c.h.b16 %v3451
    %v3705 = vunpack.c.l.b16 %v3452
    %v3706 = vunpack.c.l.b16 %v3453
    %v3707 = vunpack.c.h.b16 %v3453
    %v3708 = vunpack.c.l.b16 %v3454
    %v3709 = vunpack.c.l.b16 %v3455
    %v3710 = vunpack.c.h.b16 %v3455
    %v3711 = vunpack.c.l.b16 %v3456
    %v3712 = vunpack.c.l.b16 %v3457
    %v3713 = vunpack.c.h.b16 %v3457
    %v3714 = vunpack.c.l.b16 %v3458
    %v3715 = vunpack.c.l.b16 %v3459
    %v3716 = vunpack.c.h.b16 %v3459
    %v3717 = vunpack.c.l.b16 %v3460
    %v3718 = vunpack.c.l.b16 %v3461
    %v3719 = vunpack.c.h.b16 %v3461
    %v3720 = vunpack.c.l.b16 %v3462
    %v3721 = vunpack.c.l.b16 %v3463
    %v3722 = vunpack.c.h.b16 %v3463
    %v3723 = vunpack.c.l.b16 %v3464
    %v3724 = vunpack.c.l.b16 %v3465
    %v3725 = vunpack.c.h.b16 %v3465
    %v3726 = vunpack.c.l.b16 %v3466
    %v3727 = vunpack.c.l.b16 %v3467
    %v3728 = vunpack.c.h.b16 %v3467
    %v3729 = vunpack.c.l.b16 %v3468
    %v3730 = vunpack.c.l.b16 %v3469
    %v3731 = vunpack.c.h.b16 %v3469
    %v3732 = vunpack.c.l.b16 %v3470
    %v3733 = vunpack.c.l.b16 %v3471
    %v3734 = vunpack.c.h.b16 %v3471
    %v3735 = vunpack.c.l.b16 %v3472
    %v3736 = vunpack.c.l.b16 %v3473
    %v3737 = vunpack.c.h.b16 %v3473
    %v3738 = vunpack.c.l.b16 %v3474
    %v3739 = vunpack.c.l.b16 %v3475
    %v3740 = vunpack.c.h.b16 %v3475
    %v3741 = vunpack.c.l.b16 %v3476
    %v3742 = vunpack.c.l.b16 %v3477
    %v3743 = vunpack.c.h.b16 %v3477
    %v3744 = vunpack.c.l.b16 %v3478
    %v3745 = vunpack.c.l.b16 %v3479
    %v3746 = vunpack.c.h.b16 %v3479
    %v3747 = vunpack.c.l.b16 %v3480
    %v3748 = vunpack.c.l.b16 %v3481
    %v3749 = vunpack.c.h.b16 %v3481
    %v3750 = vunpack.c.l.b16 %v3482
    %v3751 = vunpack.c.l.b16 %v3483
    %v3752 = vunpack.c.h.b16 %v3483
    %v3753 = vunpack.c.l.b16 %v3484
    %v3754 = vpack.c.b16 %v3613, %v3610
    %v3755 = vpack.c.b16 %v3614, %v3611
    %v3756 = vpack.c.b16 %v3615, %v3612
    %v3757 = vpack.c.b16 %v3619, %v3616
    %v3758 = vpack.c.b16 %v3620, %v3617
    %v3759 = vpack.c.b16 %v3621, %v3618
    %v3760 = vpack.c.b16 %v3625, %v3622
    %v3761 = vpack.c.b16 %v3626, %v3623
    %v3762 = vpack.c.b16 %v3627, %v3624
    %v3763 = vpack.c.b16 %v3631, %v3628
    %v3764 = vpack.c.b16 %v3632, %v3629
    %v3765 = vpack.c.b16 %v3633, %v3630
    %v3766 = vpack.c.b16 %v3637, %v3634
    %v3767 = vpack.c.b16 %v3638, %v3635
    %v3768 = vpack.c.b16 %v3639, %v3636
    %v3769 = vpack.c.b16 %v3643, %v3640
    %v3770 = vpack.c.b16 %v3644, %v3641
    %v3771 = vpack.c.b16 %v3645, %v3642
    %v3772 = vpack.c.b16 %v3649, %v3646
    %v3773 = vpack.c.b16 %v3650, %v3647
    %v3774 = vpack.c.b16 %v3651, %v3648
    %v3775 = vpack.c.b16 %v3655, %v3652
    %v3776 = vpack.c.b16 %v3656, %v3653
    %v3777 = vpack.c.b16 %v3657, %v3654
    %v3778 = vpack.c.b16 %v3661, %v3658
    %v3779 = vpack.c.b16 %v3662, %v3659
    %v3780 = vpack.c.b16 %v3663, %v3660
    %v3781 = vpack.c.b16 %v3667, %v3664
    %v3782 = vpack.c.b16 %v3668, %v3665
    %v3783 = vpack.c.b16 %v3669, %v3666
    %v3784 = vpack.c.b16 %v3673, %v3670
    %v3785 = vpack.c.b16 %v3674, %v3671
    %v3786 = vpack.c.b16 %v3675, %v3672
    %v3787 = vpack.c.b16 %v3679, %v3676
    %v3788 = vpack.c.b16 %v3680, %v3677
    %v3789 = vpack.c.b16 %v3681, %v3678
    %v3790 = vpack.c.b16 %v3685, %v3682
    %v3791 = vpack.c.b16 %v3686, %v3683
    %v3792 = vpack.c.b16 %v3687, %v3684
    %v3793 = vpack.c.b16 %v3691, %v3688
    %v3794 = vpack.c.b16 %v3692, %v3689
    %v3795 = vpack.c.b16 %v3693, %v3690
    %v3796 = vpack.c.b16 %v3697, %v3694
    %v3797 = vpack.c.b16 %v3698, %v3695
    %v3798 = vpack.c.b16 %v3699, %v3696
    %v3799 = vpack.c.b16 %v3703, %v3700
    %v3800 = vpack.c.b16 %v3704, %v3701
    %v3801 = vpack.c.b16 %v3705, %v3702
    %v3802 = vpack.c.b16 %v3709, %v3706
    %v3803 = vpack.c.b16 %v3710, %v3707
    %v3804 = vpack.c.b16 %v3711, %v3708
    %v3805 = vpack.c.b16 %v3715, %v3712
    %v3806 = vpack.c.b16 %v3716, %v3713
    %v3807 = vpack.c.b16 %v3717, %v3714
    %v3808 = vpack.c.b16 %v3721, %v3718
    %v3809 = vpack.c.b16 %v3722, %v3719
    %v3810 = vpack.c.b16 %v3723, %v3720
    %v3811 = vpack.c.b16 %v3727, %v3724
    %v3812 = vpack.c.b16 %v3728, %v3725
    %v3813 = vpack.c.b16 %v3729, %v3726
    %v3814 = vpack.c.b16 %v3733, %v3730
    %v3815 = vpack.c.b16 %v3734, %v3731
    %v3816 = vpack.c.b16 %v3735, %v3732
    %v3817 = vpack.c.b16 %v3739, %v3736
    %v3818 = vpack.c.b16 %v3740, %v3737
    %v3819 = vpack.c.b16 %v3741, %v3738
    %v3820 = vpack.c.b16 %v3745, %v3742
    %v3821 = vpack.c.b16 %v3746, %v3743
    %v3822 = vpack.c.b16 %v3747, %v3744
    %v3823 = vpack.c.b16 %v3751, %v3748
    %v3824 = vpack.c.b16 %v3752, %v3749
    %v3825 = vpack.c.b16 %v3753, %v3750
    %3898 = vmatprep.subr.bf16.mxu0 %v3755
    %3899 = vmatpush1.bf16.msra.mxu0 %v3754
    %3900 = vmatprep.subr.bf16.mxu0 %v3758
    %3901 = vmatpush1.bf16.msra.mxu0 %v3757
    %3902 = vmatprep.subr.bf16.mxu0 %v3761
    %3903 = vmatpush1.bf16.msra.mxu0 %v3760
    %3904 = vmatprep.subr.bf16.mxu0 %v3764
    %3905 = vmatpush1.bf16.msra.mxu0 %v3763
    %3906 = vmatprep.subr.bf16.mxu0 %v3767
    %3907 = vmatpush1.bf16.msra.mxu0 %v3766
    %3908 = vmatprep.subr.bf16.mxu0 %v3770
    %3909 = vmatpush1.bf16.msra.mxu0 %v3769
    %3910 = vmatprep.subr.bf16.mxu0 %v3773
    %3911 = vmatpush1.bf16.msra.mxu0 %v3772
    %3912 = vmatprep.subr.bf16.mxu0 %v3776
    %3913 = vmatpush1.bf16.msra.mxu0 %v3775
    %3914 = vmatprep.subr.bf16.mxu0 %v3779
    %3915 = vmatpush1.bf16.msra.mxu0 %v3778
    %3916 = vmatprep.subr.bf16.mxu0 %v3782
    %3917 = vmatpush1.bf16.msra.mxu0 %v3781
    %3918 = vmatprep.subr.bf16.mxu0 %v3785
    %3919 = vmatpush1.bf16.msra.mxu0 %v3784
    %3920 = vmatprep.subr.bf16.mxu0 %v3788
    %3921 = vmatpush1.bf16.msra.mxu0 %v3787
    %3922 = vmatprep.subr.bf16.mxu0 %v3791
    %3923 = vmatpush1.bf16.msra.mxu0 %v3790
    %3924 = vmatprep.subr.bf16.mxu0 %v3794
    %3925 = vmatpush1.bf16.msra.mxu0 %v3793
    %3926 = vmatprep.subr.bf16.mxu0 %v3797
    %3927 = vmatpush1.bf16.msra.mxu0 %v3796
    %3928 = vmatprep.subr.bf16.mxu0 %v3800
    %3929 = vmatpush1.bf16.msra.mxu0 %v3799
    %3930 = vmatprep.mubr.bf16.mxu0 %v3487
    %3931 = vmatmul.mubr.bf16.gmra.mrb[0].mxu0 %v3486
    %v3932 = vpop.f32.mrb[0].mxu0
    %v3933 = vadd.f32 %v3502, %v3932
    %v3934 = vpop.f32.mrb[0].mxu0
    %v3935 = vadd.f32 %v3506, %v3934
    %v3936 = vpop.f32.mrb[0].mxu0
    %v3937 = vadd.f32 %v3502, %v3936
    %v3938 = vpop.f32.mrb[0].mxu0
    %v3939 = vadd.f32 %v3506, %v3938
    %3940 = vmatprep.mubr.bf16.mxu0 %v3490
    %3941 = vmatmul.mubr.bf16.gmra.mrb[0].mxu0 %v3489
    %v3942 = vpop.f32.mrb[0].mxu0
    %v3943 = vadd.f32 %v3502, %v3942
    %v3944 = vpop.f32.mrb[0].mxu0
    %v3945 = vadd.f32 %v3506, %v3944
    %v3946 = vpop.f32.mrb[0].mxu0
    %v3947 = vadd.f32 %v3502, %v3946
    %v3948 = vpop.f32.mrb[0].mxu0
    %v3949 = vadd.f32 %v3506, %v3948
    %3950 = vmatprep.mubr.bf16.mxu0 %v3493
    %3951 = vmatmul.mubr.bf16.gmra.mrb[0].mxu0 %v3492
    %v3952 = vpop.f32.mrb[0].mxu0
    %v3953 = vadd.f32 %v3502, %v3952
    %v3954 = vpop.f32.mrb[0].mxu0
    %v3955 = vadd.f32 %v3506, %v3954
    %v3956 = vpop.f32.mrb[0].mxu0
    %v3957 = vadd.f32 %v3502, %v3956
    %v3958 = vpop.f32.mrb[0].mxu0
    %v3959 = vadd.f32 %v3506, %v3958
    %3960 = vmatprep.mubr.bf16.mxu0 %v3496
    %3961 = vmatmul.mubr.bf16.gmra.mrb[0].mxu0 %v3495
    %v3962 = vpop.f32.mrb[0].mxu0
    %v3963 = vadd.f32 %v3502, %v3962
    %v3964 = vpop.f32.mrb[0].mxu0
    %v3965 = vadd.f32 %v3506, %v3964
    %v3966 = vpop.f32.mrb[0].mxu0
    %v3967 = vadd.f32 %v3502, %v3966
    %v3968 = vpop.f32.mrb[0].mxu0
    %v3969 = vadd.f32 %v3506, %v3968
    %3970 = vdwg.mxu0
    %3971 = vmatprep.subr.bf16.mxu0 %v3803
    %3972 = vmatpush1.bf16.msra.mxu0 %v3802
    %3973 = vmatprep.subr.bf16.mxu0 %v3806
    %3974 = vmatpush1.bf16.msra.mxu0 %v3805
    %3975 = vmatprep.subr.bf16.mxu0 %v3809
    %3976 = vmatpush1.bf16.msra.mxu0 %v3808
    %3977 = vmatprep.subr.bf16.mxu0 %v3812
    %3978 = vmatpush1.bf16.msra.mxu0 %v3811
    %3979 = vmatprep.subr.bf16.mxu0 %v3815
    %3980 = vmatpush1.bf16.msra.mxu0 %v3814
    %3981 = vmatprep.subr.bf16.mxu0 %v3818
    %3982 = vmatpush1.bf16.msra.mxu0 %v3817
    %3983 = vmatprep.subr.bf16.mxu0 %v3821
    %3984 = vmatpush1.bf16.msra.mxu0 %v3820
    %3985 = vmatprep.subr.bf16.mxu0 %v3824
    %3986 = vmatpush1.bf16.msra.mxu0 %v3823
    %3987 = vmatprep.subr.bf16.mxu0 0
    %3988 = vmatpush1.bf16.msra.mxu0 0
    %3989 = vmatprep.subr.bf16.mxu0 0
    %3990 = vmatpush1.bf16.msra.mxu0 0
    %3991 = vmatprep.subr.bf16.mxu0 0
    %3992 = vmatpush1.bf16.msra.mxu0 0
    %3993 = vmatprep.subr.bf16.mxu0 0
    %3994 = vmatpush1.bf16.msra.mxu0 0
    %3995 = vmatprep.subr.bf16.mxu0 0
    %3996 = vmatpush1.bf16.msra.mxu0 0
    %3997 = vmatprep.subr.bf16.mxu0 0
    %3998 = vmatpush1.bf16.msra.mxu0 0
    %3999 = vmatprep.subr.bf16.mxu0 0
    %4000 = vmatpush1.bf16.msra.mxu0 0
    %4001 = vmatprep.subr.bf16.mxu0 0
    %4002 = vmatpush1.bf16.msra.mxu0 0
    %4003 = vmatprep.mubr.bf16.mxu0 0
    %4004 = vmatmul.mubr.bf16.gmra.mrb[0].mxu0 %v3488
    %v4005 = vpop.f32.mrb[0].mxu0
    %v4006 = vadd.f32 %v3933, %v4005
    %v4007 = vpop.f32.mrb[0].mxu0
    %v4008 = vadd.f32 %v3935, %v4007
    %v4009 = vpop.f32.mrb[0].mxu0
    %v4010 = vadd.f32 %v3937, %v4009
    %v4011 = vpop.f32.mrb[0].mxu0
    %v4012 = vadd.f32 %v3939, %v4011
    %4013 = vmatprep.mubr.bf16.mxu0 0
    %4014 = vmatmul.mubr.bf16.gmra.mrb[0].mxu0 %v3491
    %v4015 = vpop.f32.mrb[0].mxu0
    %v4016 = vadd.f32 %v3943, %v4015
    %v4017 = vpop.f32.mrb[0].mxu0
    %v4018 = vadd.f32 %v3945, %v4017
    %v4019 = vpop.f32.mrb[0].mxu0
    %v4020 = vadd.f32 %v3947, %v4019
    %v4021 = vpop.f32.mrb[0].mxu0
    %v4022 = vadd.f32 %v3949, %v4021
    %4023 = vmatprep.mubr.bf16.mxu0 0
    %4024 = vmatmul.mubr.bf16.gmra.mrb[0].mxu0 %v3494
    %v4025 = vpop.f32.mrb[0].mxu0
    %v4026 = vadd.f32 %v3953, %v4025
    %v4027 = vpop.f32.mrb[0].mxu0
    %v4028 = vadd.f32 %v3955, %v4027
    %v4029 = vpop.f32.mrb[0].mxu0
    %v4030 = vadd.f32 %v3957, %v4029
    %v4031 = vpop.f32.mrb[0].mxu0
    %v4032 = vadd.f32 %v3959, %v4031
    %4033 = vmatprep.mubr.bf16.mxu0 0
    %4034 = vmatmul.mubr.bf16.gmra.mrb[0].mxu0 %v3497
    %v4035 = vpop.f32.mrb[0].mxu0
    %v4036 = vadd.f32 %v3963, %v4035
    %v4037 = vpop.f32.mrb[0].mxu0
    %v4038 = vadd.f32 %v3965, %v4037
    %v4039 = vpop.f32.mrb[0].mxu0
    %v4040 = vadd.f32 %v3967, %v4039
    %v4041 = vpop.f32.mrb[0].mxu0
    %v4042 = vadd.f32 %v3969, %v4041
    %4043 = vdwg.mxu0
    %4044 = vmatprep.subr.bf16.mxu0 0
    %4045 = vmatpush1.bf16.msra.mxu0 %v3756
    %4046 = vmatprep.subr.bf16.mxu0 0
    %4047 = vmatpush1.bf16.msra.mxu0 %v3759
    %4048 = vmatprep.subr.bf16.mxu0 0
    %4049 = vmatpush1.bf16.msra.mxu0 %v3762
    %4050 = vmatprep.subr.bf16.mxu0 0
    %4051 = vmatpush1.bf16.msra.mxu0 %v3765
    %4052 = vmatprep.subr.bf16.mxu0 0
    %4053 = vmatpush1.bf16.msra.mxu0 %v3768
    %4054 = vmatprep.subr.bf16.mxu0 0
    %4055 = vmatpush1.bf16.msra.mxu0 %v3771
    %4056 = vmatprep.subr.bf16.mxu0 0
    %4057 = vmatpush1.bf16.msra.mxu0 %v3774
    %4058 = vmatprep.subr.bf16.mxu0 0
    %4059 = vmatpush1.bf16.msra.mxu0 %v3777
    %4060 = vmatprep.subr.bf16.mxu0 0
    %4061 = vmatpush1.bf16.msra.mxu0 %v3780
    %4062 = vmatprep.subr.bf16.mxu0 0
    %4063 = vmatpush1.bf16.msra.mxu0 %v3783
    %4064 = vmatprep.subr.bf16.mxu0 0
    %4065 = vmatpush1.bf16.msra.mxu0 %v3786
    %4066 = vmatprep.subr.bf16.mxu0 0
    %4067 = vmatpush1.bf16.msra.mxu0 %v3789
    %4068 = vmatprep.subr.bf16.mxu0 0
    %4069 = vmatpush1.bf16.msra.mxu0 %v3792
    %4070 = vmatprep.subr.bf16.mxu0 0
    %4071 = vmatpush1.bf16.msra.mxu0 %v3795
    %4072 = vmatprep.subr.bf16.mxu0 0
    %4073 = vmatpush1.bf16.msra.mxu0 %v3798
    %4074 = vmatprep.subr.bf16.mxu0 0
    %4075 = vmatpush1.bf16.msra.mxu0 %v3801
    %4076 = vmatprep.mubr.bf16.mxu0 %v3487
    %4077 = vmatmul.mubr.bf16.gmra.mrb[0].mxu0 %v3486
    %v4078 = vpop.f32.mrb[0].mxu0
    %v4079 = vadd.f32 %v3510, %v4078
    %v4080 = vpop.f32.mrb[0].mxu0
    %v4081 = vpop.f32.mrb[0].mxu0
    %v4082 = vadd.f32 %v3510, %v4081
    %v4083 = vpop.f32.mrb[0].mxu0
    %4084 = vmatprep.mubr.bf16.mxu0 %v3490
    %4085 = vmatmul.mubr.bf16.gmra.mrb[0].mxu0 %v3489
    %v4086 = vpop.f32.mrb[0].mxu0
    %v4087 = vadd.f32 %v3510, %v4086
    %v4088 = vpop.f32.mrb[0].mxu0
    %v4089 = vpop.f32.mrb[0].mxu0
    %v4090 = vadd.f32 %v3510, %v4089
    %v4091 = vpop.f32.mrb[0].mxu0
    %4092 = vmatprep.mubr.bf16.mxu0 %v3493
    %4093 = vmatmul.mubr.bf16.gmra.mrb[0].mxu0 %v3492
    %v4094 = vpop.f32.mrb[0].mxu0
    %v4095 = vadd.f32 %v3510, %v4094
    %v4096 = vpop.f32.mrb[0].mxu0
    %v4097 = vpop.f32.mrb[0].mxu0
    %v4098 = vadd.f32 %v3510, %v4097
    %v4099 = vpop.f32.mrb[0].mxu0
    %4100 = vmatprep.mubr.bf16.mxu0 %v3496
    %4101 = vmatmul.mubr.bf16.gmra.mrb[0].mxu0 %v3495
    %v4102 = vpop.f32.mrb[0].mxu0
    %v4103 = vadd.f32 %v3510, %v4102
    %v4104 = vpop.f32.mrb[0].mxu0
    %v4105 = vpop.f32.mrb[0].mxu0
    %v4106 = vadd.f32 %v3510, %v4105
    %v4107 = vpop.f32.mrb[0].mxu0
    %4108 = vdwg.mxu0
    %4109 = vmatprep.subr.bf16.mxu0 0
    %4110 = vmatpush1.bf16.msra.mxu0 %v3804
    %4111 = vmatprep.subr.bf16.mxu0 0
    %4112 = vmatpush1.bf16.msra.mxu0 %v3807
    %4113 = vmatprep.subr.bf16.mxu0 0
    %4114 = vmatpush1.bf16.msra.mxu0 %v3810
    %4115 = vmatprep.subr.bf16.mxu0 0
    %4116 = vmatpush1.bf16.msra.mxu0 %v3813
    %4117 = vmatprep.subr.bf16.mxu0 0
    %4118 = vmatpush1.bf16.msra.mxu0 %v3816
    %4119 = vmatprep.subr.bf16.mxu0 0
    %4120 = vmatpush1.bf16.msra.mxu0 %v3819
    %4121 = vmatprep.subr.bf16.mxu0 0
    %4122 = vmatpush1.bf16.msra.mxu0 %v3822
    %4123 = vmatprep.subr.bf16.mxu0 0
    %4124 = vmatpush1.bf16.msra.mxu0 %v3825
    %4125 = vmatprep.subr.bf16.mxu0 0
    %4126 = vmatpush1.bf16.msra.mxu0 0
    %4127 = vmatprep.subr.bf16.mxu0 0
    %4128 = vmatpush1.bf16.msra.mxu0 0
    %4129 = vmatprep.subr.bf16.mxu0 0
    %4130 = vmatpush1.bf16.msra.mxu0 0
    %4131 = vmatprep.subr.bf16.mxu0 0
    %4132 = vmatpush1.bf16.msra.mxu0 0
    %4133 = vmatprep.subr.bf16.mxu0 0
    %4134 = vmatpush1.bf16.msra.mxu0 0
    %4135 = vmatprep.subr.bf16.mxu0 0
    %4136 = vmatpush1.bf16.msra.mxu0 0
    %4137 = vmatprep.subr.bf16.mxu0 0
    %4138 = vmatpush1.bf16.msra.mxu0 0
    %4139 = vmatprep.subr.bf16.mxu0 0
    %4140 = vmatpush1.bf16.msra.mxu0 0
    %4141 = vmatprep.mubr.bf16.mxu0 0
    %4142 = vmatmul.mubr.bf16.gmra.mrb[0].mxu0 %v3488
    %v4143 = vpop.f32.mrb[0].mxu0
    %v4144 = vadd.f32 %v4079, %v4143
    %v4145 = vpop.f32.mrb[0].mxu0
    %v4146 = vpop.f32.mrb[0].mxu0
    %v4147 = vadd.f32 %v4082, %v4146
    %v4148 = vpop.f32.mrb[0].mxu0
    %4149 = vmatprep.mubr.bf16.mxu0 0
    %4150 = vmatmul.mubr.bf16.gmra.mrb[0].mxu0 %v3491
    %v4151 = vpop.f32.mrb[0].mxu0
    %v4152 = vadd.f32 %v4087, %v4151
    %v4153 = vpop.f32.mrb[0].mxu0
    %v4154 = vpop.f32.mrb[0].mxu0
    %v4155 = vadd.f32 %v4090, %v4154
    %v4156 = vpop.f32.mrb[0].mxu0
    %4157 = vmatprep.mubr.bf16.mxu0 0
    %4158 = vmatmul.mubr.bf16.gmra.mrb[0].mxu0 %v3494
    %v4159 = vpop.f32.mrb[0].mxu0
    %v4160 = vadd.f32 %v4095, %v4159
    %v4161 = vpop.f32.mrb[0].mxu0
    %v4162 = vpop.f32.mrb[0].mxu0
    %v4163 = vadd.f32 %v4098, %v4162
    %v4164 = vpop.f32.mrb[0].mxu0
    %4165 = vmatprep.mubr.bf16.mxu0 0
    %4166 = vmatmul.mubr.bf16.gmra.mrb[0].mxu0 %v3497
    %v4167 = vpop.f32.mrb[0].mxu0
    %v4168 = vadd.f32 %v4103, %v4167
    %v4169 = vpop.f32.mrb[0].mxu0
    %v4170 = vpop.f32.mrb[0].mxu0
    %v4171 = vadd.f32 %v4106, %v4170
    %v4172 = vpop.f32.mrb[0].mxu0
    %4173 = vdwg.mxu0
    %vm4174 = vcmp.ge.f32.partialorder %v4006, 0.0
    %vm4175 = vcmp.ge.f32.partialorder %v4008, 0.0
    %vm4176 = vcmp.ge.f32.partialorder %v4144, 0.0
    %vm4177 = vcmp.ge.f32.partialorder %v4010, 0.0
    %vm4178 = vcmp.ge.f32.partialorder %v4012, 0.0
    %vm4179 = vcmp.ge.f32.partialorder %v4147, 0.0
    %vm4180 = vcmp.ge.f32.partialorder %v4016, 0.0
    %vm4181 = vcmp.ge.f32.partialorder %v4018, 0.0
    %vm4182 = vcmp.ge.f32.partialorder %v4152, 0.0
    %vm4183 = vcmp.ge.f32.partialorder %v4020, 0.0
    %vm4184 = vcmp.ge.f32.partialorder %v4022, 0.0
    %vm4185 = vcmp.ge.f32.partialorder %v4155, 0.0
    %vm4186 = vcmp.ge.f32.partialorder %v4026, 0.0
    %vm4187 = vcmp.ge.f32.partialorder %v4028, 0.0
    %vm4188 = vcmp.ge.f32.partialorder %v4160, 0.0
    %vm4189 = vcmp.ge.f32.partialorder %v4030, 0.0
    %vm4190 = vcmp.ge.f32.partialorder %v4032, 0.0
    %vm4191 = vcmp.ge.f32.partialorder %v4163, 0.0
    %vm4192 = vcmp.ge.f32.partialorder %v4036, 0.0
    %vm4193 = vcmp.ge.f32.partialorder %v4038, 0.0
    %vm4194 = vcmp.ge.f32.partialorder %v4168, 0.0
    %vm4195 = vcmp.ge.f32.partialorder %v4040, 0.0
    %vm4196 = vcmp.ge.f32.partialorder %v4042, 0.0
    %vm4197 = vcmp.ge.f32.partialorder %v4171, 0.0
    %v4198 = vmul.f32 %v4006, 2.0
    %v4199 = vmul.f32 %v4008, 2.0
    %v4200 = vmul.f32 %v4144, 2.0
    %v4201 = vmul.f32 %v4010, 2.0
    %v4202 = vmul.f32 %v4012, 2.0
    %v4203 = vmul.f32 %v4147, 2.0
    %v4204 = vmul.f32 %v4016, 2.0
    %v4205 = vmul.f32 %v4018, 2.0
    %v4206 = vmul.f32 %v4152, 2.0
    %v4207 = vmul.f32 %v4020, 2.0
    %v4208 = vmul.f32 %v4022, 2.0
    %v4209 = vmul.f32 %v4155, 2.0
    %v4210 = vmul.f32 %v4026, 2.0
    %v4211 = vmul.f32 %v4028, 2.0
    %v4212 = vmul.f32 %v4160, 2.0
    %v4213 = vmul.f32 %v4030, 2.0
    %v4214 = vmul.f32 %v4032, 2.0
    %v4215 = vmul.f32 %v4163, 2.0
    %v4216 = vmul.f32 %v4036, 2.0
    %v4217 = vmul.f32 %v4038, 2.0
    %v4218 = vmul.f32 %v4168, 2.0
    %v4219 = vmul.f32 %v4040, 2.0
    %v4220 = vmul.f32 %v4042, 2.0
    %v4221 = vmul.f32 %v4171, 2.0
    %v4222 = vsel %vm4174, %v4006, %v4198
    %v4223 = vsel %vm4175, %v4008, %v4199
    %v4224 = vsel %vm4176, %v4144, %v4200
    %v4225 = vsel %vm4177, %v4010, %v4201
    %v4226 = vsel %vm4178, %v4012, %v4202
    %v4227 = vsel %vm4179, %v4147, %v4203
    %v4228 = vsel %vm4180, %v4016, %v4204
    %v4229 = vsel %vm4181, %v4018, %v4205
    %v4230 = vsel %vm4182, %v4152, %v4206
    %v4231 = vsel %vm4183, %v4020, %v4207
    %v4232 = vsel %vm4184, %v4022, %v4208
    %v4233 = vsel %vm4185, %v4155, %v4209
    %v4234 = vsel %vm4186, %v4026, %v4210
    %v4235 = vsel %vm4187, %v4028, %v4211
    %v4236 = vsel %vm4188, %v4160, %v4212
    %v4237 = vsel %vm4189, %v4030, %v4213
    %v4238 = vsel %vm4190, %v4032, %v4214
    %v4239 = vsel %vm4191, %v4163, %v4215
    %v4240 = vsel %vm4192, %v4036, %v4216
    %v4241 = vsel %vm4193, %v4038, %v4217
    %v4242 = vsel %vm4194, %v4168, %v4218
    %v4243 = vsel %vm4195, %v4040, %v4219
    %v4244 = vsel %vm4196, %v4042, %v4220
    %v4245 = vsel %vm4197, %v4171, %v4221
    %v4246 = vld [vmem:[#allocation10] sm:$0xf]
    %v4247 = vld [vmem:[#allocation10 + $0x4] sm:$0xf]
    %v4248 = vld [vmem:[#allocation10 + $0x8] sm:$0xf]
    %v4249 = vld [vmem:[#allocation10 + $0xc] sm:$0xf]
    %v4250 = vld [vmem:[#allocation10 + $0x10] sm:$0xf]
    %v4251 = vld [vmem:[#allocation10 + $0x14] sm:$0xf]
    %v4252 = vld [vmem:[#allocation10 + $0x18] sm:$0xf]
    %v4253 = vld [vmem:[#allocation10 + $0x1c] sm:$0xf]
    %v4254 = vld [vmem:[#allocation10 + $0x20] sm:$0xf]
    %v4255 = vld [vmem:[#allocation10 + $0x24] sm:$0xf]
    %v4256 = vld [vmem:[#allocation10 + $0x28] sm:$0xf]
    %v4257 = vld [vmem:[#allocation10 + $0x2c] sm:$0xf]
    %v4258 = vld [vmem:[#allocation10 + $0x30] sm:$0xf]
    %v4259 = vld [vmem:[#allocation10 + $0x34] sm:$0xf]
    %v4260 = vld [vmem:[#allocation10 + $0x38] sm:$0xf]
    %v4261 = vld [vmem:[#allocation10 + $0x3c] sm:$0xf]
    %v4262 = vld [vmem:[#allocation10 + $0x40] sm:$0xf]
    %v4263 = vld [vmem:[#allocation10 + $0x44] sm:$0xf]
    %v4264 = vld [vmem:[#allocation10 + $0x48] sm:$0xf]
    %v4265 = vld [vmem:[#allocation10 + $0x4c] sm:$0xf]
    %v4266 = vld [vmem:[#allocation10 + $0x50] sm:$0xf]
    %v4267 = vld [vmem:[#allocation10 + $0x54] sm:$0xf]
    %v4268 = vld [vmem:[#allocation10 + $0x58] sm:$0xf]
    %v4269 = vld [vmem:[#allocation10 + $0x5c] sm:$0xf]
    %v4270 = vld [vmem:[#allocation10 + $0x60] sm:$0xf]
    %v4271 = vld [vmem:[#allocation10 + $0x64] sm:$0xf]
    %v4272 = vld [vmem:[#allocation10 + $0x68] sm:$0xf]
    %v4273 = vld [vmem:[#allocation10 + $0x6c] sm:$0xf]
    %v4274 = vld [vmem:[#allocation10 + $0x70] sm:$0xf]
    %v4275 = vld [vmem:[#allocation10 + $0x74] sm:$0xf]
    %v4276 = vld [vmem:[#allocation10 + $0x78] sm:$0xf]
    %v4277 = vld [vmem:[#allocation10 + $0x7c] sm:$0xf]
    %v4278 = vld [vmem:[#allocation10 + $0x80] sm:$0xf]
    %v4279 = vld [vmem:[#allocation10 + $0x84] sm:$0xf]
    %v4280 = vld [vmem:[#allocation10 + $0x88] sm:$0xf]
    %v4281 = vld [vmem:[#allocation10 + $0x8c] sm:$0xf]
    %v4282 = vld [vmem:[#allocation10 + $0x90] sm:$0xf]
    %v4283 = vld [vmem:[#allocation10 + $0x94] sm:$0xf]
    %v4284 = vld [vmem:[#allocation10 + $0x98] sm:$0xf]
    %v4285 = vld [vmem:[#allocation10 + $0x9c] sm:$0xf]
    %v4286 = vld [vmem:[#allocation10 + $0xa0] sm:$0xf]
    %v4287 = vld [vmem:[#allocation10 + $0xa4] sm:$0xf]
    %v4288 = vld [vmem:[#allocation10 + $0xa8] sm:$0xf]
    %v4289 = vld [vmem:[#allocation10 + $0xac] sm:$0xf]
    %v4290 = vld [vmem:[#allocation10 + $0xb0] sm:$0xf]
    %v4291 = vld [vmem:[#allocation10 + $0xb4] sm:$0xf]
    %v4292 = vld [vmem:[#allocation10 + $0xb8] sm:$0xf]
    %v4293 = vld [vmem:[#allocation10 + $0xbc] sm:$0xf]
    %v4294 = vld [vmem:[%s12] sm:$0x1]
    %v4295 = vpack.c.bf16 %v4225, %v4222
    %v4296 = vpack.c.bf16 %v4226, %v4223
    %v4297 = vpack.c.bf16 %v4227, %v4224
    %v4298 = vpack.c.bf16 %v4231, %v4228
    %v4299 = vpack.c.bf16 %v4232, %v4229
    %v4300 = vpack.c.bf16 %v4233, %v4230
    %v4301 = vpack.c.bf16 %v4237, %v4234
    %v4302 = vpack.c.bf16 %v4238, %v4235
    %v4303 = vpack.c.bf16 %v4239, %v4236
    %v4304 = vpack.c.bf16 %v4243, %v4240
    %v4305 = vpack.c.bf16 %v4244, %v4241
    %v4306 = vpack.c.bf16 %v4245, %v4242
    %v4308 = vlaneseq
    %v4309 = vshrl.u32 %v4308, 7
    %v4310 = vsub.s32 0, %v4309
    %v4311 = vrot.slane %v4294, %v4310
    %v4361 = vunpack.c.l.b16 %v4246
    %v4362 = vunpack.c.l.b16 %v4247
    %v4363 = vunpack.c.l.b16 %v4248
    %v4364 = vunpack.c.l.b16 %v4249
    %v4365 = vunpack.c.l.b16 %v4250
    %v4366 = vunpack.c.l.b16 %v4251
    %v4367 = vunpack.c.l.b16 %v4252
    %v4368 = vunpack.c.l.b16 %v4253
    %v4369 = vunpack.c.l.b16 %v4254
    %v4370 = vunpack.c.l.b16 %v4255
    %v4371 = vunpack.c.l.b16 %v4256
    %v4372 = vunpack.c.l.b16 %v4257
    %v4373 = vunpack.c.l.b16 %v4258
    %v4374 = vunpack.c.l.b16 %v4259
    %v4375 = vunpack.c.l.b16 %v4260
    %v4376 = vunpack.c.l.b16 %v4261
    %v4377 = vunpack.c.l.b16 %v4262
    %v4378 = vunpack.c.l.b16 %v4263
    %v4379 = vunpack.c.l.b16 %v4264
    %v4380 = vunpack.c.l.b16 %v4265
    %v4381 = vunpack.c.l.b16 %v4266
    %v4382 = vunpack.c.l.b16 %v4267
    %v4383 = vunpack.c.l.b16 %v4268
    %v4384 = vunpack.c.l.b16 %v4269
    %v4385 = vunpack.c.l.b16 %v4270
    %v4386 = vunpack.c.l.b16 %v4271
    %v4387 = vunpack.c.l.b16 %v4272
    %v4388 = vunpack.c.l.b16 %v4273
    %v4389 = vunpack.c.l.b16 %v4274
    %v4390 = vunpack.c.l.b16 %v4275
    %v4391 = vunpack.c.l.b16 %v4276
    %v4392 = vunpack.c.l.b16 %v4277
    %v4393 = vunpack.c.l.b16 %v4278
    %v4394 = vunpack.c.l.b16 %v4279
    %v4395 = vunpack.c.l.b16 %v4280
    %v4396 = vunpack.c.l.b16 %v4281
    %v4397 = vunpack.c.l.b16 %v4282
    %v4398 = vunpack.c.l.b16 %v4283
    %v4399 = vunpack.c.l.b16 %v4284
    %v4400 = vunpack.c.l.b16 %v4285
    %v4401 = vunpack.c.l.b16 %v4286
    %v4402 = vunpack.c.l.b16 %v4287
    %v4403 = vunpack.c.l.b16 %v4288
    %v4404 = vunpack.c.l.b16 %v4289
    %v4405 = vunpack.c.l.b16 %v4290
    %v4406 = vunpack.c.l.b16 %v4291
    %v4407 = vunpack.c.l.b16 %v4292
    %v4408 = vunpack.c.l.b16 %v4293
    %v4409 = vpack.c.b16 %v4362, %v4361
    %v4410 = vpack.c.b16 %v4364, %v4363
    %v4411 = vpack.c.b16 %v4366, %v4365
    %v4412 = vpack.c.b16 %v4368, %v4367
    %v4413 = vpack.c.b16 %v4370, %v4369
    %v4414 = vpack.c.b16 %v4372, %v4371
    %v4415 = vpack.c.b16 %v4374, %v4373
    %v4416 = vpack.c.b16 %v4376, %v4375
    %v4417 = vpack.c.b16 %v4378, %v4377
    %v4418 = vpack.c.b16 %v4380, %v4379
    %v4419 = vpack.c.b16 %v4382, %v4381
    %v4420 = vpack.c.b16 %v4384, %v4383
    %v4421 = vpack.c.b16 %v4386, %v4385
    %v4422 = vpack.c.b16 %v4388, %v4387
    %v4423 = vpack.c.b16 %v4390, %v4389
    %v4424 = vpack.c.b16 %v4392, %v4391
    %v4425 = vpack.c.b16 %v4394, %v4393
    %v4426 = vpack.c.b16 %v4396, %v4395
    %v4427 = vpack.c.b16 %v4398, %v4397
    %v4428 = vpack.c.b16 %v4400, %v4399
    %v4429 = vpack.c.b16 %v4402, %v4401
    %v4430 = vpack.c.b16 %v4404, %v4403
    %v4431 = vpack.c.b16 %v4406, %v4405
    %v4432 = vpack.c.b16 %v4408, %v4407
    %4457 = vmatprep.subr.bf16.mxu0 0
    %4458 = vmatpush1.bf16.msra.mxu0 %v4409
    %4459 = vmatprep.subr.bf16.mxu0 0
    %4460 = vmatpush1.bf16.msra.mxu0 %v4410
    %4461 = vmatprep.subr.bf16.mxu0 0
    %4462 = vmatpush1.bf16.msra.mxu0 %v4411
    %4463 = vmatprep.subr.bf16.mxu0 0
    %4464 = vmatpush1.bf16.msra.mxu0 %v4412
    %4465 = vmatprep.subr.bf16.mxu0 0
    %4466 = vmatpush1.bf16.msra.mxu0 %v4413
    %4467 = vmatprep.subr.bf16.mxu0 0
    %4468 = vmatpush1.bf16.msra.mxu0 %v4414
    %4469 = vmatprep.subr.bf16.mxu0 0
    %4470 = vmatpush1.bf16.msra.mxu0 %v4415
    %4471 = vmatprep.subr.bf16.mxu0 0
    %4472 = vmatpush1.bf16.msra.mxu0 %v4416
    %4473 = vmatprep.subr.bf16.mxu0 0
    %4474 = vmatpush1.bf16.msra.mxu0 %v4417
    %4475 = vmatprep.subr.bf16.mxu0 0
    %4476 = vmatpush1.bf16.msra.mxu0 %v4418
    %4477 = vmatprep.subr.bf16.mxu0 0
    %4478 = vmatpush1.bf16.msra.mxu0 %v4419
    %4479 = vmatprep.subr.bf16.mxu0 0
    %4480 = vmatpush1.bf16.msra.mxu0 %v4420
    %4481 = vmatprep.subr.bf16.mxu0 0
    %4482 = vmatpush1.bf16.msra.mxu0 %v4421
    %4483 = vmatprep.subr.bf16.mxu0 0
    %4484 = vmatpush1.bf16.msra.mxu0 %v4422
    %4485 = vmatprep.subr.bf16.mxu0 0
    %4486 = vmatpush1.bf16.msra.mxu0 %v4423
    %4487 = vmatprep.subr.bf16.mxu0 0
    %4488 = vmatpush1.bf16.msra.mxu0 %v4424
    %4489 = vmatprep.mubr.bf16.mxu0 %v4296
    %4490 = vmatmul.mubr.bf16.gmra.mrb[0].mxu0 %v4295
    %v4491 = vpop.f32.mrb[0].mxu0
    %v4492 = vadd.f32 %v4311, %v4491
    %v4493 = vpop.f32.mrb[0].mxu0
    %v4494 = vpop.f32.mrb[0].mxu0
    %v4495 = vadd.f32 %v4311, %v4494
    %v4496 = vpop.f32.mrb[0].mxu0
    %4497 = vmatprep.mubr.bf16.mxu0 %v4299
    %4498 = vmatmul.mubr.bf16.gmra.mrb[0].mxu0 %v4298
    %v4499 = vpop.f32.mrb[0].mxu0
    %v4500 = vadd.f32 %v4311, %v4499
    %v4501 = vpop.f32.mrb[0].mxu0
    %v4502 = vpop.f32.mrb[0].mxu0
    %v4503 = vadd.f32 %v4311, %v4502
    %v4504 = vpop.f32.mrb[0].mxu0
    %4505 = vmatprep.mubr.bf16.mxu0 %v4302
    %4506 = vmatmul.mubr.bf16.gmra.mrb[0].mxu0 %v4301
    %v4507 = vpop.f32.mrb[0].mxu0
    %v4508 = vadd.f32 %v4311, %v4507
    %v4509 = vpop.f32.mrb[0].mxu0
    %v4510 = vpop.f32.mrb[0].mxu0
    %v4511 = vadd.f32 %v4311, %v4510
    %v4512 = vpop.f32.mrb[0].mxu0
    %4513 = vmatprep.mubr.bf16.mxu0 %v4305
    %4514 = vmatmul.mubr.bf16.gmra.mrb[0].mxu0 %v4304
    %v4515 = vpop.f32.mrb[0].mxu0
    %v4516 = vadd.f32 %v4311, %v4515
    %v4517 = vpop.f32.mrb[0].mxu0
    %v4518 = vpop.f32.mrb[0].mxu0
    %v4519 = vadd.f32 %v4311, %v4518
    %v4520 = vpop.f32.mrb[0].mxu0
    %4521 = vdwg.mxu0
    %4522 = vmatprep.subr.bf16.mxu0 0
    %4523 = vmatpush1.bf16.msra.mxu0 %v4425
    %4524 = vmatprep.subr.bf16.mxu0 0
    %4525 = vmatpush1.bf16.msra.mxu0 %v4426
    %4526 = vmatprep.subr.bf16.mxu0 0
    %4527 = vmatpush1.bf16.msra.mxu0 %v4427
    %4528 = vmatprep.subr.bf16.mxu0 0
    %4529 = vmatpush1.bf16.msra.mxu0 %v4428
    %4530 = vmatprep.subr.bf16.mxu0 0
    %4531 = vmatpush1.bf16.msra.mxu0 %v4429
    %4532 = vmatprep.subr.bf16.mxu0 0
    %4533 = vmatpush1.bf16.msra.mxu0 %v4430
    %4534 = vmatprep.subr.bf16.mxu0 0
    %4535 = vmatpush1.bf16.msra.mxu0 %v4431
    %4536 = vmatprep.subr.bf16.mxu0 0
    %4537 = vmatpush1.bf16.msra.mxu0 %v4432
    %4538 = vmatprep.subr.bf16.mxu0 0
    %4539 = vmatpush1.bf16.msra.mxu0 0
    %4540 = vmatprep.subr.bf16.mxu0 0
    %4541 = vmatpush1.bf16.msra.mxu0 0
    %4542 = vmatprep.subr.bf16.mxu0 0
    %4543 = vmatpush1.bf16.msra.mxu0 0
    %4544 = vmatprep.subr.bf16.mxu0 0
    %4545 = vmatpush1.bf16.msra.mxu0 0
    %4546 = vmatprep.subr.bf16.mxu0 0
    %4547 = vmatpush1.bf16.msra.mxu0 0
    %4548 = vmatprep.subr.bf16.mxu0 0
    %4549 = vmatpush1.bf16.msra.mxu0 0
    %4550 = vmatprep.subr.bf16.mxu0 0
    %4551 = vmatpush1.bf16.msra.mxu0 0
    %4552 = vmatprep.subr.bf16.mxu0 0
    %4553 = vmatpush1.bf16.msra.mxu0 0
    %4554 = vmatprep.mubr.bf16.mxu0 0
    %4555 = vmatmul.mubr.bf16.gmra.mrb[0].mxu0 %v4297
    %v4556 = vpop.f32.mrb[0].mxu0
    %v4557 = vadd.f32 %v4492, %v4556
    %v4558 = vpop.f32.mrb[0].mxu0
    %v4559 = vpop.f32.mrb[0].mxu0
    %v4560 = vadd.f32 %v4495, %v4559
    %v4561 = vpop.f32.mrb[0].mxu0
    %4562 = vmatprep.mubr.bf16.mxu0 0
    %4563 = vmatmul.mubr.bf16.gmra.mrb[0].mxu0 %v4300
    %v4564 = vpop.f32.mrb[0].mxu0
    %v4565 = vadd.f32 %v4500, %v4564
    %v4566 = vpop.f32.mrb[0].mxu0
    %v4567 = vpop.f32.mrb[0].mxu0
    %v4568 = vadd.f32 %v4503, %v4567
    %v4569 = vpop.f32.mrb[0].mxu0
    %4570 = vmatprep.mubr.bf16.mxu0 0
    %4571 = vmatmul.mubr.bf16.gmra.mrb[0].mxu0 %v4303
    %v4572 = vpop.f32.mrb[0].mxu0
    %v4573 = vadd.f32 %v4508, %v4572
    %v4574 = vpop.f32.mrb[0].mxu0
    %v4575 = vpop.f32.mrb[0].mxu0
    %v4576 = vadd.f32 %v4511, %v4575
    %v4577 = vpop.f32.mrb[0].mxu0
    %4578 = vmatprep.mubr.bf16.mxu0 0
    %4579 = vmatmul.mubr.bf16.gmra.mrb[0].mxu0 %v4306
    %v4580 = vpop.f32.mrb[0].mxu0
    %v4581 = vadd.f32 %v4516, %v4580
    %v4582 = vpop.f32.mrb[0].mxu0
    %v4583 = vpop.f32.mrb[0].mxu0
    %v4584 = vadd.f32 %v4519, %v4583
    %v4585 = vpop.f32.mrb[0].mxu0
    %4586 = vdwg.mxu0
    %vm4587 = vcmp.ge.f32.partialorder %v4557, 0.0
    %vm4588 = vcmp.ge.f32.partialorder %v4560, 0.0
    %vm4589 = vcmp.ge.f32.partialorder %v4565, 0.0
    %vm4590 = vcmp.ge.f32.partialorder %v4568, 0.0
    %vm4591 = vcmp.ge.f32.partialorder %v4573, 0.0
    %vm4592 = vcmp.ge.f32.partialorder %v4576, 0.0
    %vm4593 = vcmp.ge.f32.partialorder %v4581, 0.0
    %vm4594 = vcmp.ge.f32.partialorder %v4584, 0.0
    %v4595 = vmul.f32 %v4557, 2.0
    %v4596 = vmul.f32 %v4560, 2.0
    %v4597 = vmul.f32 %v4565, 2.0
    %v4598 = vmul.f32 %v4568, 2.0
    %v4599 = vmul.f32 %v4573, 2.0
    %v4600 = vmul.f32 %v4576, 2.0
    %v4601 = vmul.f32 %v4581, 2.0
    %v4602 = vmul.f32 %v4584, 2.0
    %v4603 = vsel %vm4587, %v4557, %v4595
    %v4604 = vsel %vm4588, %v4560, %v4596
    %v4605 = vsel %vm4589, %v4565, %v4597
    %v4606 = vsel %vm4590, %v4568, %v4598
    %v4607 = vsel %vm4591, %v4573, %v4599
    %v4608 = vsel %vm4592, %v4576, %v4600
    %v4609 = vsel %vm4593, %v4581, %v4601
    %v4610 = vsel %vm4594, %v4584, %v4602
    %4611 = vst [vmem:[#allocation11] sm:$0xff] %v4603
    %4612 = vst [vmem:[#allocation11 + $0x8] sm:$0xff] %v4604
    %4613 = vst [vmem:[#allocation11 + $0x10] sm:$0xff] %v4605
    %4614 = vst [vmem:[#allocation11 + $0x18] sm:$0xff] %v4606
    %4615 = vst [vmem:[#allocation11 + $0x20] sm:$0xff] %v4607
    %4616 = vst [vmem:[#allocation11 + $0x28] sm:$0xff] %v4608
    %4617 = vst [vmem:[#allocation11 + $0x30] sm:$0xff] %v4609
    %4618 = vst [vmem:[#allocation11 + $0x38] sm:$0xff] %v4610
    // Predicated region
    $region74: #{mlp_forward.1} parent=1 // pred_check
      _
    $region75: #{mlp_forward.1} parent=1 // pred_check_branch
      %4620 = sbr.rel (0) target = $region77
    $region76: #{mlp_forward.1} parent=1 // pred_region
      %s4622 = ssub.s32 1024, 1024
      %4623 = vsyncadd [#allocation4], %s4622
      %s4624 = sshll.u32 [#allocation11], 4
      %s4625 = int_to_ptr.vmem [resolvable:$true] %s4624
      %4630 = dma.vmem_to_hbm [thread:$0]  %s4625, 1024, %s13, [#allocation4], 128, 128, 8
    $region77: #{mlp_forward.1} parent=1 // pred_fallthru
      _
    // Predicated region
    $region78: #{mlp_forward.1} parent=1 // pred_check
      _
    $region79: #{mlp_forward.1} parent=1 // pred_check_branch
      %4632 = sbr.rel (0) target = $region81
    $region80: #{mlp_forward.1} parent=1 // pred_region
      %4633 = dma.done [#allocation4], 1024
    $region81: #{mlp_forward.1} parent=1 // pred_fallthru
      _
    %4634 = vsyncpa [#allocation3], 1
    %4635 = vsyncpa [#allocation6], 1
    %4636 = vsyncpa [#allocation9], 1
    %4637 = vsyncpa [#allocation4], 1

</llo_original>
